<compile_context>
chip_gen: v7x
topology: tpu7x:2x2x1
jax: 0.10.0
libtpu: 0.0.40
codegen_flags: <defaults>
</compile_context>

<pallas_src>
import functools
import math

import jax
import jax.numpy as jnp
from jax.experimental import pallas as pl
from jax.experimental.pallas import tpu as pltpu

EPS = 1e-5
_MAX_BLOCK_ROWS = 4096


def _layernorm_kernel(x_ref, g_ref, b_ref, o_ref, *, inv_c):
    # x_ref: (block_rows, C); g_ref / b_ref: (1, C)
    x = x_ref[...].astype(jnp.float32)
    # One-pass statistics (single sweep over the block for the reductions).
    s1 = jnp.sum(x, axis=-1, keepdims=True)
    s2 = jnp.sum(x * x, axis=-1, keepdims=True)
    mean = s1 * inv_c
    var = jnp.maximum(s2 * inv_c - mean * mean, 0.0)  # biased var, like torch LN
    inv = jax.lax.rsqrt(var + EPS)
    g = g_ref[...].astype(jnp.float32)
    b = b_ref[...].astype(jnp.float32)
    y = (x - mean) * inv * g + b
    o_ref[...] = y.astype(o_ref.dtype)


def _min_parallel_blocks():
    # v7x: 2 TensorCores per chip -> at least 2 blocks per core so DMA and
    # compute pipeline within each core.  v5e/v6e: single core, keep 2 blocks.
    try:
        kind = jax.devices()[0].device_kind.lower()
        if "v7" in kind:
            return 4
    except Exception:  # pragma: no cover - defensive; default is always safe
        pass
    return 2


def _pick_grid(rows, align):
    """Return (num_blocks, block_rows) with block_rows an exact divisor of
    rows and a multiple of the sublane alignment -> no padding ever needed."""
    min_blocks = _min_parallel_blocks()
    for nb in range(min_blocks, 257):
        if rows % nb == 0:
            br = rows // nb
            if br % align == 0 and br <= _MAX_BLOCK_ROWS:
                return nb, br
    # Fallback: one full-array block (block_shape == array shape is always
    # legal); correct for any row count, no wrapper-side pad/slice.
    return 1, rows


@jax.jit
def layernorm_pallas(x, gamma, beta):
    *lead, c = x.shape
    rows = math.prod(lead) if lead else 1
    x2 = x.reshape(rows, c)
    g2 = gamma.reshape(1, c)
    b2 = beta.reshape(1, c)

    # Sublane tile: 8 rows for 4-byte dtypes, 16 for bf16, 32 for 1-byte.
    align = max(8, 32 // x.dtype.itemsize)
    num_blocks, block_rows = _pick_grid(rows, align)

    kernel = functools.partial(_layernorm_kernel, inv_c=1.0 / c)

    itemsize = x.dtype.itemsize
    cost = pl.CostEstimate(
        flops=int(8 * rows * c),
        transcendentals=int(rows),
        bytes_accessed=int(2 * rows * c * itemsize + 2 * c * gamma.dtype.itemsize),
    )

    out = pl.pallas_call(
        kernel,
        out_shape=jax.ShapeDtypeStruct((rows, c), x.dtype),
        grid=(num_blocks,),
        in_specs=[
            pl.BlockSpec((block_rows, c), lambda i: (i, 0)),
            pl.BlockSpec((1, c), lambda i: (0, 0)),
            pl.BlockSpec((1, c), lambda i: (0, 0)),
        ],
        out_specs=pl.BlockSpec((block_rows, c), lambda i: (i, 0)),
        compiler_params=pltpu.CompilerParams(
            dimension_semantics=("parallel",),
        ),
        cost_estimate=cost,
    )(x2, g2, b2)

    return out.reshape(*lead, c)


def layernorm_ref(x, gamma, beta):
    xf = x.astype(jnp.float32)
    mean = jnp.mean(xf, axis=-1, keepdims=True)
    var = jnp.mean((xf - mean) ** 2, axis=-1, keepdims=True)
    y = (xf - mean) * jax.lax.rsqrt(var + EPS)
    return (y * gamma + beta).astype(x.dtype)


if __name__ == "__main__":
    key = jax.random.PRNGKey(0)
    kx, kg, kb = jax.random.split(key, 3)

    # Exact module shape: [1, 56, 56, 96]  (rows=3136; v5e/v6e -> grid=(2,)
    # with 1568-row blocks, v7x -> grid=(4,) with 784-row blocks).
    N, H, W, C = 1, 56, 56, 96
    x = jax.random.normal(kx, (N, H, W, C), dtype=jnp.float32)

    # PyTorch default affine init is ones/zeros; perturb slightly so the
    # affine path is actually exercised.
    gamma = 1.0 + 0.01 * jax.random.normal(kg, (C,), dtype=jnp.float32)
    beta = 0.01 * jax.random.normal(kb, (C,), dtype=jnp.float32)

    out = layernorm_pallas(x, gamma, beta)
    out = jax.block_until_ready(out)

    ref = layernorm_ref(x, gamma, beta)
    assert out.shape == (N, H, W, C)
    assert jnp.allclose(out, ref, atol=1e-5, rtol=1e-5)

    print("KERNEL_OK")
</pallas_src>

<mosaic_0001>
module attributes {stable_mosaic.version = 11 : i64} {
  func.func @_layernorm_kernel(%arg0: i32, %arg1: memref<1568x96xf32, #tpu.memory_space<vmem>>, %arg2: memref<1x96xf32, #tpu.memory_space<vmem>>, %arg3: memref<1x96xf32, #tpu.memory_space<vmem>>, %arg4: memref<1568x96xf32, #tpu.memory_space<vmem>>) attributes {dimension_semantics = [#tpu.dimension_semantics<parallel>], iteration_bounds = array<i64: 2>, scalar_prefetch = 0 : i64, scratch_operands = 0 : i64, tpu.core_type = #tpu.core_type<tc>, window_params = [{transform_indices = @transform_0, window_bounds = array<i64: 1568, 96>}, {pipeline_mode = #tpu.pipeline_mode<synchronous>, transform_indices = @transform_1, window_bounds = array<i64: 1, 96>}, {pipeline_mode = #tpu.pipeline_mode<synchronous>, transform_indices = @transform_2, window_bounds = array<i64: 1, 96>}, {transform_indices = @transform_3, window_bounds = array<i64: 1568, 96>}]} {
    %c0 = arith.constant 0 : index
    %c0_0 = arith.constant 0 : index
    %0 = vector.load %arg1[%c0, %c0_0] : memref<1568x96xf32, #tpu.memory_space<vmem>>, vector<1568x96xf32>
    %cst = arith.constant dense<0.000000e+00> : vector<1568xf32>
    %1 = vector.multi_reduction <add>, %0, %cst [1] : vector<1568x96xf32> to vector<1568xf32>
    %2 = vector.shape_cast %1 : vector<1568xf32> to vector<1568x1xf32>
    %3 = arith.mulf %0, %0 : vector<1568x96xf32>
    %cst_1 = arith.constant dense<0.000000e+00> : vector<1568xf32>
    %4 = vector.multi_reduction <add>, %3, %cst_1 [1] : vector<1568x96xf32> to vector<1568xf32>
    %5 = vector.shape_cast %4 : vector<1568xf32> to vector<1568x1xf32>
    %cst_2 = arith.constant 0.010416667 : f32
    %6 = vector.broadcast %cst_2 : f32 to vector<1568x1xf32>
    %7 = arith.mulf %2, %6 : vector<1568x1xf32>
    %cst_3 = arith.constant 0.010416667 : f32
    %8 = vector.broadcast %cst_3 : f32 to vector<1568x1xf32>
    %9 = arith.mulf %5, %8 : vector<1568x1xf32>
    %10 = arith.mulf %7, %7 : vector<1568x1xf32>
    %11 = arith.subf %9, %10 : vector<1568x1xf32>
    %cst_4 = arith.constant 0.000000e+00 : f32
    %12 = vector.broadcast %cst_4 : f32 to vector<1568x1xf32>
    %13 = arith.maximumf %11, %12 : vector<1568x1xf32>
    %cst_5 = arith.constant 9.99999974E-6 : f32
    %14 = vector.broadcast %cst_5 : f32 to vector<1568x1xf32>
    %15 = arith.addf %13, %14 : vector<1568x1xf32>
    %16 = math.rsqrt %15 : vector<1568x1xf32>
    %c0_6 = arith.constant 0 : index
    %c0_7 = arith.constant 0 : index
    %17 = vector.load %arg2[%c0_6, %c0_7] : memref<1x96xf32, #tpu.memory_space<vmem>>, vector<1x96xf32>
    %c0_8 = arith.constant 0 : index
    %c0_9 = arith.constant 0 : index
    %18 = vector.load %arg3[%c0_8, %c0_9] : memref<1x96xf32, #tpu.memory_space<vmem>>, vector<1x96xf32>
    %19 = vector.broadcast %7 : vector<1568x1xf32> to vector<1568x96xf32>
    %20 = arith.subf %0, %19 : vector<1568x96xf32>
    %21 = vector.broadcast %16 : vector<1568x1xf32> to vector<1568x96xf32>
    %22 = arith.mulf %20, %21 : vector<1568x96xf32>
    %23 = vector.broadcast %17 : vector<1x96xf32> to vector<1568x96xf32>
    %24 = arith.mulf %22, %23 : vector<1568x96xf32>
    %25 = vector.broadcast %18 : vector<1x96xf32> to vector<1568x96xf32>
    %26 = arith.addf %24, %25 : vector<1568x96xf32>
    %c0_10 = arith.constant 0 : index
    %c0_11 = arith.constant 0 : index
    %27 = vector.load %arg4[%c0_10, %c0_11] : memref<1568x96xf32, #tpu.memory_space<vmem>>, vector<1568x96xf32>
    tpu.vector_store %arg4[%c0_10, %c0_11], %26 {strides = array<i32>} : memref<1568x96xf32, #tpu.memory_space<vmem>>, vector<1568x96xf32>,
    return
  }
  func.func @transform_0(%arg0: i32) -> (i32, i32) {
    %c0_i32 = arith.constant 0 : i32
    %c0_i32_0 = arith.constant 0 : i32
    return %arg0, %c0_i32 : i32, i32
  }
  func.func @transform_1(%arg0: i32) -> (i32, i32) {
    %c0_i32 = arith.constant 0 : i32
    %c0_i32_0 = arith.constant 0 : i32
    %c0_i32_1 = arith.constant 0 : i32
    return %c0_i32, %c0_i32_0 : i32, i32
  }
  func.func @transform_2(%arg0: i32) -> (i32, i32) {
    %c0_i32 = arith.constant 0 : i32
    %c0_i32_0 = arith.constant 0 : i32
    %c0_i32_1 = arith.constant 0 : i32
    return %c0_i32, %c0_i32_0 : i32, i32
  }
  func.func @transform_3(%arg0: i32) -> (i32, i32) {
    %c0_i32 = arith.constant 0 : i32
    %c0_i32_0 = arith.constant 0 : i32
    return %arg0, %c0_i32 : i32, i32
  }
}

</mosaic_0001>

<llo_original>
// kernel: layernorm_pallas.1
$region0: #{layernorm_pallas.1}
  #allocation0 [shape = 'u32[]', space=smem, size = 0x4, offset = 0x4, fixed_abs, tag = 'smem constant byte address 0x4 - core index']
  #allocation1 [shape = 'u32[144,128]{1,0:T(1,128)}', space=vmem, size = 0x12000, scoped, tag = 'internal scratch']
  %s0 = inlined_call_operand.hbm [shape: f32[3136,96], index: 0, kind: input, shape index: {}]
  %s1 = inlined_call_operand.hbm [shape: f32[1,96], index: 1, kind: input, shape index: {}]
  %s2 = inlined_call_operand.hbm [shape: f32[1,96], index: 2, kind: input, shape index: {}]
  %s3 = inlined_call_operand.hbm [shape: f32[3136,96], index: 3, kind: output, shape index: {}]
  %s4 = sld [smem:[#allocation0]]
  $region57: #{layernorm_pallas.1} parent=0
    _
  %s6 = ssub.s32 1, %s4
  %s7 = scalar_select 0, %s6, %s4
  $region1: #{layernorm_pallas.1} parent=0
    #allocation2 [shape = 'u8[1605632]{0}', space=vmem, size = 0x188000, scoped, tag = 'input window, operand 0']
    #allocation3 [shape = 's32[2]{0}', space=sflag, size = 0x8, scoped, tag = 'scoped memory for layernorm_pallas.1']
    #allocation4 [shape = 's32[2]{0}', space=sflag, size = 0x8, scoped, tag = 'scoped memory for layernorm_pallas.1']
    #allocation5 [shape = 'u8[512]{0}', space=vmem, size = 0x400, scoped, tag = 'input window, operand 1, single buffered']
    #allocation6 [shape = 's32[1]{0}', space=sflag, size = 0x4, scoped, tag = 'scoped memory for layernorm_pallas.1']
    #allocation7 [shape = 'u8[512]{0}', space=vmem, size = 0x400, scoped, tag = 'input window, operand 2, single buffered']
    #allocation8 [shape = 'u8[1605632]{0}', space=vmem, size = 0x188000, scoped, tag = 'output window, operand 0']
    %8 = vsyncpa [#allocation3], 0
    %s9 = scalar_lea.sflag [#allocation3], 1
    %10 = vsyncpa %s9, 0
    %11 = vsyncpa [#allocation6], 0
    %12 = vsyncpa [#allocation4], 0
    %s13 = scalar_lea.sflag [#allocation4], 1
    %14 = vsyncpa %s13, 0
    loop: start=0, step=1, limit=4
    $region2: #{layernorm_pallas.1} parent=1 // loop_pre_header
      _
    $region3: #{layernorm_pallas.1} parent=1 // loop_header
      %s16 = sphi 0, %s20
      %p17 = scmp.ge.s32.totalorder %s16, 4
      %s26 = sphi 0, %s28
      %s29 = sphi 0, %s26
      %s30 = sphi 0, %s29
      %s46 = sphi 0, %s30
      %s50 = sphi 0, %s50
      %s52 = sphi 0, %s50
      %s53 = sphi 0, %s52
      %s67 = sphi 0, %s53
      %s71 = sphi 0, %s71
      %s73 = sphi 0, %s71
      %s74 = sphi 0, %s73
      %s88 = sphi 0, %s74
      %s94 = sphi 0, %s96
      %s97 = sphi 0, %s94
      %s98 = sphi 0, %s97
      %s114 = sphi 0, %s98
    $region4: #{layernorm_pallas.1} parent=1 // loop_header_branch
      %19 = sbr.rel (%p17) target = $region8
    $region5: #{layernorm_pallas.1} parent=1 // loop_body
      %s21 = ssub.s32 %s16, 1
      %s22 = ssub.s32 %s16, 2
      %s23 = sadd.s32 %s16, 1
      %s24 = ssub.s32 %s16, %s23
      %p25 = scmp.eq.s32.totalorder %s24, 0
      %s27 = sadd.s32 %s26, 1
      %s28 = scalar_select %p25, %s26, %s27
      %p31 = pneg %p25
      %p32 = scmp.eq.s32.totalorder %s16, 1
      %p33 = por %p31, %p32
      %p34 = scmp.ne.s32.totalorder %s26, %s29
      %p35 = scmp.eq.s32.totalorder %s16, 0
      %p36 = por %p34, %p35
      %p37 = scmp.ne.s32.totalorder %s26, %s29
      %p38 = scmp.eq.s32.totalorder %s21, 1
      %p39 = por %p37, %p38
      %p40 = scmp.ne.s32.totalorder %s29, %s30
      %p41 = scmp.eq.s32.totalorder %s21, 0
      %p42 = por %p40, %p41
      %p43 = scmp.ne.s32.totalorder %s29, %s30
      %p44 = scmp.eq.s32.totalorder %s22, 1
      %p45 = por %p43, %p44
      %p47 = scmp.ne.s32.totalorder %s30, %s46
      %p48 = scmp.eq.s32.totalorder %s22, 0
      %p49 = por %p47, %p48
      %s51 = sadd.s32 %s50, 1
      %p54 = scmp.eq.s32.totalorder %s16, 1
      %p55 = scmp.ne.s32.totalorder %s50, %s52
      %p56 = scmp.eq.s32.totalorder %s16, 0
      %p57 = por %p55, %p56
      %p58 = scmp.ne.s32.totalorder %s50, %s52
      %p59 = scmp.eq.s32.totalorder %s21, 1
      %p60 = por %p58, %p59
      %p61 = scmp.ne.s32.totalorder %s52, %s53
      %p62 = scmp.eq.s32.totalorder %s21, 0
      %p63 = por %p61, %p62
      %p64 = scmp.ne.s32.totalorder %s52, %s53
      %p65 = scmp.eq.s32.totalorder %s22, 1
      %p66 = por %p64, %p65
      %p68 = scmp.ne.s32.totalorder %s53, %s67
      %p69 = scmp.eq.s32.totalorder %s22, 0
      %p70 = por %p68, %p69
      %s72 = sadd.s32 %s71, 1
      %p75 = scmp.eq.s32.totalorder %s16, 1
      %p76 = scmp.ne.s32.totalorder %s71, %s73
      %p77 = scmp.eq.s32.totalorder %s16, 0
      %p78 = por %p76, %p77
      %p79 = scmp.ne.s32.totalorder %s71, %s73
      %p80 = scmp.eq.s32.totalorder %s21, 1
      %p81 = por %p79, %p80
      %p82 = scmp.ne.s32.totalorder %s73, %s74
      %p83 = scmp.eq.s32.totalorder %s21, 0
      %p84 = por %p82, %p83
      %p85 = scmp.ne.s32.totalorder %s73, %s74
      %p86 = scmp.eq.s32.totalorder %s22, 1
      %p87 = por %p85, %p86
      %p89 = scmp.ne.s32.totalorder %s74, %s88
      %p90 = scmp.eq.s32.totalorder %s22, 0
      %p91 = por %p89, %p90
      %s92 = ssub.s32 %s16, %s23
      %p93 = scmp.eq.s32.totalorder %s92, 0
      %s95 = sadd.s32 %s94, 1
      %s96 = scalar_select %p93, %s94, %s95
      %p99 = pneg %p93
      %p100 = scmp.eq.s32.totalorder %s16, 1
      %p101 = por %p99, %p100
      %p102 = scmp.ne.s32.totalorder %s94, %s97
      %p103 = scmp.eq.s32.totalorder %s16, 0
      %p104 = por %p102, %p103
      %p105 = scmp.ne.s32.totalorder %s94, %s97
      %p106 = scmp.eq.s32.totalorder %s21, 1
      %p107 = por %p105, %p106
      %p108 = scmp.ne.s32.totalorder %s97, %s98
      %p109 = scmp.eq.s32.totalorder %s21, 0
      %p110 = por %p108, %p109
      %p111 = scmp.ne.s32.totalorder %s97, %s98
      %p112 = scmp.eq.s32.totalorder %s22, 1
      %p113 = por %p111, %p112
      %p115 = scmp.ne.s32.totalorder %s98, %s114
      %p116 = scmp.eq.s32.totalorder %s22, 0
      %p117 = por %p115, %p116
      %p118 = scmp.le.s32.totalorder 1, %s16
      %p119 = scmp.lt.s32.totalorder %s16, 3
      %p120 = pnand %p118, %p119
      %p121 = pneg %p120
      // Predicated region
      $region9: #{layernorm_pallas.1} parent=5 // pred_check
        _
      $region10: #{layernorm_pallas.1} parent=5 // pred_check_branch
        %123 = sbr.rel (%p120) target = $region12
      $region11: #{layernorm_pallas.1} parent=5 // pred_region
        %s124 = ssub.s32 %s16, 1
        // Predicated region
        $region13: #{layernorm_pallas.1} parent=11 // pred_check
          %p125 = pneg %p63
        $region14: #{layernorm_pallas.1} parent=11 // pred_check_branch
          %127 = sbr.rel (%p125) target = $region16
        $region15: #{layernorm_pallas.1} parent=11 // pred_region
          %s129 = ssub.s32 16, 16
          %130 = vsyncadd [#allocation6], %s129
          %s132 = sshll.u32 [#allocation5], 4
          %s133 = int_to_ptr.vmem [resolvable:$true] %s132
          %135 = dma.hbm_to_vmem [thread:$0]  %s1, 16, %s133, [#allocation6]
        $region16: #{layernorm_pallas.1} parent=11 // pred_fallthru
          _
        // Predicated region
        $region17: #{layernorm_pallas.1} parent=11 // pred_check
          %p136 = pneg %p84
        $region18: #{layernorm_pallas.1} parent=11 // pred_check_branch
          %138 = sbr.rel (%p136) target = $region20
        $region19: #{layernorm_pallas.1} parent=11 // pred_region
          %s140 = ssub.s32 16, 16
          %141 = vsyncadd [#allocation6], %s140
          %s143 = sshll.u32 [#allocation7], 4
          %s144 = int_to_ptr.vmem [resolvable:$true] %s143
          %146 = dma.hbm_to_vmem [thread:$0]  %s2, 16, %s144, [#allocation6]
        $region20: #{layernorm_pallas.1} parent=11 // pred_fallthru
          _
      $region12: #{layernorm_pallas.1} parent=5 // pred_fallthru
        _
      %p147 = scmp.lt.s32.totalorder %s16, 2
      // Predicated region
      $region21: #{layernorm_pallas.1} parent=5 // pred_check
        %p148 = pneg %p147
      $region22: #{layernorm_pallas.1} parent=5 // pred_check_branch
        %150 = sbr.rel (%p148) target = $region24
      $region23: #{layernorm_pallas.1} parent=5 // pred_region
        // Predicated region
        $region25: #{layernorm_pallas.1} parent=23 // pred_check
          %p151 = pneg %p36
        $region26: #{layernorm_pallas.1} parent=23 // pred_check_branch
          %153 = sbr.rel (%p151) target = $region28
        $region27: #{layernorm_pallas.1} parent=23 // pred_region
          %s154 = sand.u32 %s26, 1
          %s155 = scalar_lea.sflag [#allocation3], %s154
          %s156 = sand.u32 %s26, 1
          %s157 = smul.addr %s156, 1568
          %s158 = scalar_lea.vmem [#allocation2], %s157
          %s159 = smul.u32 196, %s16
          %s161 = ssub.s32 25088, 25088
          %162 = vsyncadd %s155, %s161
          %s163 = smul.addr %s159, 128
          %s164 = scalar_lea.hbm %s0, %s163
          %s165 = sshll.u32 %s158, 4
          %s166 = int_to_ptr.vmem [resolvable:$true] %s165
          %171 = dma.hbm_to_vmem [thread:$0]  %s164, 25088, %s166, %s155, 128, 128, 8
        $region28: #{layernorm_pallas.1} parent=23 // pred_fallthru
          _
      $region24: #{layernorm_pallas.1} parent=5 // pred_fallthru
        _
      %p172 = scmp.le.s32.totalorder 1, %s16
      %p173 = scmp.lt.s32.totalorder %s16, 3
      %p174 = pnand %p172, %p173
      %p175 = pneg %p174
      // Predicated region
      $region29: #{layernorm_pallas.1} parent=5 // pred_check
        _
      $region30: #{layernorm_pallas.1} parent=5 // pred_check_branch
        %177 = sbr.rel (%p174) target = $region32
      $region31: #{layernorm_pallas.1} parent=5 // pred_region
        %s178 = ssub.s32 %s16, 1
        %s179 = sand.u32 %s29, 1
        %s180 = scalar_lea.sflag [#allocation3], %s179
        %s181 = sand.u32 %s29, 1
        %s182 = smul.addr %s181, 1568
        %s183 = scalar_lea.vmem [#allocation2], %s182
        // Predicated region
        $region33: #{layernorm_pallas.1} parent=31 // pred_check
          %p184 = pneg %p42
        $region34: #{layernorm_pallas.1} parent=31 // pred_check_branch
          %186 = sbr.rel (%p184) target = $region36
        $region35: #{layernorm_pallas.1} parent=31 // pred_region
          %187 = dma.done %s180, 25088
        $region36: #{layernorm_pallas.1} parent=31 // pred_fallthru
          _
        // Predicated region
        $region37: #{layernorm_pallas.1} parent=31 // pred_check
          %p188 = pneg %p63
        $region38: #{layernorm_pallas.1} parent=31 // pred_check_branch
          %190 = sbr.rel (%p188) target = $region40
        $region39: #{layernorm_pallas.1} parent=31 // pred_region
          %191 = dma.done [#allocation6], 16
        $region40: #{layernorm_pallas.1} parent=31 // pred_fallthru
          _
        // Predicated region
        $region41: #{layernorm_pallas.1} parent=31 // pred_check
          %p192 = pneg %p84
        $region42: #{layernorm_pallas.1} parent=31 // pred_check_branch
          %194 = sbr.rel (%p192) target = $region44
        $region43: #{layernorm_pallas.1} parent=31 // pred_region
          %195 = dma.done [#allocation6], 16
        $region44: #{layernorm_pallas.1} parent=31 // pred_fallthru
          _
        %s196 = sand.u32 %s29, 1
        %s197 = scalar_lea.sflag [#allocation3], %s196
        %s198 = sand.u32 %s29, 1
        %s199 = smul.addr %s198, 1568
        %s200 = scalar_lea.vmem [#allocation2], %s199
        %p201 = pneg %p42
        %p202 = pneg %p39
        %p203 = pneg %p63
        %p204 = pneg %p60
        %p205 = pneg %p84
        %p206 = pneg %p81
        %p207 = pneg %p110
        %p208 = pneg %p107
        %s209 = sand.u32 %s97, 1
        %s210 = scalar_lea.sflag [#allocation4], %s209
        %s211 = sand.u32 %s97, 1
        %s212 = smul.addr %s211, 1568
        %s213 = scalar_lea.vmem [#allocation8], %s212
        %s214 = smul.u32 196, %s21
        %s215 = smul.u32 196, %s21
        %v216 = vld [vmem:[%s183] sm:$0xff]
        %v217 = vld [vmem:[%s183 + $0x8] sm:$0xff]
        %v218 = vld [vmem:[%s183 + $0x10] sm:$0xff]
        %v219 = vld [vmem:[%s183 + $0x18] sm:$0xff]
        %v220 = vld [vmem:[%s183 + $0x20] sm:$0xff]
        %v221 = vld [vmem:[%s183 + $0x28] sm:$0xff]
        %v222 = vld [vmem:[%s183 + $0x30] sm:$0xff]
        %v223 = vld [vmem:[%s183 + $0x38] sm:$0xff]
        %v224 = vld [vmem:[%s183 + $0x40] sm:$0xff]
        %v225 = vld [vmem:[%s183 + $0x48] sm:$0xff]
        %v226 = vld [vmem:[%s183 + $0x50] sm:$0xff]
        %v227 = vld [vmem:[%s183 + $0x58] sm:$0xff]
        %v228 = vld [vmem:[%s183 + $0x60] sm:$0xff]
        %v229 = vld [vmem:[%s183 + $0x68] sm:$0xff]
        %v230 = vld [vmem:[%s183 + $0x70] sm:$0xff]
        %v231 = vld [vmem:[%s183 + $0x78] sm:$0xff]
        %v232 = vld [vmem:[%s183 + $0x80] sm:$0xff]
        %v233 = vld [vmem:[%s183 + $0x88] sm:$0xff]
        %v234 = vld [vmem:[%s183 + $0x90] sm:$0xff]
        %v235 = vld [vmem:[%s183 + $0x98] sm:$0xff]
        %v236 = vld [vmem:[%s183 + $0xa0] sm:$0xff]
        %v237 = vld [vmem:[%s183 + $0xa8] sm:$0xff]
        %v238 = vld [vmem:[%s183 + $0xb0] sm:$0xff]
        %v239 = vld [vmem:[%s183 + $0xb8] sm:$0xff]
        %v240 = vld [vmem:[%s183 + $0xc0] sm:$0xff]
        %v241 = vld [vmem:[%s183 + $0xc8] sm:$0xff]
        %v242 = vld [vmem:[%s183 + $0xd0] sm:$0xff]
        %v243 = vld [vmem:[%s183 + $0xd8] sm:$0xff]
        %v244 = vld [vmem:[%s183 + $0xe0] sm:$0xff]
        %v245 = vld [vmem:[%s183 + $0xe8] sm:$0xff]
        %v246 = vld [vmem:[%s183 + $0xf0] sm:$0xff]
        %v247 = vld [vmem:[%s183 + $0xf8] sm:$0xff]
        %v248 = vld [vmem:[%s183 + $0x100] sm:$0xff]
        %v249 = vld [vmem:[%s183 + $0x108] sm:$0xff]
        %v250 = vld [vmem:[%s183 + $0x110] sm:$0xff]
        %v251 = vld [vmem:[%s183 + $0x118] sm:$0xff]
        %v252 = vld [vmem:[%s183 + $0x120] sm:$0xff]
        %v253 = vld [vmem:[%s183 + $0x128] sm:$0xff]
        %v254 = vld [vmem:[%s183 + $0x130] sm:$0xff]
        %v255 = vld [vmem:[%s183 + $0x138] sm:$0xff]
        %v256 = vld [vmem:[%s183 + $0x140] sm:$0xff]
        %v257 = vld [vmem:[%s183 + $0x148] sm:$0xff]
        %v258 = vld [vmem:[%s183 + $0x150] sm:$0xff]
        %v259 = vld [vmem:[%s183 + $0x158] sm:$0xff]
        %v260 = vld [vmem:[%s183 + $0x160] sm:$0xff]
        %v261 = vld [vmem:[%s183 + $0x168] sm:$0xff]
        %v262 = vld [vmem:[%s183 + $0x170] sm:$0xff]
        %v263 = vld [vmem:[%s183 + $0x178] sm:$0xff]
        %v264 = vld [vmem:[%s183 + $0x180] sm:$0xff]
        %v265 = vld [vmem:[%s183 + $0x188] sm:$0xff]
        %v266 = vld [vmem:[%s183 + $0x190] sm:$0xff]
        %v267 = vld [vmem:[%s183 + $0x198] sm:$0xff]
        %v268 = vld [vmem:[%s183 + $0x1a0] sm:$0xff]
        %v269 = vld [vmem:[%s183 + $0x1a8] sm:$0xff]
        %v270 = vld [vmem:[%s183 + $0x1b0] sm:$0xff]
        %v271 = vld [vmem:[%s183 + $0x1b8] sm:$0xff]
        %v272 = vld [vmem:[%s183 + $0x1c0] sm:$0xff]
        %v273 = vld [vmem:[%s183 + $0x1c8] sm:$0xff]
        %v274 = vld [vmem:[%s183 + $0x1d0] sm:$0xff]
        %v275 = vld [vmem:[%s183 + $0x1d8] sm:$0xff]
        %v276 = vld [vmem:[%s183 + $0x1e0] sm:$0xff]
        %v277 = vld [vmem:[%s183 + $0x1e8] sm:$0xff]
        %v278 = vld [vmem:[%s183 + $0x1f0] sm:$0xff]
        %v279 = vld [vmem:[%s183 + $0x1f8] sm:$0xff]
        %v280 = vld [vmem:[%s183 + $0x200] sm:$0xff]
        %v281 = vld [vmem:[%s183 + $0x208] sm:$0xff]
        %v282 = vld [vmem:[%s183 + $0x210] sm:$0xff]
        %v283 = vld [vmem:[%s183 + $0x218] sm:$0xff]
        %v284 = vld [vmem:[%s183 + $0x220] sm:$0xff]
        %v285 = vld [vmem:[%s183 + $0x228] sm:$0xff]
        %v286 = vld [vmem:[%s183 + $0x230] sm:$0xff]
        %v287 = vld [vmem:[%s183 + $0x238] sm:$0xff]
        %v288 = vld [vmem:[%s183 + $0x240] sm:$0xff]
        %v289 = vld [vmem:[%s183 + $0x248] sm:$0xff]
        %v290 = vld [vmem:[%s183 + $0x250] sm:$0xff]
        %v291 = vld [vmem:[%s183 + $0x258] sm:$0xff]
        %v292 = vld [vmem:[%s183 + $0x260] sm:$0xff]
        %v293 = vld [vmem:[%s183 + $0x268] sm:$0xff]
        %v294 = vld [vmem:[%s183 + $0x270] sm:$0xff]
        %v295 = vld [vmem:[%s183 + $0x278] sm:$0xff]
        %v296 = vld [vmem:[%s183 + $0x280] sm:$0xff]
        %v297 = vld [vmem:[%s183 + $0x288] sm:$0xff]
        %v298 = vld [vmem:[%s183 + $0x290] sm:$0xff]
        %v299 = vld [vmem:[%s183 + $0x298] sm:$0xff]
        %v300 = vld [vmem:[%s183 + $0x2a0] sm:$0xff]
        %v301 = vld [vmem:[%s183 + $0x2a8] sm:$0xff]
        %v302 = vld [vmem:[%s183 + $0x2b0] sm:$0xff]
        %v303 = vld [vmem:[%s183 + $0x2b8] sm:$0xff]
        %v304 = vld [vmem:[%s183 + $0x2c0] sm:$0xff]
        %v305 = vld [vmem:[%s183 + $0x2c8] sm:$0xff]
        %v306 = vld [vmem:[%s183 + $0x2d0] sm:$0xff]
        %v307 = vld [vmem:[%s183 + $0x2d8] sm:$0xff]
        %v308 = vld [vmem:[%s183 + $0x2e0] sm:$0xff]
        %v309 = vld [vmem:[%s183 + $0x2e8] sm:$0xff]
        %v310 = vld [vmem:[%s183 + $0x2f0] sm:$0xff]
        %v311 = vld [vmem:[%s183 + $0x2f8] sm:$0xff]
        %v312 = vld [vmem:[%s183 + $0x300] sm:$0xff]
        %v313 = vld [vmem:[%s183 + $0x308] sm:$0xff]
        %v314 = vld [vmem:[%s183 + $0x310] sm:$0xff]
        %v315 = vld [vmem:[%s183 + $0x318] sm:$0xff]
        %v316 = vld [vmem:[%s183 + $0x320] sm:$0xff]
        %v317 = vld [vmem:[%s183 + $0x328] sm:$0xff]
        %v318 = vld [vmem:[%s183 + $0x330] sm:$0xff]
        %v319 = vld [vmem:[%s183 + $0x338] sm:$0xff]
        %v320 = vld [vmem:[%s183 + $0x340] sm:$0xff]
        %v321 = vld [vmem:[%s183 + $0x348] sm:$0xff]
        %v322 = vld [vmem:[%s183 + $0x350] sm:$0xff]
        %v323 = vld [vmem:[%s183 + $0x358] sm:$0xff]
        %v324 = vld [vmem:[%s183 + $0x360] sm:$0xff]
        %v325 = vld [vmem:[%s183 + $0x368] sm:$0xff]
        %v326 = vld [vmem:[%s183 + $0x370] sm:$0xff]
        %v327 = vld [vmem:[%s183 + $0x378] sm:$0xff]
        %v328 = vld [vmem:[%s183 + $0x380] sm:$0xff]
        %v329 = vld [vmem:[%s183 + $0x388] sm:$0xff]
        %v330 = vld [vmem:[%s183 + $0x390] sm:$0xff]
        %v331 = vld [vmem:[%s183 + $0x398] sm:$0xff]
        %v332 = vld [vmem:[%s183 + $0x3a0] sm:$0xff]
        %v333 = vld [vmem:[%s183 + $0x3a8] sm:$0xff]
        %v334 = vld [vmem:[%s183 + $0x3b0] sm:$0xff]
        %v335 = vld [vmem:[%s183 + $0x3b8] sm:$0xff]
        %v336 = vld [vmem:[%s183 + $0x3c0] sm:$0xff]
        %v337 = vld [vmem:[%s183 + $0x3c8] sm:$0xff]
        %v338 = vld [vmem:[%s183 + $0x3d0] sm:$0xff]
        %v339 = vld [vmem:[%s183 + $0x3d8] sm:$0xff]
        %v340 = vld [vmem:[%s183 + $0x3e0] sm:$0xff]
        %v341 = vld [vmem:[%s183 + $0x3e8] sm:$0xff]
        %v342 = vld [vmem:[%s183 + $0x3f0] sm:$0xff]
        %v343 = vld [vmem:[%s183 + $0x3f8] sm:$0xff]
        %v344 = vld [vmem:[%s183 + $0x400] sm:$0xff]
        %v345 = vld [vmem:[%s183 + $0x408] sm:$0xff]
        %v346 = vld [vmem:[%s183 + $0x410] sm:$0xff]
        %v347 = vld [vmem:[%s183 + $0x418] sm:$0xff]
        %v348 = vld [vmem:[%s183 + $0x420] sm:$0xff]
        %v349 = vld [vmem:[%s183 + $0x428] sm:$0xff]
        %v350 = vld [vmem:[%s183 + $0x430] sm:$0xff]
        %v351 = vld [vmem:[%s183 + $0x438] sm:$0xff]
        %v352 = vld [vmem:[%s183 + $0x440] sm:$0xff]
        %v353 = vld [vmem:[%s183 + $0x448] sm:$0xff]
        %v354 = vld [vmem:[%s183 + $0x450] sm:$0xff]
        %v355 = vld [vmem:[%s183 + $0x458] sm:$0xff]
        %v356 = vld [vmem:[%s183 + $0x460] sm:$0xff]
        %v357 = vld [vmem:[%s183 + $0x468] sm:$0xff]
        %v358 = vld [vmem:[%s183 + $0x470] sm:$0xff]
        %v359 = vld [vmem:[%s183 + $0x478] sm:$0xff]
        %v360 = vld [vmem:[%s183 + $0x480] sm:$0xff]
        %v361 = vld [vmem:[%s183 + $0x488] sm:$0xff]
        %v362 = vld [vmem:[%s183 + $0x490] sm:$0xff]
        %v363 = vld [vmem:[%s183 + $0x498] sm:$0xff]
        %v364 = vld [vmem:[%s183 + $0x4a0] sm:$0xff]
        %v365 = vld [vmem:[%s183 + $0x4a8] sm:$0xff]
        %v366 = vld [vmem:[%s183 + $0x4b0] sm:$0xff]
        %v367 = vld [vmem:[%s183 + $0x4b8] sm:$0xff]
        %v368 = vld [vmem:[%s183 + $0x4c0] sm:$0xff]
        %v369 = vld [vmem:[%s183 + $0x4c8] sm:$0xff]
        %v370 = vld [vmem:[%s183 + $0x4d0] sm:$0xff]
        %v371 = vld [vmem:[%s183 + $0x4d8] sm:$0xff]
        %v372 = vld [vmem:[%s183 + $0x4e0] sm:$0xff]
        %v373 = vld [vmem:[%s183 + $0x4e8] sm:$0xff]
        %v374 = vld [vmem:[%s183 + $0x4f0] sm:$0xff]
        %v375 = vld [vmem:[%s183 + $0x4f8] sm:$0xff]
        %v376 = vld [vmem:[%s183 + $0x500] sm:$0xff]
        %v377 = vld [vmem:[%s183 + $0x508] sm:$0xff]
        %v378 = vld [vmem:[%s183 + $0x510] sm:$0xff]
        %v379 = vld [vmem:[%s183 + $0x518] sm:$0xff]
        %v380 = vld [vmem:[%s183 + $0x520] sm:$0xff]
        %v381 = vld [vmem:[%s183 + $0x528] sm:$0xff]
        %v382 = vld [vmem:[%s183 + $0x530] sm:$0xff]
        %v383 = vld [vmem:[%s183 + $0x538] sm:$0xff]
        %v384 = vld [vmem:[%s183 + $0x540] sm:$0xff]
        %v385 = vld [vmem:[%s183 + $0x548] sm:$0xff]
        %v386 = vld [vmem:[%s183 + $0x550] sm:$0xff]
        %v387 = vld [vmem:[%s183 + $0x558] sm:$0xff]
        %v388 = vld [vmem:[%s183 + $0x560] sm:$0xff]
        %v389 = vld [vmem:[%s183 + $0x568] sm:$0xff]
        %v390 = vld [vmem:[%s183 + $0x570] sm:$0xff]
        %v391 = vld [vmem:[%s183 + $0x578] sm:$0xff]
        %v392 = vld [vmem:[%s183 + $0x580] sm:$0xff]
        %v393 = vld [vmem:[%s183 + $0x588] sm:$0xff]
        %v394 = vld [vmem:[%s183 + $0x590] sm:$0xff]
        %v395 = vld [vmem:[%s183 + $0x598] sm:$0xff]
        %v396 = vld [vmem:[%s183 + $0x5a0] sm:$0xff]
        %v397 = vld [vmem:[%s183 + $0x5a8] sm:$0xff]
        %v398 = vld [vmem:[%s183 + $0x5b0] sm:$0xff]
        %v399 = vld [vmem:[%s183 + $0x5b8] sm:$0xff]
        %v400 = vld [vmem:[%s183 + $0x5c0] sm:$0xff]
        %v401 = vld [vmem:[%s183 + $0x5c8] sm:$0xff]
        %v402 = vld [vmem:[%s183 + $0x5d0] sm:$0xff]
        %v403 = vld [vmem:[%s183 + $0x5d8] sm:$0xff]
        %v404 = vld [vmem:[%s183 + $0x5e0] sm:$0xff]
        %v405 = vld [vmem:[%s183 + $0x5e8] sm:$0xff]
        %v406 = vld [vmem:[%s183 + $0x5f0] sm:$0xff]
        %v407 = vld [vmem:[%s183 + $0x5f8] sm:$0xff]
        %v408 = vld [vmem:[%s183 + $0x600] sm:$0xff]
        %v409 = vld [vmem:[%s183 + $0x608] sm:$0xff]
        %v410 = vld [vmem:[%s183 + $0x610] sm:$0xff]
        %v411 = vld [vmem:[%s183 + $0x618] sm:$0xff]
        %vm412 = vcmask 785408
        %v413 = vsel %vm412, %v216, 0.0
        %414 = vadd.xlane.f32.xlu0 %v413
        %v415 = vpop.xlane.xlu0 %414
        %v416 = vsel %vm412, %v217, 0.0
        %417 = vadd.xlane.f32.xlu0 %v416
        %v418 = vpop.xlane.xlu0 %417
        %v419 = vsel %vm412, %v218, 0.0
        %420 = vadd.xlane.f32.xlu0 %v419
        %v421 = vpop.xlane.xlu0 %420
        %v422 = vsel %vm412, %v219, 0.0
        %423 = vadd.xlane.f32.xlu0 %v422
        %v424 = vpop.xlane.xlu0 %423
        %v425 = vsel %vm412, %v220, 0.0
        %426 = vadd.xlane.f32.xlu0 %v425
        %v427 = vpop.xlane.xlu0 %426
        %v428 = vsel %vm412, %v221, 0.0
        %429 = vadd.xlane.f32.xlu0 %v428
        %v430 = vpop.xlane.xlu0 %429
        %v431 = vsel %vm412, %v222, 0.0
        %432 = vadd.xlane.f32.xlu0 %v431
        %v433 = vpop.xlane.xlu0 %432
        %v434 = vsel %vm412, %v223, 0.0
        %435 = vadd.xlane.f32.xlu0 %v434
        %v436 = vpop.xlane.xlu0 %435
        %v437 = vsel %vm412, %v224, 0.0
        %438 = vadd.xlane.f32.xlu0 %v437
        %v439 = vpop.xlane.xlu0 %438
        %v440 = vsel %vm412, %v225, 0.0
        %441 = vadd.xlane.f32.xlu0 %v440
        %v442 = vpop.xlane.xlu0 %441
        %v443 = vsel %vm412, %v226, 0.0
        %444 = vadd.xlane.f32.xlu0 %v443
        %v445 = vpop.xlane.xlu0 %444
        %v446 = vsel %vm412, %v227, 0.0
        %447 = vadd.xlane.f32.xlu0 %v446
        %v448 = vpop.xlane.xlu0 %447
        %v449 = vsel %vm412, %v228, 0.0
        %450 = vadd.xlane.f32.xlu0 %v449
        %v451 = vpop.xlane.xlu0 %450
        %v452 = vsel %vm412, %v229, 0.0
        %453 = vadd.xlane.f32.xlu0 %v452
        %v454 = vpop.xlane.xlu0 %453
        %v455 = vsel %vm412, %v230, 0.0
        %456 = vadd.xlane.f32.xlu0 %v455
        %v457 = vpop.xlane.xlu0 %456
        %v458 = vsel %vm412, %v231, 0.0
        %459 = vadd.xlane.f32.xlu0 %v458
        %v460 = vpop.xlane.xlu0 %459
        %v461 = vsel %vm412, %v232, 0.0
        %462 = vadd.xlane.f32.xlu0 %v461
        %v463 = vpop.xlane.xlu0 %462
        %v464 = vsel %vm412, %v233, 0.0
        %465 = vadd.xlane.f32.xlu0 %v464
        %v466 = vpop.xlane.xlu0 %465
        %v467 = vsel %vm412, %v234, 0.0
        %468 = vadd.xlane.f32.xlu0 %v467
        %v469 = vpop.xlane.xlu0 %468
        %v470 = vsel %vm412, %v235, 0.0
        %471 = vadd.xlane.f32.xlu0 %v470
        %v472 = vpop.xlane.xlu0 %471
        %v473 = vsel %vm412, %v236, 0.0
        %474 = vadd.xlane.f32.xlu0 %v473
        %v475 = vpop.xlane.xlu0 %474
        %v476 = vsel %vm412, %v237, 0.0
        %477 = vadd.xlane.f32.xlu0 %v476
        %v478 = vpop.xlane.xlu0 %477
        %v479 = vsel %vm412, %v238, 0.0
        %480 = vadd.xlane.f32.xlu0 %v479
        %v481 = vpop.xlane.xlu0 %480
        %v482 = vsel %vm412, %v239, 0.0
        %483 = vadd.xlane.f32.xlu0 %v482
        %v484 = vpop.xlane.xlu0 %483
        %v485 = vsel %vm412, %v240, 0.0
        %486 = vadd.xlane.f32.xlu0 %v485
        %v487 = vpop.xlane.xlu0 %486
        %v488 = vsel %vm412, %v241, 0.0
        %489 = vadd.xlane.f32.xlu0 %v488
        %v490 = vpop.xlane.xlu0 %489
        %v491 = vsel %vm412, %v242, 0.0
        %492 = vadd.xlane.f32.xlu0 %v491
        %v493 = vpop.xlane.xlu0 %492
        %v494 = vsel %vm412, %v243, 0.0
        %495 = vadd.xlane.f32.xlu0 %v494
        %v496 = vpop.xlane.xlu0 %495
        %v497 = vsel %vm412, %v244, 0.0
        %498 = vadd.xlane.f32.xlu0 %v497
        %v499 = vpop.xlane.xlu0 %498
        %v500 = vsel %vm412, %v245, 0.0
        %501 = vadd.xlane.f32.xlu0 %v500
        %v502 = vpop.xlane.xlu0 %501
        %v503 = vsel %vm412, %v246, 0.0
        %504 = vadd.xlane.f32.xlu0 %v503
        %v505 = vpop.xlane.xlu0 %504
        %v506 = vsel %vm412, %v247, 0.0
        %507 = vadd.xlane.f32.xlu0 %v506
        %v508 = vpop.xlane.xlu0 %507
        %v509 = vsel %vm412, %v248, 0.0
        %510 = vadd.xlane.f32.xlu0 %v509
        %v511 = vpop.xlane.xlu0 %510
        %v512 = vsel %vm412, %v249, 0.0
        %513 = vadd.xlane.f32.xlu0 %v512
        %v514 = vpop.xlane.xlu0 %513
        %v515 = vsel %vm412, %v250, 0.0
        %516 = vadd.xlane.f32.xlu0 %v515
        %v517 = vpop.xlane.xlu0 %516
        %v518 = vsel %vm412, %v251, 0.0
        %519 = vadd.xlane.f32.xlu0 %v518
        %v520 = vpop.xlane.xlu0 %519
        %v521 = vsel %vm412, %v252, 0.0
        %522 = vadd.xlane.f32.xlu0 %v521
        %v523 = vpop.xlane.xlu0 %522
        %v524 = vsel %vm412, %v253, 0.0
        %525 = vadd.xlane.f32.xlu0 %v524
        %v526 = vpop.xlane.xlu0 %525
        %v527 = vsel %vm412, %v254, 0.0
        %528 = vadd.xlane.f32.xlu0 %v527
        %v529 = vpop.xlane.xlu0 %528
        %v530 = vsel %vm412, %v255, 0.0
        %531 = vadd.xlane.f32.xlu0 %v530
        %v532 = vpop.xlane.xlu0 %531
        %v533 = vsel %vm412, %v256, 0.0
        %534 = vadd.xlane.f32.xlu0 %v533
        %v535 = vpop.xlane.xlu0 %534
        %v536 = vsel %vm412, %v257, 0.0
        %537 = vadd.xlane.f32.xlu0 %v536
        %v538 = vpop.xlane.xlu0 %537
        %v539 = vsel %vm412, %v258, 0.0
        %540 = vadd.xlane.f32.xlu0 %v539
        %v541 = vpop.xlane.xlu0 %540
        %v542 = vsel %vm412, %v259, 0.0
        %543 = vadd.xlane.f32.xlu0 %v542
        %v544 = vpop.xlane.xlu0 %543
        %v545 = vsel %vm412, %v260, 0.0
        %546 = vadd.xlane.f32.xlu0 %v545
        %v547 = vpop.xlane.xlu0 %546
        %v548 = vsel %vm412, %v261, 0.0
        %549 = vadd.xlane.f32.xlu0 %v548
        %v550 = vpop.xlane.xlu0 %549
        %v551 = vsel %vm412, %v262, 0.0
        %552 = vadd.xlane.f32.xlu0 %v551
        %v553 = vpop.xlane.xlu0 %552
        %v554 = vsel %vm412, %v263, 0.0
        %555 = vadd.xlane.f32.xlu0 %v554
        %v556 = vpop.xlane.xlu0 %555
        %v557 = vsel %vm412, %v264, 0.0
        %558 = vadd.xlane.f32.xlu0 %v557
        %v559 = vpop.xlane.xlu0 %558
        %v560 = vsel %vm412, %v265, 0.0
        %561 = vadd.xlane.f32.xlu0 %v560
        %v562 = vpop.xlane.xlu0 %561
        %v563 = vsel %vm412, %v266, 0.0
        %564 = vadd.xlane.f32.xlu0 %v563
        %v565 = vpop.xlane.xlu0 %564
        %v566 = vsel %vm412, %v267, 0.0
        %567 = vadd.xlane.f32.xlu0 %v566
        %v568 = vpop.xlane.xlu0 %567
        %v569 = vsel %vm412, %v268, 0.0
        %570 = vadd.xlane.f32.xlu0 %v569
        %v571 = vpop.xlane.xlu0 %570
        %v572 = vsel %vm412, %v269, 0.0
        %573 = vadd.xlane.f32.xlu0 %v572
        %v574 = vpop.xlane.xlu0 %573
        %v575 = vsel %vm412, %v270, 0.0
        %576 = vadd.xlane.f32.xlu0 %v575
        %v577 = vpop.xlane.xlu0 %576
        %v578 = vsel %vm412, %v271, 0.0
        %579 = vadd.xlane.f32.xlu0 %v578
        %v580 = vpop.xlane.xlu0 %579
        %v581 = vsel %vm412, %v272, 0.0
        %582 = vadd.xlane.f32.xlu0 %v581
        %v583 = vpop.xlane.xlu0 %582
        %v584 = vsel %vm412, %v273, 0.0
        %585 = vadd.xlane.f32.xlu0 %v584
        %v586 = vpop.xlane.xlu0 %585
        %v587 = vsel %vm412, %v274, 0.0
        %588 = vadd.xlane.f32.xlu0 %v587
        %v589 = vpop.xlane.xlu0 %588
        %v590 = vsel %vm412, %v275, 0.0
        %591 = vadd.xlane.f32.xlu0 %v590
        %v592 = vpop.xlane.xlu0 %591
        %v593 = vsel %vm412, %v276, 0.0
        %594 = vadd.xlane.f32.xlu0 %v593
        %v595 = vpop.xlane.xlu0 %594
        %v596 = vsel %vm412, %v277, 0.0
        %597 = vadd.xlane.f32.xlu0 %v596
        %v598 = vpop.xlane.xlu0 %597
        %v599 = vsel %vm412, %v278, 0.0
        %600 = vadd.xlane.f32.xlu0 %v599
        %v601 = vpop.xlane.xlu0 %600
        %v602 = vsel %vm412, %v279, 0.0
        %603 = vadd.xlane.f32.xlu0 %v602
        %v604 = vpop.xlane.xlu0 %603
        %v605 = vsel %vm412, %v280, 0.0
        %606 = vadd.xlane.f32.xlu0 %v605
        %v607 = vpop.xlane.xlu0 %606
        %v608 = vsel %vm412, %v281, 0.0
        %609 = vadd.xlane.f32.xlu0 %v608
        %v610 = vpop.xlane.xlu0 %609
        %v611 = vsel %vm412, %v282, 0.0
        %612 = vadd.xlane.f32.xlu0 %v611
        %v613 = vpop.xlane.xlu0 %612
        %v614 = vsel %vm412, %v283, 0.0
        %615 = vadd.xlane.f32.xlu0 %v614
        %v616 = vpop.xlane.xlu0 %615
        %v617 = vsel %vm412, %v284, 0.0
        %618 = vadd.xlane.f32.xlu0 %v617
        %v619 = vpop.xlane.xlu0 %618
        %v620 = vsel %vm412, %v285, 0.0
        %621 = vadd.xlane.f32.xlu0 %v620
        %v622 = vpop.xlane.xlu0 %621
        %v623 = vsel %vm412, %v286, 0.0
        %624 = vadd.xlane.f32.xlu0 %v623
        %v625 = vpop.xlane.xlu0 %624
        %v626 = vsel %vm412, %v287, 0.0
        %627 = vadd.xlane.f32.xlu0 %v626
        %v628 = vpop.xlane.xlu0 %627
        %v629 = vsel %vm412, %v288, 0.0
        %630 = vadd.xlane.f32.xlu0 %v629
        %v631 = vpop.xlane.xlu0 %630
        %v632 = vsel %vm412, %v289, 0.0
        %633 = vadd.xlane.f32.xlu0 %v632
        %v634 = vpop.xlane.xlu0 %633
        %v635 = vsel %vm412, %v290, 0.0
        %636 = vadd.xlane.f32.xlu0 %v635
        %v637 = vpop.xlane.xlu0 %636
        %v638 = vsel %vm412, %v291, 0.0
        %639 = vadd.xlane.f32.xlu0 %v638
        %v640 = vpop.xlane.xlu0 %639
        %v641 = vsel %vm412, %v292, 0.0
        %642 = vadd.xlane.f32.xlu0 %v641
        %v643 = vpop.xlane.xlu0 %642
        %v644 = vsel %vm412, %v293, 0.0
        %645 = vadd.xlane.f32.xlu0 %v644
        %v646 = vpop.xlane.xlu0 %645
        %v647 = vsel %vm412, %v294, 0.0
        %648 = vadd.xlane.f32.xlu0 %v647
        %v649 = vpop.xlane.xlu0 %648
        %v650 = vsel %vm412, %v295, 0.0
        %651 = vadd.xlane.f32.xlu0 %v650
        %v652 = vpop.xlane.xlu0 %651
        %v653 = vsel %vm412, %v296, 0.0
        %654 = vadd.xlane.f32.xlu0 %v653
        %v655 = vpop.xlane.xlu0 %654
        %v656 = vsel %vm412, %v297, 0.0
        %657 = vadd.xlane.f32.xlu0 %v656
        %v658 = vpop.xlane.xlu0 %657
        %v659 = vsel %vm412, %v298, 0.0
        %660 = vadd.xlane.f32.xlu0 %v659
        %v661 = vpop.xlane.xlu0 %660
        %v662 = vsel %vm412, %v299, 0.0
        %663 = vadd.xlane.f32.xlu0 %v662
        %v664 = vpop.xlane.xlu0 %663
        %v665 = vsel %vm412, %v300, 0.0
        %666 = vadd.xlane.f32.xlu0 %v665
        %v667 = vpop.xlane.xlu0 %666
        %v668 = vsel %vm412, %v301, 0.0
        %669 = vadd.xlane.f32.xlu0 %v668
        %v670 = vpop.xlane.xlu0 %669
        %v671 = vsel %vm412, %v302, 0.0
        %672 = vadd.xlane.f32.xlu0 %v671
        %v673 = vpop.xlane.xlu0 %672
        %v674 = vsel %vm412, %v303, 0.0
        %675 = vadd.xlane.f32.xlu0 %v674
        %v676 = vpop.xlane.xlu0 %675
        %v677 = vsel %vm412, %v304, 0.0
        %678 = vadd.xlane.f32.xlu0 %v677
        %v679 = vpop.xlane.xlu0 %678
        %v680 = vsel %vm412, %v305, 0.0
        %681 = vadd.xlane.f32.xlu0 %v680
        %v682 = vpop.xlane.xlu0 %681
        %v683 = vsel %vm412, %v306, 0.0
        %684 = vadd.xlane.f32.xlu0 %v683
        %v685 = vpop.xlane.xlu0 %684
        %v686 = vsel %vm412, %v307, 0.0
        %687 = vadd.xlane.f32.xlu0 %v686
        %v688 = vpop.xlane.xlu0 %687
        %v689 = vsel %vm412, %v308, 0.0
        %690 = vadd.xlane.f32.xlu0 %v689
        %v691 = vpop.xlane.xlu0 %690
        %v692 = vsel %vm412, %v309, 0.0
        %693 = vadd.xlane.f32.xlu0 %v692
        %v694 = vpop.xlane.xlu0 %693
        %v695 = vsel %vm412, %v310, 0.0
        %696 = vadd.xlane.f32.xlu0 %v695
        %v697 = vpop.xlane.xlu0 %696
        %v698 = vsel %vm412, %v311, 0.0
        %699 = vadd.xlane.f32.xlu0 %v698
        %v700 = vpop.xlane.xlu0 %699
        %v701 = vsel %vm412, %v312, 0.0
        %702 = vadd.xlane.f32.xlu0 %v701
        %v703 = vpop.xlane.xlu0 %702
        %v704 = vsel %vm412, %v313, 0.0
        %705 = vadd.xlane.f32.xlu0 %v704
        %v706 = vpop.xlane.xlu0 %705
        %v707 = vsel %vm412, %v314, 0.0
        %708 = vadd.xlane.f32.xlu0 %v707
        %v709 = vpop.xlane.xlu0 %708
        %v710 = vsel %vm412, %v315, 0.0
        %711 = vadd.xlane.f32.xlu0 %v710
        %v712 = vpop.xlane.xlu0 %711
        %v713 = vsel %vm412, %v316, 0.0
        %714 = vadd.xlane.f32.xlu0 %v713
        %v715 = vpop.xlane.xlu0 %714
        %v716 = vsel %vm412, %v317, 0.0
        %717 = vadd.xlane.f32.xlu0 %v716
        %v718 = vpop.xlane.xlu0 %717
        %v719 = vsel %vm412, %v318, 0.0
        %720 = vadd.xlane.f32.xlu0 %v719
        %v721 = vpop.xlane.xlu0 %720
        %v722 = vsel %vm412, %v319, 0.0
        %723 = vadd.xlane.f32.xlu0 %v722
        %v724 = vpop.xlane.xlu0 %723
        %v725 = vsel %vm412, %v320, 0.0
        %726 = vadd.xlane.f32.xlu0 %v725
        %v727 = vpop.xlane.xlu0 %726
        %v728 = vsel %vm412, %v321, 0.0
        %729 = vadd.xlane.f32.xlu0 %v728
        %v730 = vpop.xlane.xlu0 %729
        %v731 = vsel %vm412, %v322, 0.0
        %732 = vadd.xlane.f32.xlu0 %v731
        %v733 = vpop.xlane.xlu0 %732
        %v734 = vsel %vm412, %v323, 0.0
        %735 = vadd.xlane.f32.xlu0 %v734
        %v736 = vpop.xlane.xlu0 %735
        %v737 = vsel %vm412, %v324, 0.0
        %738 = vadd.xlane.f32.xlu0 %v737
        %v739 = vpop.xlane.xlu0 %738
        %v740 = vsel %vm412, %v325, 0.0
        %741 = vadd.xlane.f32.xlu0 %v740
        %v742 = vpop.xlane.xlu0 %741
        %v743 = vsel %vm412, %v326, 0.0
        %744 = vadd.xlane.f32.xlu0 %v743
        %v745 = vpop.xlane.xlu0 %744
        %v746 = vsel %vm412, %v327, 0.0
        %747 = vadd.xlane.f32.xlu0 %v746
        %v748 = vpop.xlane.xlu0 %747
        %v749 = vsel %vm412, %v328, 0.0
        %750 = vadd.xlane.f32.xlu0 %v749
        %v751 = vpop.xlane.xlu0 %750
        %v752 = vsel %vm412, %v329, 0.0
        %753 = vadd.xlane.f32.xlu0 %v752
        %v754 = vpop.xlane.xlu0 %753
        %v755 = vsel %vm412, %v330, 0.0
        %756 = vadd.xlane.f32.xlu0 %v755
        %v757 = vpop.xlane.xlu0 %756
        %v758 = vsel %vm412, %v331, 0.0
        %759 = vadd.xlane.f32.xlu0 %v758
        %v760 = vpop.xlane.xlu0 %759
        %v761 = vsel %vm412, %v332, 0.0
        %762 = vadd.xlane.f32.xlu0 %v761
        %v763 = vpop.xlane.xlu0 %762
        %v764 = vsel %vm412, %v333, 0.0
        %765 = vadd.xlane.f32.xlu0 %v764
        %v766 = vpop.xlane.xlu0 %765
        %v767 = vsel %vm412, %v334, 0.0
        %768 = vadd.xlane.f32.xlu0 %v767
        %v769 = vpop.xlane.xlu0 %768
        %v770 = vsel %vm412, %v335, 0.0
        %771 = vadd.xlane.f32.xlu0 %v770
        %v772 = vpop.xlane.xlu0 %771
        %v773 = vsel %vm412, %v336, 0.0
        %774 = vadd.xlane.f32.xlu0 %v773
        %v775 = vpop.xlane.xlu0 %774
        %v776 = vsel %vm412, %v337, 0.0
        %777 = vadd.xlane.f32.xlu0 %v776
        %v778 = vpop.xlane.xlu0 %777
        %v779 = vsel %vm412, %v338, 0.0
        %780 = vadd.xlane.f32.xlu0 %v779
        %v781 = vpop.xlane.xlu0 %780
        %v782 = vsel %vm412, %v339, 0.0
        %783 = vadd.xlane.f32.xlu0 %v782
        %v784 = vpop.xlane.xlu0 %783
        %v785 = vsel %vm412, %v340, 0.0
        %786 = vadd.xlane.f32.xlu0 %v785
        %v787 = vpop.xlane.xlu0 %786
        %v788 = vsel %vm412, %v341, 0.0
        %789 = vadd.xlane.f32.xlu0 %v788
        %v790 = vpop.xlane.xlu0 %789
        %v791 = vsel %vm412, %v342, 0.0
        %792 = vadd.xlane.f32.xlu0 %v791
        %v793 = vpop.xlane.xlu0 %792
        %v794 = vsel %vm412, %v343, 0.0
        %795 = vadd.xlane.f32.xlu0 %v794
        %v796 = vpop.xlane.xlu0 %795
        %v797 = vsel %vm412, %v344, 0.0
        %798 = vadd.xlane.f32.xlu0 %v797
        %v799 = vpop.xlane.xlu0 %798
        %v800 = vsel %vm412, %v345, 0.0
        %801 = vadd.xlane.f32.xlu0 %v800
        %v802 = vpop.xlane.xlu0 %801
        %v803 = vsel %vm412, %v346, 0.0
        %804 = vadd.xlane.f32.xlu0 %v803
        %v805 = vpop.xlane.xlu0 %804
        %v806 = vsel %vm412, %v347, 0.0
        %807 = vadd.xlane.f32.xlu0 %v806
        %v808 = vpop.xlane.xlu0 %807
        %v809 = vsel %vm412, %v348, 0.0
        %810 = vadd.xlane.f32.xlu0 %v809
        %v811 = vpop.xlane.xlu0 %810
        %v812 = vsel %vm412, %v349, 0.0
        %813 = vadd.xlane.f32.xlu0 %v812
        %v814 = vpop.xlane.xlu0 %813
        %v815 = vsel %vm412, %v350, 0.0
        %816 = vadd.xlane.f32.xlu0 %v815
        %v817 = vpop.xlane.xlu0 %816
        %v818 = vsel %vm412, %v351, 0.0
        %819 = vadd.xlane.f32.xlu0 %v818
        %v820 = vpop.xlane.xlu0 %819
        %v821 = vsel %vm412, %v352, 0.0
        %822 = vadd.xlane.f32.xlu0 %v821
        %v823 = vpop.xlane.xlu0 %822
        %v824 = vsel %vm412, %v353, 0.0
        %825 = vadd.xlane.f32.xlu0 %v824
        %v826 = vpop.xlane.xlu0 %825
        %v827 = vsel %vm412, %v354, 0.0
        %828 = vadd.xlane.f32.xlu0 %v827
        %v829 = vpop.xlane.xlu0 %828
        %v830 = vsel %vm412, %v355, 0.0
        %831 = vadd.xlane.f32.xlu0 %v830
        %v832 = vpop.xlane.xlu0 %831
        %v833 = vsel %vm412, %v356, 0.0
        %834 = vadd.xlane.f32.xlu0 %v833
        %v835 = vpop.xlane.xlu0 %834
        %v836 = vsel %vm412, %v357, 0.0
        %837 = vadd.xlane.f32.xlu0 %v836
        %v838 = vpop.xlane.xlu0 %837
        %v839 = vsel %vm412, %v358, 0.0
        %840 = vadd.xlane.f32.xlu0 %v839
        %v841 = vpop.xlane.xlu0 %840
        %v842 = vsel %vm412, %v359, 0.0
        %843 = vadd.xlane.f32.xlu0 %v842
        %v844 = vpop.xlane.xlu0 %843
        %v845 = vsel %vm412, %v360, 0.0
        %846 = vadd.xlane.f32.xlu0 %v845
        %v847 = vpop.xlane.xlu0 %846
        %v848 = vsel %vm412, %v361, 0.0
        %849 = vadd.xlane.f32.xlu0 %v848
        %v850 = vpop.xlane.xlu0 %849
        %v851 = vsel %vm412, %v362, 0.0
        %852 = vadd.xlane.f32.xlu0 %v851
        %v853 = vpop.xlane.xlu0 %852
        %v854 = vsel %vm412, %v363, 0.0
        %855 = vadd.xlane.f32.xlu0 %v854
        %v856 = vpop.xlane.xlu0 %855
        %v857 = vsel %vm412, %v364, 0.0
        %858 = vadd.xlane.f32.xlu0 %v857
        %v859 = vpop.xlane.xlu0 %858
        %v860 = vsel %vm412, %v365, 0.0
        %861 = vadd.xlane.f32.xlu0 %v860
        %v862 = vpop.xlane.xlu0 %861
        %v863 = vsel %vm412, %v366, 0.0
        %864 = vadd.xlane.f32.xlu0 %v863
        %v865 = vpop.xlane.xlu0 %864
        %v866 = vsel %vm412, %v367, 0.0
        %867 = vadd.xlane.f32.xlu0 %v866
        %v868 = vpop.xlane.xlu0 %867
        %v869 = vsel %vm412, %v368, 0.0
        %870 = vadd.xlane.f32.xlu0 %v869
        %v871 = vpop.xlane.xlu0 %870
        %v872 = vsel %vm412, %v369, 0.0
        %873 = vadd.xlane.f32.xlu0 %v872
        %v874 = vpop.xlane.xlu0 %873
        %v875 = vsel %vm412, %v370, 0.0
        %876 = vadd.xlane.f32.xlu0 %v875
        %v877 = vpop.xlane.xlu0 %876
        %v878 = vsel %vm412, %v371, 0.0
        %879 = vadd.xlane.f32.xlu0 %v878
        %v880 = vpop.xlane.xlu0 %879
        %v881 = vsel %vm412, %v372, 0.0
        %882 = vadd.xlane.f32.xlu0 %v881
        %v883 = vpop.xlane.xlu0 %882
        %v884 = vsel %vm412, %v373, 0.0
        %885 = vadd.xlane.f32.xlu0 %v884
        %v886 = vpop.xlane.xlu0 %885
        %v887 = vsel %vm412, %v374, 0.0
        %888 = vadd.xlane.f32.xlu0 %v887
        %v889 = vpop.xlane.xlu0 %888
        %v890 = vsel %vm412, %v375, 0.0
        %891 = vadd.xlane.f32.xlu0 %v890
        %v892 = vpop.xlane.xlu0 %891
        %v893 = vsel %vm412, %v376, 0.0
        %894 = vadd.xlane.f32.xlu0 %v893
        %v895 = vpop.xlane.xlu0 %894
        %v896 = vsel %vm412, %v377, 0.0
        %897 = vadd.xlane.f32.xlu0 %v896
        %v898 = vpop.xlane.xlu0 %897
        %v899 = vsel %vm412, %v378, 0.0
        %900 = vadd.xlane.f32.xlu0 %v899
        %v901 = vpop.xlane.xlu0 %900
        %v902 = vsel %vm412, %v379, 0.0
        %903 = vadd.xlane.f32.xlu0 %v902
        %v904 = vpop.xlane.xlu0 %903
        %v905 = vsel %vm412, %v380, 0.0
        %906 = vadd.xlane.f32.xlu0 %v905
        %v907 = vpop.xlane.xlu0 %906
        %v908 = vsel %vm412, %v381, 0.0
        %909 = vadd.xlane.f32.xlu0 %v908
        %v910 = vpop.xlane.xlu0 %909
        %v911 = vsel %vm412, %v382, 0.0
        %912 = vadd.xlane.f32.xlu0 %v911
        %v913 = vpop.xlane.xlu0 %912
        %v914 = vsel %vm412, %v383, 0.0
        %915 = vadd.xlane.f32.xlu0 %v914
        %v916 = vpop.xlane.xlu0 %915
        %v917 = vsel %vm412, %v384, 0.0
        %918 = vadd.xlane.f32.xlu0 %v917
        %v919 = vpop.xlane.xlu0 %918
        %v920 = vsel %vm412, %v385, 0.0
        %921 = vadd.xlane.f32.xlu0 %v920
        %v922 = vpop.xlane.xlu0 %921
        %v923 = vsel %vm412, %v386, 0.0
        %924 = vadd.xlane.f32.xlu0 %v923
        %v925 = vpop.xlane.xlu0 %924
        %v926 = vsel %vm412, %v387, 0.0
        %927 = vadd.xlane.f32.xlu0 %v926
        %v928 = vpop.xlane.xlu0 %927
        %v929 = vsel %vm412, %v388, 0.0
        %930 = vadd.xlane.f32.xlu0 %v929
        %v931 = vpop.xlane.xlu0 %930
        %v932 = vsel %vm412, %v389, 0.0
        %933 = vadd.xlane.f32.xlu0 %v932
        %v934 = vpop.xlane.xlu0 %933
        %v935 = vsel %vm412, %v390, 0.0
        %936 = vadd.xlane.f32.xlu0 %v935
        %v937 = vpop.xlane.xlu0 %936
        %v938 = vsel %vm412, %v391, 0.0
        %939 = vadd.xlane.f32.xlu0 %v938
        %v940 = vpop.xlane.xlu0 %939
        %v941 = vsel %vm412, %v392, 0.0
        %942 = vadd.xlane.f32.xlu0 %v941
        %v943 = vpop.xlane.xlu0 %942
        %v944 = vsel %vm412, %v393, 0.0
        %945 = vadd.xlane.f32.xlu0 %v944
        %v946 = vpop.xlane.xlu0 %945
        %v947 = vsel %vm412, %v394, 0.0
        %948 = vadd.xlane.f32.xlu0 %v947
        %v949 = vpop.xlane.xlu0 %948
        %v950 = vsel %vm412, %v395, 0.0
        %951 = vadd.xlane.f32.xlu0 %v950
        %v952 = vpop.xlane.xlu0 %951
        %v953 = vsel %vm412, %v396, 0.0
        %954 = vadd.xlane.f32.xlu0 %v953
        %v955 = vpop.xlane.xlu0 %954
        %v956 = vsel %vm412, %v397, 0.0
        %957 = vadd.xlane.f32.xlu0 %v956
        %v958 = vpop.xlane.xlu0 %957
        %v959 = vsel %vm412, %v398, 0.0
        %960 = vadd.xlane.f32.xlu0 %v959
        %v961 = vpop.xlane.xlu0 %960
        %v962 = vsel %vm412, %v399, 0.0
        %963 = vadd.xlane.f32.xlu0 %v962
        %v964 = vpop.xlane.xlu0 %963
        %v965 = vsel %vm412, %v400, 0.0
        %966 = vadd.xlane.f32.xlu0 %v965
        %v967 = vpop.xlane.xlu0 %966
        %v968 = vsel %vm412, %v401, 0.0
        %969 = vadd.xlane.f32.xlu0 %v968
        %v970 = vpop.xlane.xlu0 %969
        %v971 = vsel %vm412, %v402, 0.0
        %972 = vadd.xlane.f32.xlu0 %v971
        %v973 = vpop.xlane.xlu0 %972
        %v974 = vsel %vm412, %v403, 0.0
        %975 = vadd.xlane.f32.xlu0 %v974
        %v976 = vpop.xlane.xlu0 %975
        %v977 = vsel %vm412, %v404, 0.0
        %978 = vadd.xlane.f32.xlu0 %v977
        %v979 = vpop.xlane.xlu0 %978
        %v980 = vsel %vm412, %v405, 0.0
        %981 = vadd.xlane.f32.xlu0 %v980
        %v982 = vpop.xlane.xlu0 %981
        %v983 = vsel %vm412, %v406, 0.0
        %984 = vadd.xlane.f32.xlu0 %v983
        %v985 = vpop.xlane.xlu0 %984
        %v986 = vsel %vm412, %v407, 0.0
        %987 = vadd.xlane.f32.xlu0 %v986
        %v988 = vpop.xlane.xlu0 %987
        %v989 = vsel %vm412, %v408, 0.0
        %990 = vadd.xlane.f32.xlu0 %v989
        %v991 = vpop.xlane.xlu0 %990
        %v992 = vsel %vm412, %v409, 0.0
        %993 = vadd.xlane.f32.xlu0 %v992
        %v994 = vpop.xlane.xlu0 %993
        %v995 = vsel %vm412, %v410, 0.0
        %996 = vadd.xlane.f32.xlu0 %v995
        %v997 = vpop.xlane.xlu0 %996
        %v998 = vsel %vm412, %v411, 0.0
        %999 = vadd.xlane.f32.xlu0 %v998
        %v1000 = vpop.xlane.xlu0 %999
        %v1001 = vmul.f32 %v216, %v216
        %v1002 = vmul.f32 %v217, %v217
        %v1003 = vmul.f32 %v218, %v218
        %v1004 = vmul.f32 %v219, %v219
        %v1005 = vmul.f32 %v220, %v220
        %v1006 = vmul.f32 %v221, %v221
        %v1007 = vmul.f32 %v222, %v222
        %v1008 = vmul.f32 %v223, %v223
        %v1009 = vmul.f32 %v224, %v224
        %v1010 = vmul.f32 %v225, %v225
        %v1011 = vmul.f32 %v226, %v226
        %v1012 = vmul.f32 %v227, %v227
        %v1013 = vmul.f32 %v228, %v228
        %v1014 = vmul.f32 %v229, %v229
        %v1015 = vmul.f32 %v230, %v230
        %v1016 = vmul.f32 %v231, %v231
        %v1017 = vmul.f32 %v232, %v232
        %v1018 = vmul.f32 %v233, %v233
        %v1019 = vmul.f32 %v234, %v234
        %v1020 = vmul.f32 %v235, %v235
        %v1021 = vmul.f32 %v236, %v236
        %v1022 = vmul.f32 %v237, %v237
        %v1023 = vmul.f32 %v238, %v238
        %v1024 = vmul.f32 %v239, %v239
        %v1025 = vmul.f32 %v240, %v240
        %v1026 = vmul.f32 %v241, %v241
        %v1027 = vmul.f32 %v242, %v242
        %v1028 = vmul.f32 %v243, %v243
        %v1029 = vmul.f32 %v244, %v244
        %v1030 = vmul.f32 %v245, %v245
        %v1031 = vmul.f32 %v246, %v246
        %v1032 = vmul.f32 %v247, %v247
        %v1033 = vmul.f32 %v248, %v248
        %v1034 = vmul.f32 %v249, %v249
        %v1035 = vmul.f32 %v250, %v250
        %v1036 = vmul.f32 %v251, %v251
        %v1037 = vmul.f32 %v252, %v252
        %v1038 = vmul.f32 %v253, %v253
        %v1039 = vmul.f32 %v254, %v254
        %v1040 = vmul.f32 %v255, %v255
        %v1041 = vmul.f32 %v256, %v256
        %v1042 = vmul.f32 %v257, %v257
        %v1043 = vmul.f32 %v258, %v258
        %v1044 = vmul.f32 %v259, %v259
        %v1045 = vmul.f32 %v260, %v260
        %v1046 = vmul.f32 %v261, %v261
        %v1047 = vmul.f32 %v262, %v262
        %v1048 = vmul.f32 %v263, %v263
        %v1049 = vmul.f32 %v264, %v264
        %v1050 = vmul.f32 %v265, %v265
        %v1051 = vmul.f32 %v266, %v266
        %v1052 = vmul.f32 %v267, %v267
        %v1053 = vmul.f32 %v268, %v268
        %v1054 = vmul.f32 %v269, %v269
        %v1055 = vmul.f32 %v270, %v270
        %v1056 = vmul.f32 %v271, %v271
        %v1057 = vmul.f32 %v272, %v272
        %v1058 = vmul.f32 %v273, %v273
        %v1059 = vmul.f32 %v274, %v274
        %v1060 = vmul.f32 %v275, %v275
        %v1061 = vmul.f32 %v276, %v276
        %v1062 = vmul.f32 %v277, %v277
        %v1063 = vmul.f32 %v278, %v278
        %v1064 = vmul.f32 %v279, %v279
        %v1065 = vmul.f32 %v280, %v280
        %v1066 = vmul.f32 %v281, %v281
        %v1067 = vmul.f32 %v282, %v282
        %v1068 = vmul.f32 %v283, %v283
        %v1069 = vmul.f32 %v284, %v284
        %v1070 = vmul.f32 %v285, %v285
        %v1071 = vmul.f32 %v286, %v286
        %v1072 = vmul.f32 %v287, %v287
        %v1073 = vmul.f32 %v288, %v288
        %v1074 = vmul.f32 %v289, %v289
        %v1075 = vmul.f32 %v290, %v290
        %v1076 = vmul.f32 %v291, %v291
        %v1077 = vmul.f32 %v292, %v292
        %v1078 = vmul.f32 %v293, %v293
        %v1079 = vmul.f32 %v294, %v294
        %v1080 = vmul.f32 %v295, %v295
        %v1081 = vmul.f32 %v296, %v296
        %v1082 = vmul.f32 %v297, %v297
        %v1083 = vmul.f32 %v298, %v298
        %v1084 = vmul.f32 %v299, %v299
        %v1085 = vmul.f32 %v300, %v300
        %v1086 = vmul.f32 %v301, %v301
        %v1087 = vmul.f32 %v302, %v302
        %v1088 = vmul.f32 %v303, %v303
        %v1089 = vmul.f32 %v304, %v304
        %v1090 = vmul.f32 %v305, %v305
        %v1091 = vmul.f32 %v306, %v306
        %v1092 = vmul.f32 %v307, %v307
        %v1093 = vmul.f32 %v308, %v308
        %v1094 = vmul.f32 %v309, %v309
        %v1095 = vmul.f32 %v310, %v310
        %v1096 = vmul.f32 %v311, %v311
        %v1097 = vmul.f32 %v312, %v312
        %v1098 = vmul.f32 %v313, %v313
        %v1099 = vmul.f32 %v314, %v314
        %v1100 = vmul.f32 %v315, %v315
        %v1101 = vmul.f32 %v316, %v316
        %v1102 = vmul.f32 %v317, %v317
        %v1103 = vmul.f32 %v318, %v318
        %v1104 = vmul.f32 %v319, %v319
        %v1105 = vmul.f32 %v320, %v320
        %v1106 = vmul.f32 %v321, %v321
        %v1107 = vmul.f32 %v322, %v322
        %v1108 = vmul.f32 %v323, %v323
        %v1109 = vmul.f32 %v324, %v324
        %v1110 = vmul.f32 %v325, %v325
        %v1111 = vmul.f32 %v326, %v326
        %v1112 = vmul.f32 %v327, %v327
        %v1113 = vmul.f32 %v328, %v328
        %v1114 = vmul.f32 %v329, %v329
        %v1115 = vmul.f32 %v330, %v330
        %v1116 = vmul.f32 %v331, %v331
        %v1117 = vmul.f32 %v332, %v332
        %v1118 = vmul.f32 %v333, %v333
        %v1119 = vmul.f32 %v334, %v334
        %v1120 = vmul.f32 %v335, %v335
        %v1121 = vmul.f32 %v336, %v336
        %v1122 = vmul.f32 %v337, %v337
        %v1123 = vmul.f32 %v338, %v338
        %v1124 = vmul.f32 %v339, %v339
        %v1125 = vmul.f32 %v340, %v340
        %v1126 = vmul.f32 %v341, %v341
        %v1127 = vmul.f32 %v342, %v342
        %v1128 = vmul.f32 %v343, %v343
        %v1129 = vmul.f32 %v344, %v344
        %v1130 = vmul.f32 %v345, %v345
        %v1131 = vmul.f32 %v346, %v346
        %v1132 = vmul.f32 %v347, %v347
        %v1133 = vmul.f32 %v348, %v348
        %v1134 = vmul.f32 %v349, %v349
        %v1135 = vmul.f32 %v350, %v350
        %v1136 = vmul.f32 %v351, %v351
        %v1137 = vmul.f32 %v352, %v352
        %v1138 = vmul.f32 %v353, %v353
        %v1139 = vmul.f32 %v354, %v354
        %v1140 = vmul.f32 %v355, %v355
        %v1141 = vmul.f32 %v356, %v356
        %v1142 = vmul.f32 %v357, %v357
        %v1143 = vmul.f32 %v358, %v358
        %v1144 = vmul.f32 %v359, %v359
        %v1145 = vmul.f32 %v360, %v360
        %v1146 = vmul.f32 %v361, %v361
        %v1147 = vmul.f32 %v362, %v362
        %v1148 = vmul.f32 %v363, %v363
        %v1149 = vmul.f32 %v364, %v364
        %v1150 = vmul.f32 %v365, %v365
        %v1151 = vmul.f32 %v366, %v366
        %v1152 = vmul.f32 %v367, %v367
        %v1153 = vmul.f32 %v368, %v368
        %v1154 = vmul.f32 %v369, %v369
        %v1155 = vmul.f32 %v370, %v370
        %v1156 = vmul.f32 %v371, %v371
        %v1157 = vmul.f32 %v372, %v372
        %v1158 = vmul.f32 %v373, %v373
        %v1159 = vmul.f32 %v374, %v374
        %v1160 = vmul.f32 %v375, %v375
        %v1161 = vmul.f32 %v376, %v376
        %v1162 = vmul.f32 %v377, %v377
        %v1163 = vmul.f32 %v378, %v378
        %v1164 = vmul.f32 %v379, %v379
        %v1165 = vmul.f32 %v380, %v380
        %v1166 = vmul.f32 %v381, %v381
        %v1167 = vmul.f32 %v382, %v382
        %v1168 = vmul.f32 %v383, %v383
        %v1169 = vmul.f32 %v384, %v384
        %v1170 = vmul.f32 %v385, %v385
        %v1171 = vmul.f32 %v386, %v386
        %v1172 = vmul.f32 %v387, %v387
        %v1173 = vmul.f32 %v388, %v388
        %v1174 = vmul.f32 %v389, %v389
        %v1175 = vmul.f32 %v390, %v390
        %v1176 = vmul.f32 %v391, %v391
        %v1177 = vmul.f32 %v392, %v392
        %v1178 = vmul.f32 %v393, %v393
        %v1179 = vmul.f32 %v394, %v394
        %v1180 = vmul.f32 %v395, %v395
        %v1181 = vmul.f32 %v396, %v396
        %v1182 = vmul.f32 %v397, %v397
        %v1183 = vmul.f32 %v398, %v398
        %v1184 = vmul.f32 %v399, %v399
        %v1185 = vmul.f32 %v400, %v400
        %v1186 = vmul.f32 %v401, %v401
        %v1187 = vmul.f32 %v402, %v402
        %v1188 = vmul.f32 %v403, %v403
        %v1189 = vmul.f32 %v404, %v404
        %v1190 = vmul.f32 %v405, %v405
        %v1191 = vmul.f32 %v406, %v406
        %v1192 = vmul.f32 %v407, %v407
        %v1193 = vmul.f32 %v408, %v408
        %v1194 = vmul.f32 %v409, %v409
        %v1195 = vmul.f32 %v410, %v410
        %v1196 = vmul.f32 %v411, %v411
        %v1197 = vsel %vm412, %v1001, 0.0
        %1198 = vadd.xlane.f32.xlu0 %v1197
        %v1199 = vpop.xlane.xlu0 %1198
        %v1200 = vsel %vm412, %v1002, 0.0
        %1201 = vadd.xlane.f32.xlu0 %v1200
        %v1202 = vpop.xlane.xlu0 %1201
        %v1203 = vsel %vm412, %v1003, 0.0
        %1204 = vadd.xlane.f32.xlu0 %v1203
        %v1205 = vpop.xlane.xlu0 %1204
        %v1206 = vsel %vm412, %v1004, 0.0
        %1207 = vadd.xlane.f32.xlu0 %v1206
        %v1208 = vpop.xlane.xlu0 %1207
        %v1209 = vsel %vm412, %v1005, 0.0
        %1210 = vadd.xlane.f32.xlu0 %v1209
        %v1211 = vpop.xlane.xlu0 %1210
        %v1212 = vsel %vm412, %v1006, 0.0
        %1213 = vadd.xlane.f32.xlu0 %v1212
        %v1214 = vpop.xlane.xlu0 %1213
        %v1215 = vsel %vm412, %v1007, 0.0
        %1216 = vadd.xlane.f32.xlu0 %v1215
        %v1217 = vpop.xlane.xlu0 %1216
        %v1218 = vsel %vm412, %v1008, 0.0
        %1219 = vadd.xlane.f32.xlu0 %v1218
        %v1220 = vpop.xlane.xlu0 %1219
        %v1221 = vsel %vm412, %v1009, 0.0
        %1222 = vadd.xlane.f32.xlu0 %v1221
        %v1223 = vpop.xlane.xlu0 %1222
        %v1224 = vsel %vm412, %v1010, 0.0
        %1225 = vadd.xlane.f32.xlu0 %v1224
        %v1226 = vpop.xlane.xlu0 %1225
        %v1227 = vsel %vm412, %v1011, 0.0
        %1228 = vadd.xlane.f32.xlu0 %v1227
        %v1229 = vpop.xlane.xlu0 %1228
        %v1230 = vsel %vm412, %v1012, 0.0
        %1231 = vadd.xlane.f32.xlu0 %v1230
        %v1232 = vpop.xlane.xlu0 %1231
        %v1233 = vsel %vm412, %v1013, 0.0
        %1234 = vadd.xlane.f32.xlu0 %v1233
        %v1235 = vpop.xlane.xlu0 %1234
        %v1236 = vsel %vm412, %v1014, 0.0
        %1237 = vadd.xlane.f32.xlu0 %v1236
        %v1238 = vpop.xlane.xlu0 %1237
        %v1239 = vsel %vm412, %v1015, 0.0
        %1240 = vadd.xlane.f32.xlu0 %v1239
        %v1241 = vpop.xlane.xlu0 %1240
        %v1242 = vsel %vm412, %v1016, 0.0
        %1243 = vadd.xlane.f32.xlu0 %v1242
        %v1244 = vpop.xlane.xlu0 %1243
        %v1245 = vsel %vm412, %v1017, 0.0
        %1246 = vadd.xlane.f32.xlu0 %v1245
        %v1247 = vpop.xlane.xlu0 %1246
        %v1248 = vsel %vm412, %v1018, 0.0
        %1249 = vadd.xlane.f32.xlu0 %v1248
        %v1250 = vpop.xlane.xlu0 %1249
        %v1251 = vsel %vm412, %v1019, 0.0
        %1252 = vadd.xlane.f32.xlu0 %v1251
        %v1253 = vpop.xlane.xlu0 %1252
        %v1254 = vsel %vm412, %v1020, 0.0
        %1255 = vadd.xlane.f32.xlu0 %v1254
        %v1256 = vpop.xlane.xlu0 %1255
        %v1257 = vsel %vm412, %v1021, 0.0
        %1258 = vadd.xlane.f32.xlu0 %v1257
        %v1259 = vpop.xlane.xlu0 %1258
        %v1260 = vsel %vm412, %v1022, 0.0
        %1261 = vadd.xlane.f32.xlu0 %v1260
        %v1262 = vpop.xlane.xlu0 %1261
        %v1263 = vsel %vm412, %v1023, 0.0
        %1264 = vadd.xlane.f32.xlu0 %v1263
        %v1265 = vpop.xlane.xlu0 %1264
        %v1266 = vsel %vm412, %v1024, 0.0
        %1267 = vadd.xlane.f32.xlu0 %v1266
        %v1268 = vpop.xlane.xlu0 %1267
        %v1269 = vsel %vm412, %v1025, 0.0
        %1270 = vadd.xlane.f32.xlu0 %v1269
        %v1271 = vpop.xlane.xlu0 %1270
        %v1272 = vsel %vm412, %v1026, 0.0
        %1273 = vadd.xlane.f32.xlu0 %v1272
        %v1274 = vpop.xlane.xlu0 %1273
        %v1275 = vsel %vm412, %v1027, 0.0
        %1276 = vadd.xlane.f32.xlu0 %v1275
        %v1277 = vpop.xlane.xlu0 %1276
        %v1278 = vsel %vm412, %v1028, 0.0
        %1279 = vadd.xlane.f32.xlu0 %v1278
        %v1280 = vpop.xlane.xlu0 %1279
        %v1281 = vsel %vm412, %v1029, 0.0
        %1282 = vadd.xlane.f32.xlu0 %v1281
        %v1283 = vpop.xlane.xlu0 %1282
        %v1284 = vsel %vm412, %v1030, 0.0
        %1285 = vadd.xlane.f32.xlu0 %v1284
        %v1286 = vpop.xlane.xlu0 %1285
        %v1287 = vsel %vm412, %v1031, 0.0
        %1288 = vadd.xlane.f32.xlu0 %v1287
        %v1289 = vpop.xlane.xlu0 %1288
        %v1290 = vsel %vm412, %v1032, 0.0
        %1291 = vadd.xlane.f32.xlu0 %v1290
        %v1292 = vpop.xlane.xlu0 %1291
        %v1293 = vsel %vm412, %v1033, 0.0
        %1294 = vadd.xlane.f32.xlu0 %v1293
        %v1295 = vpop.xlane.xlu0 %1294
        %v1296 = vsel %vm412, %v1034, 0.0
        %1297 = vadd.xlane.f32.xlu0 %v1296
        %v1298 = vpop.xlane.xlu0 %1297
        %v1299 = vsel %vm412, %v1035, 0.0
        %1300 = vadd.xlane.f32.xlu0 %v1299
        %v1301 = vpop.xlane.xlu0 %1300
        %v1302 = vsel %vm412, %v1036, 0.0
        %1303 = vadd.xlane.f32.xlu0 %v1302
        %v1304 = vpop.xlane.xlu0 %1303
        %v1305 = vsel %vm412, %v1037, 0.0
        %1306 = vadd.xlane.f32.xlu0 %v1305
        %v1307 = vpop.xlane.xlu0 %1306
        %v1308 = vsel %vm412, %v1038, 0.0
        %1309 = vadd.xlane.f32.xlu0 %v1308
        %v1310 = vpop.xlane.xlu0 %1309
        %v1311 = vsel %vm412, %v1039, 0.0
        %1312 = vadd.xlane.f32.xlu0 %v1311
        %v1313 = vpop.xlane.xlu0 %1312
        %v1314 = vsel %vm412, %v1040, 0.0
        %1315 = vadd.xlane.f32.xlu0 %v1314
        %v1316 = vpop.xlane.xlu0 %1315
        %v1317 = vsel %vm412, %v1041, 0.0
        %1318 = vadd.xlane.f32.xlu0 %v1317
        %v1319 = vpop.xlane.xlu0 %1318
        %v1320 = vsel %vm412, %v1042, 0.0
        %1321 = vadd.xlane.f32.xlu0 %v1320
        %v1322 = vpop.xlane.xlu0 %1321
        %v1323 = vsel %vm412, %v1043, 0.0
        %1324 = vadd.xlane.f32.xlu0 %v1323
        %v1325 = vpop.xlane.xlu0 %1324
        %v1326 = vsel %vm412, %v1044, 0.0
        %1327 = vadd.xlane.f32.xlu0 %v1326
        %v1328 = vpop.xlane.xlu0 %1327
        %v1329 = vsel %vm412, %v1045, 0.0
        %1330 = vadd.xlane.f32.xlu0 %v1329
        %v1331 = vpop.xlane.xlu0 %1330
        %v1332 = vsel %vm412, %v1046, 0.0
        %1333 = vadd.xlane.f32.xlu0 %v1332
        %v1334 = vpop.xlane.xlu0 %1333
        %v1335 = vsel %vm412, %v1047, 0.0
        %1336 = vadd.xlane.f32.xlu0 %v1335
        %v1337 = vpop.xlane.xlu0 %1336
        %v1338 = vsel %vm412, %v1048, 0.0
        %1339 = vadd.xlane.f32.xlu0 %v1338
        %v1340 = vpop.xlane.xlu0 %1339
        %v1341 = vsel %vm412, %v1049, 0.0
        %1342 = vadd.xlane.f32.xlu0 %v1341
        %v1343 = vpop.xlane.xlu0 %1342
        %v1344 = vsel %vm412, %v1050, 0.0
        %1345 = vadd.xlane.f32.xlu0 %v1344
        %v1346 = vpop.xlane.xlu0 %1345
        %v1347 = vsel %vm412, %v1051, 0.0
        %1348 = vadd.xlane.f32.xlu0 %v1347
        %v1349 = vpop.xlane.xlu0 %1348
        %v1350 = vsel %vm412, %v1052, 0.0
        %1351 = vadd.xlane.f32.xlu0 %v1350
        %v1352 = vpop.xlane.xlu0 %1351
        %v1353 = vsel %vm412, %v1053, 0.0
        %1354 = vadd.xlane.f32.xlu0 %v1353
        %v1355 = vpop.xlane.xlu0 %1354
        %v1356 = vsel %vm412, %v1054, 0.0
        %1357 = vadd.xlane.f32.xlu0 %v1356
        %v1358 = vpop.xlane.xlu0 %1357
        %v1359 = vsel %vm412, %v1055, 0.0
        %1360 = vadd.xlane.f32.xlu0 %v1359
        %v1361 = vpop.xlane.xlu0 %1360
        %v1362 = vsel %vm412, %v1056, 0.0
        %1363 = vadd.xlane.f32.xlu0 %v1362
        %v1364 = vpop.xlane.xlu0 %1363
        %v1365 = vsel %vm412, %v1057, 0.0
        %1366 = vadd.xlane.f32.xlu0 %v1365
        %v1367 = vpop.xlane.xlu0 %1366
        %v1368 = vsel %vm412, %v1058, 0.0
        %1369 = vadd.xlane.f32.xlu0 %v1368
        %v1370 = vpop.xlane.xlu0 %1369
        %v1371 = vsel %vm412, %v1059, 0.0
        %1372 = vadd.xlane.f32.xlu0 %v1371
        %v1373 = vpop.xlane.xlu0 %1372
        %v1374 = vsel %vm412, %v1060, 0.0
        %1375 = vadd.xlane.f32.xlu0 %v1374
        %v1376 = vpop.xlane.xlu0 %1375
        %v1377 = vsel %vm412, %v1061, 0.0
        %1378 = vadd.xlane.f32.xlu0 %v1377
        %v1379 = vpop.xlane.xlu0 %1378
        %v1380 = vsel %vm412, %v1062, 0.0
        %1381 = vadd.xlane.f32.xlu0 %v1380
        %v1382 = vpop.xlane.xlu0 %1381
        %v1383 = vsel %vm412, %v1063, 0.0
        %1384 = vadd.xlane.f32.xlu0 %v1383
        %v1385 = vpop.xlane.xlu0 %1384
        %v1386 = vsel %vm412, %v1064, 0.0
        %1387 = vadd.xlane.f32.xlu0 %v1386
        %v1388 = vpop.xlane.xlu0 %1387
        %v1389 = vsel %vm412, %v1065, 0.0
        %1390 = vadd.xlane.f32.xlu0 %v1389
        %v1391 = vpop.xlane.xlu0 %1390
        %v1392 = vsel %vm412, %v1066, 0.0
        %1393 = vadd.xlane.f32.xlu0 %v1392
        %v1394 = vpop.xlane.xlu0 %1393
        %v1395 = vsel %vm412, %v1067, 0.0
        %1396 = vadd.xlane.f32.xlu0 %v1395
        %v1397 = vpop.xlane.xlu0 %1396
        %v1398 = vsel %vm412, %v1068, 0.0
        %1399 = vadd.xlane.f32.xlu0 %v1398
        %v1400 = vpop.xlane.xlu0 %1399
        %v1401 = vsel %vm412, %v1069, 0.0
        %1402 = vadd.xlane.f32.xlu0 %v1401
        %v1403 = vpop.xlane.xlu0 %1402
        %v1404 = vsel %vm412, %v1070, 0.0
        %1405 = vadd.xlane.f32.xlu0 %v1404
        %v1406 = vpop.xlane.xlu0 %1405
        %v1407 = vsel %vm412, %v1071, 0.0
        %1408 = vadd.xlane.f32.xlu0 %v1407
        %v1409 = vpop.xlane.xlu0 %1408
        %v1410 = vsel %vm412, %v1072, 0.0
        %1411 = vadd.xlane.f32.xlu0 %v1410
        %v1412 = vpop.xlane.xlu0 %1411
        %v1413 = vsel %vm412, %v1073, 0.0
        %1414 = vadd.xlane.f32.xlu0 %v1413
        %v1415 = vpop.xlane.xlu0 %1414
        %v1416 = vsel %vm412, %v1074, 0.0
        %1417 = vadd.xlane.f32.xlu0 %v1416
        %v1418 = vpop.xlane.xlu0 %1417
        %v1419 = vsel %vm412, %v1075, 0.0
        %1420 = vadd.xlane.f32.xlu0 %v1419
        %v1421 = vpop.xlane.xlu0 %1420
        %v1422 = vsel %vm412, %v1076, 0.0
        %1423 = vadd.xlane.f32.xlu0 %v1422
        %v1424 = vpop.xlane.xlu0 %1423
        %v1425 = vsel %vm412, %v1077, 0.0
        %1426 = vadd.xlane.f32.xlu0 %v1425
        %v1427 = vpop.xlane.xlu0 %1426
        %v1428 = vsel %vm412, %v1078, 0.0
        %1429 = vadd.xlane.f32.xlu0 %v1428
        %v1430 = vpop.xlane.xlu0 %1429
        %v1431 = vsel %vm412, %v1079, 0.0
        %1432 = vadd.xlane.f32.xlu0 %v1431
        %v1433 = vpop.xlane.xlu0 %1432
        %v1434 = vsel %vm412, %v1080, 0.0
        %1435 = vadd.xlane.f32.xlu0 %v1434
        %v1436 = vpop.xlane.xlu0 %1435
        %v1437 = vsel %vm412, %v1081, 0.0
        %1438 = vadd.xlane.f32.xlu0 %v1437
        %v1439 = vpop.xlane.xlu0 %1438
        %v1440 = vsel %vm412, %v1082, 0.0
        %1441 = vadd.xlane.f32.xlu0 %v1440
        %v1442 = vpop.xlane.xlu0 %1441
        %v1443 = vsel %vm412, %v1083, 0.0
        %1444 = vadd.xlane.f32.xlu0 %v1443
        %v1445 = vpop.xlane.xlu0 %1444
        %v1446 = vsel %vm412, %v1084, 0.0
        %1447 = vadd.xlane.f32.xlu0 %v1446
        %v1448 = vpop.xlane.xlu0 %1447
        %v1449 = vsel %vm412, %v1085, 0.0
        %1450 = vadd.xlane.f32.xlu0 %v1449
        %v1451 = vpop.xlane.xlu0 %1450
        %v1452 = vsel %vm412, %v1086, 0.0
        %1453 = vadd.xlane.f32.xlu0 %v1452
        %v1454 = vpop.xlane.xlu0 %1453
        %v1455 = vsel %vm412, %v1087, 0.0
        %1456 = vadd.xlane.f32.xlu0 %v1455
        %v1457 = vpop.xlane.xlu0 %1456
        %v1458 = vsel %vm412, %v1088, 0.0
        %1459 = vadd.xlane.f32.xlu0 %v1458
        %v1460 = vpop.xlane.xlu0 %1459
        %v1461 = vsel %vm412, %v1089, 0.0
        %1462 = vadd.xlane.f32.xlu0 %v1461
        %v1463 = vpop.xlane.xlu0 %1462
        %v1464 = vsel %vm412, %v1090, 0.0
        %1465 = vadd.xlane.f32.xlu0 %v1464
        %v1466 = vpop.xlane.xlu0 %1465
        %v1467 = vsel %vm412, %v1091, 0.0
        %1468 = vadd.xlane.f32.xlu0 %v1467
        %v1469 = vpop.xlane.xlu0 %1468
        %v1470 = vsel %vm412, %v1092, 0.0
        %1471 = vadd.xlane.f32.xlu0 %v1470
        %v1472 = vpop.xlane.xlu0 %1471
        %v1473 = vsel %vm412, %v1093, 0.0
        %1474 = vadd.xlane.f32.xlu0 %v1473
        %v1475 = vpop.xlane.xlu0 %1474
        %v1476 = vsel %vm412, %v1094, 0.0
        %1477 = vadd.xlane.f32.xlu0 %v1476
        %v1478 = vpop.xlane.xlu0 %1477
        %v1479 = vsel %vm412, %v1095, 0.0
        %1480 = vadd.xlane.f32.xlu0 %v1479
        %v1481 = vpop.xlane.xlu0 %1480
        %v1482 = vsel %vm412, %v1096, 0.0
        %1483 = vadd.xlane.f32.xlu0 %v1482
        %v1484 = vpop.xlane.xlu0 %1483
        %v1485 = vsel %vm412, %v1097, 0.0
        %1486 = vadd.xlane.f32.xlu0 %v1485
        %v1487 = vpop.xlane.xlu0 %1486
        %v1488 = vsel %vm412, %v1098, 0.0
        %1489 = vadd.xlane.f32.xlu0 %v1488
        %v1490 = vpop.xlane.xlu0 %1489
        %v1491 = vsel %vm412, %v1099, 0.0
        %1492 = vadd.xlane.f32.xlu0 %v1491
        %v1493 = vpop.xlane.xlu0 %1492
        %v1494 = vsel %vm412, %v1100, 0.0
        %1495 = vadd.xlane.f32.xlu0 %v1494
        %v1496 = vpop.xlane.xlu0 %1495
        %v1497 = vsel %vm412, %v1101, 0.0
        %1498 = vadd.xlane.f32.xlu0 %v1497
        %v1499 = vpop.xlane.xlu0 %1498
        %v1500 = vsel %vm412, %v1102, 0.0
        %1501 = vadd.xlane.f32.xlu0 %v1500
        %v1502 = vpop.xlane.xlu0 %1501
        %v1503 = vsel %vm412, %v1103, 0.0
        %1504 = vadd.xlane.f32.xlu0 %v1503
        %v1505 = vpop.xlane.xlu0 %1504
        %v1506 = vsel %vm412, %v1104, 0.0
        %1507 = vadd.xlane.f32.xlu0 %v1506
        %v1508 = vpop.xlane.xlu0 %1507
        %v1509 = vsel %vm412, %v1105, 0.0
        %1510 = vadd.xlane.f32.xlu0 %v1509
        %v1511 = vpop.xlane.xlu0 %1510
        %v1512 = vsel %vm412, %v1106, 0.0
        %1513 = vadd.xlane.f32.xlu0 %v1512
        %v1514 = vpop.xlane.xlu0 %1513
        %v1515 = vsel %vm412, %v1107, 0.0
        %1516 = vadd.xlane.f32.xlu0 %v1515
        %v1517 = vpop.xlane.xlu0 %1516
        %v1518 = vsel %vm412, %v1108, 0.0
        %1519 = vadd.xlane.f32.xlu0 %v1518
        %v1520 = vpop.xlane.xlu0 %1519
        %v1521 = vsel %vm412, %v1109, 0.0
        %1522 = vadd.xlane.f32.xlu0 %v1521
        %v1523 = vpop.xlane.xlu0 %1522
        %v1524 = vsel %vm412, %v1110, 0.0
        %1525 = vadd.xlane.f32.xlu0 %v1524
        %v1526 = vpop.xlane.xlu0 %1525
        %v1527 = vsel %vm412, %v1111, 0.0
        %1528 = vadd.xlane.f32.xlu0 %v1527
        %v1529 = vpop.xlane.xlu0 %1528
        %v1530 = vsel %vm412, %v1112, 0.0
        %1531 = vadd.xlane.f32.xlu0 %v1530
        %v1532 = vpop.xlane.xlu0 %1531
        %v1533 = vsel %vm412, %v1113, 0.0
        %1534 = vadd.xlane.f32.xlu0 %v1533
        %v1535 = vpop.xlane.xlu0 %1534
        %v1536 = vsel %vm412, %v1114, 0.0
        %1537 = vadd.xlane.f32.xlu0 %v1536
        %v1538 = vpop.xlane.xlu0 %1537
        %v1539 = vsel %vm412, %v1115, 0.0
        %1540 = vadd.xlane.f32.xlu0 %v1539
        %v1541 = vpop.xlane.xlu0 %1540
        %v1542 = vsel %vm412, %v1116, 0.0
        %1543 = vadd.xlane.f32.xlu0 %v1542
        %v1544 = vpop.xlane.xlu0 %1543
        %v1545 = vsel %vm412, %v1117, 0.0
        %1546 = vadd.xlane.f32.xlu0 %v1545
        %v1547 = vpop.xlane.xlu0 %1546
        %v1548 = vsel %vm412, %v1118, 0.0
        %1549 = vadd.xlane.f32.xlu0 %v1548
        %v1550 = vpop.xlane.xlu0 %1549
        %v1551 = vsel %vm412, %v1119, 0.0
        %1552 = vadd.xlane.f32.xlu0 %v1551
        %v1553 = vpop.xlane.xlu0 %1552
        %v1554 = vsel %vm412, %v1120, 0.0
        %1555 = vadd.xlane.f32.xlu0 %v1554
        %v1556 = vpop.xlane.xlu0 %1555
        %v1557 = vsel %vm412, %v1121, 0.0
        %1558 = vadd.xlane.f32.xlu0 %v1557
        %v1559 = vpop.xlane.xlu0 %1558
        %v1560 = vsel %vm412, %v1122, 0.0
        %1561 = vadd.xlane.f32.xlu0 %v1560
        %v1562 = vpop.xlane.xlu0 %1561
        %v1563 = vsel %vm412, %v1123, 0.0
        %1564 = vadd.xlane.f32.xlu0 %v1563
        %v1565 = vpop.xlane.xlu0 %1564
        %v1566 = vsel %vm412, %v1124, 0.0
        %1567 = vadd.xlane.f32.xlu0 %v1566
        %v1568 = vpop.xlane.xlu0 %1567
        %v1569 = vsel %vm412, %v1125, 0.0
        %1570 = vadd.xlane.f32.xlu0 %v1569
        %v1571 = vpop.xlane.xlu0 %1570
        %v1572 = vsel %vm412, %v1126, 0.0
        %1573 = vadd.xlane.f32.xlu0 %v1572
        %v1574 = vpop.xlane.xlu0 %1573
        %v1575 = vsel %vm412, %v1127, 0.0
        %1576 = vadd.xlane.f32.xlu0 %v1575
        %v1577 = vpop.xlane.xlu0 %1576
        %v1578 = vsel %vm412, %v1128, 0.0
        %1579 = vadd.xlane.f32.xlu0 %v1578
        %v1580 = vpop.xlane.xlu0 %1579
        %v1581 = vsel %vm412, %v1129, 0.0
        %1582 = vadd.xlane.f32.xlu0 %v1581
        %v1583 = vpop.xlane.xlu0 %1582
        %v1584 = vsel %vm412, %v1130, 0.0
        %1585 = vadd.xlane.f32.xlu0 %v1584
        %v1586 = vpop.xlane.xlu0 %1585
        %v1587 = vsel %vm412, %v1131, 0.0
        %1588 = vadd.xlane.f32.xlu0 %v1587
        %v1589 = vpop.xlane.xlu0 %1588
        %v1590 = vsel %vm412, %v1132, 0.0
        %1591 = vadd.xlane.f32.xlu0 %v1590
        %v1592 = vpop.xlane.xlu0 %1591
        %v1593 = vsel %vm412, %v1133, 0.0
        %1594 = vadd.xlane.f32.xlu0 %v1593
        %v1595 = vpop.xlane.xlu0 %1594
        %v1596 = vsel %vm412, %v1134, 0.0
        %1597 = vadd.xlane.f32.xlu0 %v1596
        %v1598 = vpop.xlane.xlu0 %1597
        %v1599 = vsel %vm412, %v1135, 0.0
        %1600 = vadd.xlane.f32.xlu0 %v1599
        %v1601 = vpop.xlane.xlu0 %1600
        %v1602 = vsel %vm412, %v1136, 0.0
        %1603 = vadd.xlane.f32.xlu0 %v1602
        %v1604 = vpop.xlane.xlu0 %1603
        %v1605 = vsel %vm412, %v1137, 0.0
        %1606 = vadd.xlane.f32.xlu0 %v1605
        %v1607 = vpop.xlane.xlu0 %1606
        %v1608 = vsel %vm412, %v1138, 0.0
        %1609 = vadd.xlane.f32.xlu0 %v1608
        %v1610 = vpop.xlane.xlu0 %1609
        %v1611 = vsel %vm412, %v1139, 0.0
        %1612 = vadd.xlane.f32.xlu0 %v1611
        %v1613 = vpop.xlane.xlu0 %1612
        %v1614 = vsel %vm412, %v1140, 0.0
        %1615 = vadd.xlane.f32.xlu0 %v1614
        %v1616 = vpop.xlane.xlu0 %1615
        %v1617 = vsel %vm412, %v1141, 0.0
        %1618 = vadd.xlane.f32.xlu0 %v1617
        %v1619 = vpop.xlane.xlu0 %1618
        %v1620 = vsel %vm412, %v1142, 0.0
        %1621 = vadd.xlane.f32.xlu0 %v1620
        %v1622 = vpop.xlane.xlu0 %1621
        %v1623 = vsel %vm412, %v1143, 0.0
        %1624 = vadd.xlane.f32.xlu0 %v1623
        %v1625 = vpop.xlane.xlu0 %1624
        %v1626 = vsel %vm412, %v1144, 0.0
        %1627 = vadd.xlane.f32.xlu0 %v1626
        %v1628 = vpop.xlane.xlu0 %1627
        %v1629 = vsel %vm412, %v1145, 0.0
        %1630 = vadd.xlane.f32.xlu0 %v1629
        %v1631 = vpop.xlane.xlu0 %1630
        %v1632 = vsel %vm412, %v1146, 0.0
        %1633 = vadd.xlane.f32.xlu0 %v1632
        %v1634 = vpop.xlane.xlu0 %1633
        %v1635 = vsel %vm412, %v1147, 0.0
        %1636 = vadd.xlane.f32.xlu0 %v1635
        %v1637 = vpop.xlane.xlu0 %1636
        %v1638 = vsel %vm412, %v1148, 0.0
        %1639 = vadd.xlane.f32.xlu0 %v1638
        %v1640 = vpop.xlane.xlu0 %1639
        %v1641 = vsel %vm412, %v1149, 0.0
        %1642 = vadd.xlane.f32.xlu0 %v1641
        %v1643 = vpop.xlane.xlu0 %1642
        %v1644 = vsel %vm412, %v1150, 0.0
        %1645 = vadd.xlane.f32.xlu0 %v1644
        %v1646 = vpop.xlane.xlu0 %1645
        %v1647 = vsel %vm412, %v1151, 0.0
        %1648 = vadd.xlane.f32.xlu0 %v1647
        %v1649 = vpop.xlane.xlu0 %1648
        %v1650 = vsel %vm412, %v1152, 0.0
        %1651 = vadd.xlane.f32.xlu0 %v1650
        %v1652 = vpop.xlane.xlu0 %1651
        %v1653 = vsel %vm412, %v1153, 0.0
        %1654 = vadd.xlane.f32.xlu0 %v1653
        %v1655 = vpop.xlane.xlu0 %1654
        %v1656 = vsel %vm412, %v1154, 0.0
        %1657 = vadd.xlane.f32.xlu0 %v1656
        %v1658 = vpop.xlane.xlu0 %1657
        %v1659 = vsel %vm412, %v1155, 0.0
        %1660 = vadd.xlane.f32.xlu0 %v1659
        %v1661 = vpop.xlane.xlu0 %1660
        %v1662 = vsel %vm412, %v1156, 0.0
        %1663 = vadd.xlane.f32.xlu0 %v1662
        %v1664 = vpop.xlane.xlu0 %1663
        %v1665 = vsel %vm412, %v1157, 0.0
        %1666 = vadd.xlane.f32.xlu0 %v1665
        %v1667 = vpop.xlane.xlu0 %1666
        %v1668 = vsel %vm412, %v1158, 0.0
        %1669 = vadd.xlane.f32.xlu0 %v1668
        %v1670 = vpop.xlane.xlu0 %1669
        %v1671 = vsel %vm412, %v1159, 0.0
        %1672 = vadd.xlane.f32.xlu0 %v1671
        %v1673 = vpop.xlane.xlu0 %1672
        %v1674 = vsel %vm412, %v1160, 0.0
        %1675 = vadd.xlane.f32.xlu0 %v1674
        %v1676 = vpop.xlane.xlu0 %1675
        %v1677 = vsel %vm412, %v1161, 0.0
        %1678 = vadd.xlane.f32.xlu0 %v1677
        %v1679 = vpop.xlane.xlu0 %1678
        %v1680 = vsel %vm412, %v1162, 0.0
        %1681 = vadd.xlane.f32.xlu0 %v1680
        %v1682 = vpop.xlane.xlu0 %1681
        %v1683 = vsel %vm412, %v1163, 0.0
        %1684 = vadd.xlane.f32.xlu0 %v1683
        %v1685 = vpop.xlane.xlu0 %1684
        %v1686 = vsel %vm412, %v1164, 0.0
        %1687 = vadd.xlane.f32.xlu0 %v1686
        %v1688 = vpop.xlane.xlu0 %1687
        %v1689 = vsel %vm412, %v1165, 0.0
        %1690 = vadd.xlane.f32.xlu0 %v1689
        %v1691 = vpop.xlane.xlu0 %1690
        %v1692 = vsel %vm412, %v1166, 0.0
        %1693 = vadd.xlane.f32.xlu0 %v1692
        %v1694 = vpop.xlane.xlu0 %1693
        %v1695 = vsel %vm412, %v1167, 0.0
        %1696 = vadd.xlane.f32.xlu0 %v1695
        %v1697 = vpop.xlane.xlu0 %1696
        %v1698 = vsel %vm412, %v1168, 0.0
        %1699 = vadd.xlane.f32.xlu0 %v1698
        %v1700 = vpop.xlane.xlu0 %1699
        %v1701 = vsel %vm412, %v1169, 0.0
        %1702 = vadd.xlane.f32.xlu0 %v1701
        %v1703 = vpop.xlane.xlu0 %1702
        %v1704 = vsel %vm412, %v1170, 0.0
        %1705 = vadd.xlane.f32.xlu0 %v1704
        %v1706 = vpop.xlane.xlu0 %1705
        %v1707 = vsel %vm412, %v1171, 0.0
        %1708 = vadd.xlane.f32.xlu0 %v1707
        %v1709 = vpop.xlane.xlu0 %1708
        %v1710 = vsel %vm412, %v1172, 0.0
        %1711 = vadd.xlane.f32.xlu0 %v1710
        %v1712 = vpop.xlane.xlu0 %1711
        %v1713 = vsel %vm412, %v1173, 0.0
        %1714 = vadd.xlane.f32.xlu0 %v1713
        %v1715 = vpop.xlane.xlu0 %1714
        %v1716 = vsel %vm412, %v1174, 0.0
        %1717 = vadd.xlane.f32.xlu0 %v1716
        %v1718 = vpop.xlane.xlu0 %1717
        %v1719 = vsel %vm412, %v1175, 0.0
        %1720 = vadd.xlane.f32.xlu0 %v1719
        %v1721 = vpop.xlane.xlu0 %1720
        %v1722 = vsel %vm412, %v1176, 0.0
        %1723 = vadd.xlane.f32.xlu0 %v1722
        %v1724 = vpop.xlane.xlu0 %1723
        %v1725 = vsel %vm412, %v1177, 0.0
        %1726 = vadd.xlane.f32.xlu0 %v1725
        %v1727 = vpop.xlane.xlu0 %1726
        %v1728 = vsel %vm412, %v1178, 0.0
        %1729 = vadd.xlane.f32.xlu0 %v1728
        %v1730 = vpop.xlane.xlu0 %1729
        %v1731 = vsel %vm412, %v1179, 0.0
        %1732 = vadd.xlane.f32.xlu0 %v1731
        %v1733 = vpop.xlane.xlu0 %1732
        %v1734 = vsel %vm412, %v1180, 0.0
        %1735 = vadd.xlane.f32.xlu0 %v1734
        %v1736 = vpop.xlane.xlu0 %1735
        %v1737 = vsel %vm412, %v1181, 0.0
        %1738 = vadd.xlane.f32.xlu0 %v1737
        %v1739 = vpop.xlane.xlu0 %1738
        %v1740 = vsel %vm412, %v1182, 0.0
        %1741 = vadd.xlane.f32.xlu0 %v1740
        %v1742 = vpop.xlane.xlu0 %1741
        %v1743 = vsel %vm412, %v1183, 0.0
        %1744 = vadd.xlane.f32.xlu0 %v1743
        %v1745 = vpop.xlane.xlu0 %1744
        %v1746 = vsel %vm412, %v1184, 0.0
        %1747 = vadd.xlane.f32.xlu0 %v1746
        %v1748 = vpop.xlane.xlu0 %1747
        %v1749 = vsel %vm412, %v1185, 0.0
        %1750 = vadd.xlane.f32.xlu0 %v1749
        %v1751 = vpop.xlane.xlu0 %1750
        %v1752 = vsel %vm412, %v1186, 0.0
        %1753 = vadd.xlane.f32.xlu0 %v1752
        %v1754 = vpop.xlane.xlu0 %1753
        %v1755 = vsel %vm412, %v1187, 0.0
        %1756 = vadd.xlane.f32.xlu0 %v1755
        %v1757 = vpop.xlane.xlu0 %1756
        %v1758 = vsel %vm412, %v1188, 0.0
        %1759 = vadd.xlane.f32.xlu0 %v1758
        %v1760 = vpop.xlane.xlu0 %1759
        %v1761 = vsel %vm412, %v1189, 0.0
        %1762 = vadd.xlane.f32.xlu0 %v1761
        %v1763 = vpop.xlane.xlu0 %1762
        %v1764 = vsel %vm412, %v1190, 0.0
        %1765 = vadd.xlane.f32.xlu0 %v1764
        %v1766 = vpop.xlane.xlu0 %1765
        %v1767 = vsel %vm412, %v1191, 0.0
        %1768 = vadd.xlane.f32.xlu0 %v1767
        %v1769 = vpop.xlane.xlu0 %1768
        %v1770 = vsel %vm412, %v1192, 0.0
        %1771 = vadd.xlane.f32.xlu0 %v1770
        %v1772 = vpop.xlane.xlu0 %1771
        %v1773 = vsel %vm412, %v1193, 0.0
        %1774 = vadd.xlane.f32.xlu0 %v1773
        %v1775 = vpop.xlane.xlu0 %1774
        %v1776 = vsel %vm412, %v1194, 0.0
        %1777 = vadd.xlane.f32.xlu0 %v1776
        %v1778 = vpop.xlane.xlu0 %1777
        %v1779 = vsel %vm412, %v1195, 0.0
        %1780 = vadd.xlane.f32.xlu0 %v1779
        %v1781 = vpop.xlane.xlu0 %1780
        %v1782 = vsel %vm412, %v1196, 0.0
        %1783 = vadd.xlane.f32.xlu0 %v1782
        %v1784 = vpop.xlane.xlu0 %1783
        %v1785 = vmul.f32 %v415, 0.010416667
        %v1786 = vmul.f32 %v418, 0.010416667
        %v1787 = vmul.f32 %v421, 0.010416667
        %v1788 = vmul.f32 %v424, 0.010416667
        %v1789 = vmul.f32 %v427, 0.010416667
        %v1790 = vmul.f32 %v430, 0.010416667
        %v1791 = vmul.f32 %v433, 0.010416667
        %v1792 = vmul.f32 %v436, 0.010416667
        %v1793 = vmul.f32 %v439, 0.010416667
        %v1794 = vmul.f32 %v442, 0.010416667
        %v1795 = vmul.f32 %v445, 0.010416667
        %v1796 = vmul.f32 %v448, 0.010416667
        %v1797 = vmul.f32 %v451, 0.010416667
        %v1798 = vmul.f32 %v454, 0.010416667
        %v1799 = vmul.f32 %v457, 0.010416667
        %v1800 = vmul.f32 %v460, 0.010416667
        %v1801 = vmul.f32 %v463, 0.010416667
        %v1802 = vmul.f32 %v466, 0.010416667
        %v1803 = vmul.f32 %v469, 0.010416667
        %v1804 = vmul.f32 %v472, 0.010416667
        %v1805 = vmul.f32 %v475, 0.010416667
        %v1806 = vmul.f32 %v478, 0.010416667
        %v1807 = vmul.f32 %v481, 0.010416667
        %v1808 = vmul.f32 %v484, 0.010416667
        %v1809 = vmul.f32 %v487, 0.010416667
        %v1810 = vmul.f32 %v490, 0.010416667
        %v1811 = vmul.f32 %v493, 0.010416667
        %v1812 = vmul.f32 %v496, 0.010416667
        %v1813 = vmul.f32 %v499, 0.010416667
        %v1814 = vmul.f32 %v502, 0.010416667
        %v1815 = vmul.f32 %v505, 0.010416667
        %v1816 = vmul.f32 %v508, 0.010416667
        %v1817 = vmul.f32 %v511, 0.010416667
        %v1818 = vmul.f32 %v514, 0.010416667
        %v1819 = vmul.f32 %v517, 0.010416667
        %v1820 = vmul.f32 %v520, 0.010416667
        %v1821 = vmul.f32 %v523, 0.010416667
        %v1822 = vmul.f32 %v526, 0.010416667
        %v1823 = vmul.f32 %v529, 0.010416667
        %v1824 = vmul.f32 %v532, 0.010416667
        %v1825 = vmul.f32 %v535, 0.010416667
        %v1826 = vmul.f32 %v538, 0.010416667
        %v1827 = vmul.f32 %v541, 0.010416667
        %v1828 = vmul.f32 %v544, 0.010416667
        %v1829 = vmul.f32 %v547, 0.010416667
        %v1830 = vmul.f32 %v550, 0.010416667
        %v1831 = vmul.f32 %v553, 0.010416667
        %v1832 = vmul.f32 %v556, 0.010416667
        %v1833 = vmul.f32 %v559, 0.010416667
        %v1834 = vmul.f32 %v562, 0.010416667
        %v1835 = vmul.f32 %v565, 0.010416667
        %v1836 = vmul.f32 %v568, 0.010416667
        %v1837 = vmul.f32 %v571, 0.010416667
        %v1838 = vmul.f32 %v574, 0.010416667
        %v1839 = vmul.f32 %v577, 0.010416667
        %v1840 = vmul.f32 %v580, 0.010416667
        %v1841 = vmul.f32 %v583, 0.010416667
        %v1842 = vmul.f32 %v586, 0.010416667
        %v1843 = vmul.f32 %v589, 0.010416667
        %v1844 = vmul.f32 %v592, 0.010416667
        %v1845 = vmul.f32 %v595, 0.010416667
        %v1846 = vmul.f32 %v598, 0.010416667
        %v1847 = vmul.f32 %v601, 0.010416667
        %v1848 = vmul.f32 %v604, 0.010416667
        %v1849 = vmul.f32 %v607, 0.010416667
        %v1850 = vmul.f32 %v610, 0.010416667
        %v1851 = vmul.f32 %v613, 0.010416667
        %v1852 = vmul.f32 %v616, 0.010416667
        %v1853 = vmul.f32 %v619, 0.010416667
        %v1854 = vmul.f32 %v622, 0.010416667
        %v1855 = vmul.f32 %v625, 0.010416667
        %v1856 = vmul.f32 %v628, 0.010416667
        %v1857 = vmul.f32 %v631, 0.010416667
        %v1858 = vmul.f32 %v634, 0.010416667
        %v1859 = vmul.f32 %v637, 0.010416667
        %v1860 = vmul.f32 %v640, 0.010416667
        %v1861 = vmul.f32 %v643, 0.010416667
        %v1862 = vmul.f32 %v646, 0.010416667
        %v1863 = vmul.f32 %v649, 0.010416667
        %v1864 = vmul.f32 %v652, 0.010416667
        %v1865 = vmul.f32 %v655, 0.010416667
        %v1866 = vmul.f32 %v658, 0.010416667
        %v1867 = vmul.f32 %v661, 0.010416667
        %v1868 = vmul.f32 %v664, 0.010416667
        %v1869 = vmul.f32 %v667, 0.010416667
        %v1870 = vmul.f32 %v670, 0.010416667
        %v1871 = vmul.f32 %v673, 0.010416667
        %v1872 = vmul.f32 %v676, 0.010416667
        %v1873 = vmul.f32 %v679, 0.010416667
        %v1874 = vmul.f32 %v682, 0.010416667
        %v1875 = vmul.f32 %v685, 0.010416667
        %v1876 = vmul.f32 %v688, 0.010416667
        %v1877 = vmul.f32 %v691, 0.010416667
        %v1878 = vmul.f32 %v694, 0.010416667
        %v1879 = vmul.f32 %v697, 0.010416667
        %v1880 = vmul.f32 %v700, 0.010416667
        %v1881 = vmul.f32 %v703, 0.010416667
        %v1882 = vmul.f32 %v706, 0.010416667
        %v1883 = vmul.f32 %v709, 0.010416667
        %v1884 = vmul.f32 %v712, 0.010416667
        %v1885 = vmul.f32 %v715, 0.010416667
        %v1886 = vmul.f32 %v718, 0.010416667
        %v1887 = vmul.f32 %v721, 0.010416667
        %v1888 = vmul.f32 %v724, 0.010416667
        %v1889 = vmul.f32 %v727, 0.010416667
        %v1890 = vmul.f32 %v730, 0.010416667
        %v1891 = vmul.f32 %v733, 0.010416667
        %v1892 = vmul.f32 %v736, 0.010416667
        %v1893 = vmul.f32 %v739, 0.010416667
        %v1894 = vmul.f32 %v742, 0.010416667
        %v1895 = vmul.f32 %v745, 0.010416667
        %v1896 = vmul.f32 %v748, 0.010416667
        %v1897 = vmul.f32 %v751, 0.010416667
        %v1898 = vmul.f32 %v754, 0.010416667
        %v1899 = vmul.f32 %v757, 0.010416667
        %v1900 = vmul.f32 %v760, 0.010416667
        %v1901 = vmul.f32 %v763, 0.010416667
        %v1902 = vmul.f32 %v766, 0.010416667
        %v1903 = vmul.f32 %v769, 0.010416667
        %v1904 = vmul.f32 %v772, 0.010416667
        %v1905 = vmul.f32 %v775, 0.010416667
        %v1906 = vmul.f32 %v778, 0.010416667
        %v1907 = vmul.f32 %v781, 0.010416667
        %v1908 = vmul.f32 %v784, 0.010416667
        %v1909 = vmul.f32 %v787, 0.010416667
        %v1910 = vmul.f32 %v790, 0.010416667
        %v1911 = vmul.f32 %v793, 0.010416667
        %v1912 = vmul.f32 %v796, 0.010416667
        %v1913 = vmul.f32 %v799, 0.010416667
        %v1914 = vmul.f32 %v802, 0.010416667
        %v1915 = vmul.f32 %v805, 0.010416667
        %v1916 = vmul.f32 %v808, 0.010416667
        %v1917 = vmul.f32 %v811, 0.010416667
        %v1918 = vmul.f32 %v814, 0.010416667
        %v1919 = vmul.f32 %v817, 0.010416667
        %v1920 = vmul.f32 %v820, 0.010416667
        %v1921 = vmul.f32 %v823, 0.010416667
        %v1922 = vmul.f32 %v826, 0.010416667
        %v1923 = vmul.f32 %v829, 0.010416667
        %v1924 = vmul.f32 %v832, 0.010416667
        %v1925 = vmul.f32 %v835, 0.010416667
        %v1926 = vmul.f32 %v838, 0.010416667
        %v1927 = vmul.f32 %v841, 0.010416667
        %v1928 = vmul.f32 %v844, 0.010416667
        %v1929 = vmul.f32 %v847, 0.010416667
        %v1930 = vmul.f32 %v850, 0.010416667
        %v1931 = vmul.f32 %v853, 0.010416667
        %v1932 = vmul.f32 %v856, 0.010416667
        %v1933 = vmul.f32 %v859, 0.010416667
        %v1934 = vmul.f32 %v862, 0.010416667
        %v1935 = vmul.f32 %v865, 0.010416667
        %v1936 = vmul.f32 %v868, 0.010416667
        %v1937 = vmul.f32 %v871, 0.010416667
        %v1938 = vmul.f32 %v874, 0.010416667
        %v1939 = vmul.f32 %v877, 0.010416667
        %v1940 = vmul.f32 %v880, 0.010416667
        %v1941 = vmul.f32 %v883, 0.010416667
        %v1942 = vmul.f32 %v886, 0.010416667
        %v1943 = vmul.f32 %v889, 0.010416667
        %v1944 = vmul.f32 %v892, 0.010416667
        %v1945 = vmul.f32 %v895, 0.010416667
        %v1946 = vmul.f32 %v898, 0.010416667
        %v1947 = vmul.f32 %v901, 0.010416667
        %v1948 = vmul.f32 %v904, 0.010416667
        %v1949 = vmul.f32 %v907, 0.010416667
        %v1950 = vmul.f32 %v910, 0.010416667
        %v1951 = vmul.f32 %v913, 0.010416667
        %v1952 = vmul.f32 %v916, 0.010416667
        %v1953 = vmul.f32 %v919, 0.010416667
        %v1954 = vmul.f32 %v922, 0.010416667
        %v1955 = vmul.f32 %v925, 0.010416667
        %v1956 = vmul.f32 %v928, 0.010416667
        %v1957 = vmul.f32 %v931, 0.010416667
        %v1958 = vmul.f32 %v934, 0.010416667
        %v1959 = vmul.f32 %v937, 0.010416667
        %v1960 = vmul.f32 %v940, 0.010416667
        %v1961 = vmul.f32 %v943, 0.010416667
        %v1962 = vmul.f32 %v946, 0.010416667
        %v1963 = vmul.f32 %v949, 0.010416667
        %v1964 = vmul.f32 %v952, 0.010416667
        %v1965 = vmul.f32 %v955, 0.010416667
        %v1966 = vmul.f32 %v958, 0.010416667
        %v1967 = vmul.f32 %v961, 0.010416667
        %v1968 = vmul.f32 %v964, 0.010416667
        %v1969 = vmul.f32 %v967, 0.010416667
        %v1970 = vmul.f32 %v970, 0.010416667
        %v1971 = vmul.f32 %v973, 0.010416667
        %v1972 = vmul.f32 %v976, 0.010416667
        %v1973 = vmul.f32 %v979, 0.010416667
        %v1974 = vmul.f32 %v982, 0.010416667
        %v1975 = vmul.f32 %v985, 0.010416667
        %v1976 = vmul.f32 %v988, 0.010416667
        %v1977 = vmul.f32 %v991, 0.010416667
        %v1978 = vmul.f32 %v994, 0.010416667
        %v1979 = vmul.f32 %v997, 0.010416667
        %v1980 = vmul.f32 %v1000, 0.010416667
        %v1981 = vmul.f32 %v1199, 0.010416667
        %v1982 = vmul.f32 %v1202, 0.010416667
        %v1983 = vmul.f32 %v1205, 0.010416667
        %v1984 = vmul.f32 %v1208, 0.010416667
        %v1985 = vmul.f32 %v1211, 0.010416667
        %v1986 = vmul.f32 %v1214, 0.010416667
        %v1987 = vmul.f32 %v1217, 0.010416667
        %v1988 = vmul.f32 %v1220, 0.010416667
        %v1989 = vmul.f32 %v1223, 0.010416667
        %v1990 = vmul.f32 %v1226, 0.010416667
        %v1991 = vmul.f32 %v1229, 0.010416667
        %v1992 = vmul.f32 %v1232, 0.010416667
        %v1993 = vmul.f32 %v1235, 0.010416667
        %v1994 = vmul.f32 %v1238, 0.010416667
        %v1995 = vmul.f32 %v1241, 0.010416667
        %v1996 = vmul.f32 %v1244, 0.010416667
        %v1997 = vmul.f32 %v1247, 0.010416667
        %v1998 = vmul.f32 %v1250, 0.010416667
        %v1999 = vmul.f32 %v1253, 0.010416667
        %v2000 = vmul.f32 %v1256, 0.010416667
        %v2001 = vmul.f32 %v1259, 0.010416667
        %v2002 = vmul.f32 %v1262, 0.010416667
        %v2003 = vmul.f32 %v1265, 0.010416667
        %v2004 = vmul.f32 %v1268, 0.010416667
        %v2005 = vmul.f32 %v1271, 0.010416667
        %v2006 = vmul.f32 %v1274, 0.010416667
        %v2007 = vmul.f32 %v1277, 0.010416667
        %v2008 = vmul.f32 %v1280, 0.010416667
        %v2009 = vmul.f32 %v1283, 0.010416667
        %v2010 = vmul.f32 %v1286, 0.010416667
        %v2011 = vmul.f32 %v1289, 0.010416667
        %v2012 = vmul.f32 %v1292, 0.010416667
        %v2013 = vmul.f32 %v1295, 0.010416667
        %v2014 = vmul.f32 %v1298, 0.010416667
        %v2015 = vmul.f32 %v1301, 0.010416667
        %v2016 = vmul.f32 %v1304, 0.010416667
        %v2017 = vmul.f32 %v1307, 0.010416667
        %v2018 = vmul.f32 %v1310, 0.010416667
        %v2019 = vmul.f32 %v1313, 0.010416667
        %v2020 = vmul.f32 %v1316, 0.010416667
        %v2021 = vmul.f32 %v1319, 0.010416667
        %v2022 = vmul.f32 %v1322, 0.010416667
        %v2023 = vmul.f32 %v1325, 0.010416667
        %v2024 = vmul.f32 %v1328, 0.010416667
        %v2025 = vmul.f32 %v1331, 0.010416667
        %v2026 = vmul.f32 %v1334, 0.010416667
        %v2027 = vmul.f32 %v1337, 0.010416667
        %v2028 = vmul.f32 %v1340, 0.010416667
        %v2029 = vmul.f32 %v1343, 0.010416667
        %v2030 = vmul.f32 %v1346, 0.010416667
        %v2031 = vmul.f32 %v1349, 0.010416667
        %v2032 = vmul.f32 %v1352, 0.010416667
        %v2033 = vmul.f32 %v1355, 0.010416667
        %v2034 = vmul.f32 %v1358, 0.010416667
        %v2035 = vmul.f32 %v1361, 0.010416667
        %v2036 = vmul.f32 %v1364, 0.010416667
        %v2037 = vmul.f32 %v1367, 0.010416667
        %v2038 = vmul.f32 %v1370, 0.010416667
        %v2039 = vmul.f32 %v1373, 0.010416667
        %v2040 = vmul.f32 %v1376, 0.010416667
        %v2041 = vmul.f32 %v1379, 0.010416667
        %v2042 = vmul.f32 %v1382, 0.010416667
        %v2043 = vmul.f32 %v1385, 0.010416667
        %v2044 = vmul.f32 %v1388, 0.010416667
        %v2045 = vmul.f32 %v1391, 0.010416667
        %v2046 = vmul.f32 %v1394, 0.010416667
        %v2047 = vmul.f32 %v1397, 0.010416667
        %v2048 = vmul.f32 %v1400, 0.010416667
        %v2049 = vmul.f32 %v1403, 0.010416667
        %v2050 = vmul.f32 %v1406, 0.010416667
        %v2051 = vmul.f32 %v1409, 0.010416667
        %v2052 = vmul.f32 %v1412, 0.010416667
        %v2053 = vmul.f32 %v1415, 0.010416667
        %v2054 = vmul.f32 %v1418, 0.010416667
        %v2055 = vmul.f32 %v1421, 0.010416667
        %v2056 = vmul.f32 %v1424, 0.010416667
        %v2057 = vmul.f32 %v1427, 0.010416667
        %v2058 = vmul.f32 %v1430, 0.010416667
        %v2059 = vmul.f32 %v1433, 0.010416667
        %v2060 = vmul.f32 %v1436, 0.010416667
        %v2061 = vmul.f32 %v1439, 0.010416667
        %v2062 = vmul.f32 %v1442, 0.010416667
        %v2063 = vmul.f32 %v1445, 0.010416667
        %v2064 = vmul.f32 %v1448, 0.010416667
        %v2065 = vmul.f32 %v1451, 0.010416667
        %v2066 = vmul.f32 %v1454, 0.010416667
        %v2067 = vmul.f32 %v1457, 0.010416667
        %v2068 = vmul.f32 %v1460, 0.010416667
        %v2069 = vmul.f32 %v1463, 0.010416667
        %v2070 = vmul.f32 %v1466, 0.010416667
        %v2071 = vmul.f32 %v1469, 0.010416667
        %v2072 = vmul.f32 %v1472, 0.010416667
        %v2073 = vmul.f32 %v1475, 0.010416667
        %v2074 = vmul.f32 %v1478, 0.010416667
        %v2075 = vmul.f32 %v1481, 0.010416667
        %v2076 = vmul.f32 %v1484, 0.010416667
        %v2077 = vmul.f32 %v1487, 0.010416667
        %v2078 = vmul.f32 %v1490, 0.010416667
        %v2079 = vmul.f32 %v1493, 0.010416667
        %v2080 = vmul.f32 %v1496, 0.010416667
        %v2081 = vmul.f32 %v1499, 0.010416667
        %v2082 = vmul.f32 %v1502, 0.010416667
        %v2083 = vmul.f32 %v1505, 0.010416667
        %v2084 = vmul.f32 %v1508, 0.010416667
        %v2085 = vmul.f32 %v1511, 0.010416667
        %v2086 = vmul.f32 %v1514, 0.010416667
        %v2087 = vmul.f32 %v1517, 0.010416667
        %v2088 = vmul.f32 %v1520, 0.010416667
        %v2089 = vmul.f32 %v1523, 0.010416667
        %v2090 = vmul.f32 %v1526, 0.010416667
        %v2091 = vmul.f32 %v1529, 0.010416667
        %v2092 = vmul.f32 %v1532, 0.010416667
        %v2093 = vmul.f32 %v1535, 0.010416667
        %v2094 = vmul.f32 %v1538, 0.010416667
        %v2095 = vmul.f32 %v1541, 0.010416667
        %v2096 = vmul.f32 %v1544, 0.010416667
        %v2097 = vmul.f32 %v1547, 0.010416667
        %v2098 = vmul.f32 %v1550, 0.010416667
        %v2099 = vmul.f32 %v1553, 0.010416667
        %v2100 = vmul.f32 %v1556, 0.010416667
        %v2101 = vmul.f32 %v1559, 0.010416667
        %v2102 = vmul.f32 %v1562, 0.010416667
        %v2103 = vmul.f32 %v1565, 0.010416667
        %v2104 = vmul.f32 %v1568, 0.010416667
        %v2105 = vmul.f32 %v1571, 0.010416667
        %v2106 = vmul.f32 %v1574, 0.010416667
        %v2107 = vmul.f32 %v1577, 0.010416667
        %v2108 = vmul.f32 %v1580, 0.010416667
        %v2109 = vmul.f32 %v1583, 0.010416667
        %v2110 = vmul.f32 %v1586, 0.010416667
        %v2111 = vmul.f32 %v1589, 0.010416667
        %v2112 = vmul.f32 %v1592, 0.010416667
        %v2113 = vmul.f32 %v1595, 0.010416667
        %v2114 = vmul.f32 %v1598, 0.010416667
        %v2115 = vmul.f32 %v1601, 0.010416667
        %v2116 = vmul.f32 %v1604, 0.010416667
        %v2117 = vmul.f32 %v1607, 0.010416667
        %v2118 = vmul.f32 %v1610, 0.010416667
        %v2119 = vmul.f32 %v1613, 0.010416667
        %v2120 = vmul.f32 %v1616, 0.010416667
        %v2121 = vmul.f32 %v1619, 0.010416667
        %v2122 = vmul.f32 %v1622, 0.010416667
        %v2123 = vmul.f32 %v1625, 0.010416667
        %v2124 = vmul.f32 %v1628, 0.010416667
        %v2125 = vmul.f32 %v1631, 0.010416667
        %v2126 = vmul.f32 %v1634, 0.010416667
        %v2127 = vmul.f32 %v1637, 0.010416667
        %v2128 = vmul.f32 %v1640, 0.010416667
        %v2129 = vmul.f32 %v1643, 0.010416667
        %v2130 = vmul.f32 %v1646, 0.010416667
        %v2131 = vmul.f32 %v1649, 0.010416667
        %v2132 = vmul.f32 %v1652, 0.010416667
        %v2133 = vmul.f32 %v1655, 0.010416667
        %v2134 = vmul.f32 %v1658, 0.010416667
        %v2135 = vmul.f32 %v1661, 0.010416667
        %v2136 = vmul.f32 %v1664, 0.010416667
        %v2137 = vmul.f32 %v1667, 0.010416667
        %v2138 = vmul.f32 %v1670, 0.010416667
        %v2139 = vmul.f32 %v1673, 0.010416667
        %v2140 = vmul.f32 %v1676, 0.010416667
        %v2141 = vmul.f32 %v1679, 0.010416667
        %v2142 = vmul.f32 %v1682, 0.010416667
        %v2143 = vmul.f32 %v1685, 0.010416667
        %v2144 = vmul.f32 %v1688, 0.010416667
        %v2145 = vmul.f32 %v1691, 0.010416667
        %v2146 = vmul.f32 %v1694, 0.010416667
        %v2147 = vmul.f32 %v1697, 0.010416667
        %v2148 = vmul.f32 %v1700, 0.010416667
        %v2149 = vmul.f32 %v1703, 0.010416667
        %v2150 = vmul.f32 %v1706, 0.010416667
        %v2151 = vmul.f32 %v1709, 0.010416667
        %v2152 = vmul.f32 %v1712, 0.010416667
        %v2153 = vmul.f32 %v1715, 0.010416667
        %v2154 = vmul.f32 %v1718, 0.010416667
        %v2155 = vmul.f32 %v1721, 0.010416667
        %v2156 = vmul.f32 %v1724, 0.010416667
        %v2157 = vmul.f32 %v1727, 0.010416667
        %v2158 = vmul.f32 %v1730, 0.010416667
        %v2159 = vmul.f32 %v1733, 0.010416667
        %v2160 = vmul.f32 %v1736, 0.010416667
        %v2161 = vmul.f32 %v1739, 0.010416667
        %v2162 = vmul.f32 %v1742, 0.010416667
        %v2163 = vmul.f32 %v1745, 0.010416667
        %v2164 = vmul.f32 %v1748, 0.010416667
        %v2165 = vmul.f32 %v1751, 0.010416667
        %v2166 = vmul.f32 %v1754, 0.010416667
        %v2167 = vmul.f32 %v1757, 0.010416667
        %v2168 = vmul.f32 %v1760, 0.010416667
        %v2169 = vmul.f32 %v1763, 0.010416667
        %v2170 = vmul.f32 %v1766, 0.010416667
        %v2171 = vmul.f32 %v1769, 0.010416667
        %v2172 = vmul.f32 %v1772, 0.010416667
        %v2173 = vmul.f32 %v1775, 0.010416667
        %v2174 = vmul.f32 %v1778, 0.010416667
        %v2175 = vmul.f32 %v1781, 0.010416667
        %v2176 = vmul.f32 %v1784, 0.010416667
        %v2177 = vmul.f32 %v1785, %v1785
        %v2178 = vmul.f32 %v1786, %v1786
        %v2179 = vmul.f32 %v1787, %v1787
        %v2180 = vmul.f32 %v1788, %v1788
        %v2181 = vmul.f32 %v1789, %v1789
        %v2182 = vmul.f32 %v1790, %v1790
        %v2183 = vmul.f32 %v1791, %v1791
        %v2184 = vmul.f32 %v1792, %v1792
        %v2185 = vmul.f32 %v1793, %v1793
        %v2186 = vmul.f32 %v1794, %v1794
        %v2187 = vmul.f32 %v1795, %v1795
        %v2188 = vmul.f32 %v1796, %v1796
        %v2189 = vmul.f32 %v1797, %v1797
        %v2190 = vmul.f32 %v1798, %v1798
        %v2191 = vmul.f32 %v1799, %v1799
        %v2192 = vmul.f32 %v1800, %v1800
        %v2193 = vmul.f32 %v1801, %v1801
        %v2194 = vmul.f32 %v1802, %v1802
        %v2195 = vmul.f32 %v1803, %v1803
        %v2196 = vmul.f32 %v1804, %v1804
        %v2197 = vmul.f32 %v1805, %v1805
        %v2198 = vmul.f32 %v1806, %v1806
        %v2199 = vmul.f32 %v1807, %v1807
        %v2200 = vmul.f32 %v1808, %v1808
        %v2201 = vmul.f32 %v1809, %v1809
        %v2202 = vmul.f32 %v1810, %v1810
        %v2203 = vmul.f32 %v1811, %v1811
        %v2204 = vmul.f32 %v1812, %v1812
        %v2205 = vmul.f32 %v1813, %v1813
        %v2206 = vmul.f32 %v1814, %v1814
        %v2207 = vmul.f32 %v1815, %v1815
        %v2208 = vmul.f32 %v1816, %v1816
        %v2209 = vmul.f32 %v1817, %v1817
        %v2210 = vmul.f32 %v1818, %v1818
        %v2211 = vmul.f32 %v1819, %v1819
        %v2212 = vmul.f32 %v1820, %v1820
        %v2213 = vmul.f32 %v1821, %v1821
        %v2214 = vmul.f32 %v1822, %v1822
        %v2215 = vmul.f32 %v1823, %v1823
        %v2216 = vmul.f32 %v1824, %v1824
        %v2217 = vmul.f32 %v1825, %v1825
        %v2218 = vmul.f32 %v1826, %v1826
        %v2219 = vmul.f32 %v1827, %v1827
        %v2220 = vmul.f32 %v1828, %v1828
        %v2221 = vmul.f32 %v1829, %v1829
        %v2222 = vmul.f32 %v1830, %v1830
        %v2223 = vmul.f32 %v1831, %v1831
        %v2224 = vmul.f32 %v1832, %v1832
        %v2225 = vmul.f32 %v1833, %v1833
        %v2226 = vmul.f32 %v1834, %v1834
        %v2227 = vmul.f32 %v1835, %v1835
        %v2228 = vmul.f32 %v1836, %v1836
        %v2229 = vmul.f32 %v1837, %v1837
        %v2230 = vmul.f32 %v1838, %v1838
        %v2231 = vmul.f32 %v1839, %v1839
        %v2232 = vmul.f32 %v1840, %v1840
        %v2233 = vmul.f32 %v1841, %v1841
        %v2234 = vmul.f32 %v1842, %v1842
        %v2235 = vmul.f32 %v1843, %v1843
        %v2236 = vmul.f32 %v1844, %v1844
        %v2237 = vmul.f32 %v1845, %v1845
        %v2238 = vmul.f32 %v1846, %v1846
        %v2239 = vmul.f32 %v1847, %v1847
        %v2240 = vmul.f32 %v1848, %v1848
        %v2241 = vmul.f32 %v1849, %v1849
        %v2242 = vmul.f32 %v1850, %v1850
        %v2243 = vmul.f32 %v1851, %v1851
        %v2244 = vmul.f32 %v1852, %v1852
        %v2245 = vmul.f32 %v1853, %v1853
        %v2246 = vmul.f32 %v1854, %v1854
        %v2247 = vmul.f32 %v1855, %v1855
        %v2248 = vmul.f32 %v1856, %v1856
        %v2249 = vmul.f32 %v1857, %v1857
        %v2250 = vmul.f32 %v1858, %v1858
        %v2251 = vmul.f32 %v1859, %v1859
        %v2252 = vmul.f32 %v1860, %v1860
        %v2253 = vmul.f32 %v1861, %v1861
        %v2254 = vmul.f32 %v1862, %v1862
        %v2255 = vmul.f32 %v1863, %v1863
        %v2256 = vmul.f32 %v1864, %v1864
        %v2257 = vmul.f32 %v1865, %v1865
        %v2258 = vmul.f32 %v1866, %v1866
        %v2259 = vmul.f32 %v1867, %v1867
        %v2260 = vmul.f32 %v1868, %v1868
        %v2261 = vmul.f32 %v1869, %v1869
        %v2262 = vmul.f32 %v1870, %v1870
        %v2263 = vmul.f32 %v1871, %v1871
        %v2264 = vmul.f32 %v1872, %v1872
        %v2265 = vmul.f32 %v1873, %v1873
        %v2266 = vmul.f32 %v1874, %v1874
        %v2267 = vmul.f32 %v1875, %v1875
        %v2268 = vmul.f32 %v1876, %v1876
        %v2269 = vmul.f32 %v1877, %v1877
        %v2270 = vmul.f32 %v1878, %v1878
        %v2271 = vmul.f32 %v1879, %v1879
        %v2272 = vmul.f32 %v1880, %v1880
        %v2273 = vmul.f32 %v1881, %v1881
        %v2274 = vmul.f32 %v1882, %v1882
        %v2275 = vmul.f32 %v1883, %v1883
        %v2276 = vmul.f32 %v1884, %v1884
        %v2277 = vmul.f32 %v1885, %v1885
        %v2278 = vmul.f32 %v1886, %v1886
        %v2279 = vmul.f32 %v1887, %v1887
        %v2280 = vmul.f32 %v1888, %v1888
        %v2281 = vmul.f32 %v1889, %v1889
        %v2282 = vmul.f32 %v1890, %v1890
        %v2283 = vmul.f32 %v1891, %v1891
        %v2284 = vmul.f32 %v1892, %v1892
        %v2285 = vmul.f32 %v1893, %v1893
        %v2286 = vmul.f32 %v1894, %v1894
        %v2287 = vmul.f32 %v1895, %v1895
        %v2288 = vmul.f32 %v1896, %v1896
        %v2289 = vmul.f32 %v1897, %v1897
        %v2290 = vmul.f32 %v1898, %v1898
        %v2291 = vmul.f32 %v1899, %v1899
        %v2292 = vmul.f32 %v1900, %v1900
        %v2293 = vmul.f32 %v1901, %v1901
        %v2294 = vmul.f32 %v1902, %v1902
        %v2295 = vmul.f32 %v1903, %v1903
        %v2296 = vmul.f32 %v1904, %v1904
        %v2297 = vmul.f32 %v1905, %v1905
        %v2298 = vmul.f32 %v1906, %v1906
        %v2299 = vmul.f32 %v1907, %v1907
        %v2300 = vmul.f32 %v1908, %v1908
        %v2301 = vmul.f32 %v1909, %v1909
        %v2302 = vmul.f32 %v1910, %v1910
        %v2303 = vmul.f32 %v1911, %v1911
        %v2304 = vmul.f32 %v1912, %v1912
        %v2305 = vmul.f32 %v1913, %v1913
        %v2306 = vmul.f32 %v1914, %v1914
        %v2307 = vmul.f32 %v1915, %v1915
        %v2308 = vmul.f32 %v1916, %v1916
        %v2309 = vmul.f32 %v1917, %v1917
        %v2310 = vmul.f32 %v1918, %v1918
        %v2311 = vmul.f32 %v1919, %v1919
        %v2312 = vmul.f32 %v1920, %v1920
        %v2313 = vmul.f32 %v1921, %v1921
        %v2314 = vmul.f32 %v1922, %v1922
        %v2315 = vmul.f32 %v1923, %v1923
        %v2316 = vmul.f32 %v1924, %v1924
        %v2317 = vmul.f32 %v1925, %v1925
        %v2318 = vmul.f32 %v1926, %v1926
        %v2319 = vmul.f32 %v1927, %v1927
        %v2320 = vmul.f32 %v1928, %v1928
        %v2321 = vmul.f32 %v1929, %v1929
        %v2322 = vmul.f32 %v1930, %v1930
        %v2323 = vmul.f32 %v1931, %v1931
        %v2324 = vmul.f32 %v1932, %v1932
        %v2325 = vmul.f32 %v1933, %v1933
        %v2326 = vmul.f32 %v1934, %v1934
        %v2327 = vmul.f32 %v1935, %v1935
        %v2328 = vmul.f32 %v1936, %v1936
        %v2329 = vmul.f32 %v1937, %v1937
        %v2330 = vmul.f32 %v1938, %v1938
        %v2331 = vmul.f32 %v1939, %v1939
        %v2332 = vmul.f32 %v1940, %v1940
        %v2333 = vmul.f32 %v1941, %v1941
        %v2334 = vmul.f32 %v1942, %v1942
        %v2335 = vmul.f32 %v1943, %v1943
        %v2336 = vmul.f32 %v1944, %v1944
        %v2337 = vmul.f32 %v1945, %v1945
        %v2338 = vmul.f32 %v1946, %v1946
        %v2339 = vmul.f32 %v1947, %v1947
        %v2340 = vmul.f32 %v1948, %v1948
        %v2341 = vmul.f32 %v1949, %v1949
        %v2342 = vmul.f32 %v1950, %v1950
        %v2343 = vmul.f32 %v1951, %v1951
        %v2344 = vmul.f32 %v1952, %v1952
        %v2345 = vmul.f32 %v1953, %v1953
        %v2346 = vmul.f32 %v1954, %v1954
        %v2347 = vmul.f32 %v1955, %v1955
        %v2348 = vmul.f32 %v1956, %v1956
        %v2349 = vmul.f32 %v1957, %v1957
        %v2350 = vmul.f32 %v1958, %v1958
        %v2351 = vmul.f32 %v1959, %v1959
        %v2352 = vmul.f32 %v1960, %v1960
        %v2353 = vmul.f32 %v1961, %v1961
        %v2354 = vmul.f32 %v1962, %v1962
        %v2355 = vmul.f32 %v1963, %v1963
        %v2356 = vmul.f32 %v1964, %v1964
        %v2357 = vmul.f32 %v1965, %v1965
        %v2358 = vmul.f32 %v1966, %v1966
        %v2359 = vmul.f32 %v1967, %v1967
        %v2360 = vmul.f32 %v1968, %v1968
        %v2361 = vmul.f32 %v1969, %v1969
        %v2362 = vmul.f32 %v1970, %v1970
        %v2363 = vmul.f32 %v1971, %v1971
        %v2364 = vmul.f32 %v1972, %v1972
        %v2365 = vmul.f32 %v1973, %v1973
        %v2366 = vmul.f32 %v1974, %v1974
        %v2367 = vmul.f32 %v1975, %v1975
        %v2368 = vmul.f32 %v1976, %v1976
        %v2369 = vmul.f32 %v1977, %v1977
        %v2370 = vmul.f32 %v1978, %v1978
        %v2371 = vmul.f32 %v1979, %v1979
        %v2372 = vmul.f32 %v1980, %v1980
        %v2373 = vsub.f32 %v1981, %v2177
        %v2374 = vsub.f32 %v1982, %v2178
        %v2375 = vsub.f32 %v1983, %v2179
        %v2376 = vsub.f32 %v1984, %v2180
        %v2377 = vsub.f32 %v1985, %v2181
        %v2378 = vsub.f32 %v1986, %v2182
        %v2379 = vsub.f32 %v1987, %v2183
        %v2380 = vsub.f32 %v1988, %v2184
        %v2381 = vsub.f32 %v1989, %v2185
        %v2382 = vsub.f32 %v1990, %v2186
        %v2383 = vsub.f32 %v1991, %v2187
        %v2384 = vsub.f32 %v1992, %v2188
        %v2385 = vsub.f32 %v1993, %v2189
        %v2386 = vsub.f32 %v1994, %v2190
        %v2387 = vsub.f32 %v1995, %v2191
        %v2388 = vsub.f32 %v1996, %v2192
        %v2389 = vsub.f32 %v1997, %v2193
        %v2390 = vsub.f32 %v1998, %v2194
        %v2391 = vsub.f32 %v1999, %v2195
        %v2392 = vsub.f32 %v2000, %v2196
        %v2393 = vsub.f32 %v2001, %v2197
        %v2394 = vsub.f32 %v2002, %v2198
        %v2395 = vsub.f32 %v2003, %v2199
        %v2396 = vsub.f32 %v2004, %v2200
        %v2397 = vsub.f32 %v2005, %v2201
        %v2398 = vsub.f32 %v2006, %v2202
        %v2399 = vsub.f32 %v2007, %v2203
        %v2400 = vsub.f32 %v2008, %v2204
        %v2401 = vsub.f32 %v2009, %v2205
        %v2402 = vsub.f32 %v2010, %v2206
        %v2403 = vsub.f32 %v2011, %v2207
        %v2404 = vsub.f32 %v2012, %v2208
        %v2405 = vsub.f32 %v2013, %v2209
        %v2406 = vsub.f32 %v2014, %v2210
        %v2407 = vsub.f32 %v2015, %v2211
        %v2408 = vsub.f32 %v2016, %v2212
        %v2409 = vsub.f32 %v2017, %v2213
        %v2410 = vsub.f32 %v2018, %v2214
        %v2411 = vsub.f32 %v2019, %v2215
        %v2412 = vsub.f32 %v2020, %v2216
        %v2413 = vsub.f32 %v2021, %v2217
        %v2414 = vsub.f32 %v2022, %v2218
        %v2415 = vsub.f32 %v2023, %v2219
        %v2416 = vsub.f32 %v2024, %v2220
        %v2417 = vsub.f32 %v2025, %v2221
        %v2418 = vsub.f32 %v2026, %v2222
        %v2419 = vsub.f32 %v2027, %v2223
        %v2420 = vsub.f32 %v2028, %v2224
        %v2421 = vsub.f32 %v2029, %v2225
        %v2422 = vsub.f32 %v2030, %v2226
        %v2423 = vsub.f32 %v2031, %v2227
        %v2424 = vsub.f32 %v2032, %v2228
        %v2425 = vsub.f32 %v2033, %v2229
        %v2426 = vsub.f32 %v2034, %v2230
        %v2427 = vsub.f32 %v2035, %v2231
        %v2428 = vsub.f32 %v2036, %v2232
        %v2429 = vsub.f32 %v2037, %v2233
        %v2430 = vsub.f32 %v2038, %v2234
        %v2431 = vsub.f32 %v2039, %v2235
        %v2432 = vsub.f32 %v2040, %v2236
        %v2433 = vsub.f32 %v2041, %v2237
        %v2434 = vsub.f32 %v2042, %v2238
        %v2435 = vsub.f32 %v2043, %v2239
        %v2436 = vsub.f32 %v2044, %v2240
        %v2437 = vsub.f32 %v2045, %v2241
        %v2438 = vsub.f32 %v2046, %v2242
        %v2439 = vsub.f32 %v2047, %v2243
        %v2440 = vsub.f32 %v2048, %v2244
        %v2441 = vsub.f32 %v2049, %v2245
        %v2442 = vsub.f32 %v2050, %v2246
        %v2443 = vsub.f32 %v2051, %v2247
        %v2444 = vsub.f32 %v2052, %v2248
        %v2445 = vsub.f32 %v2053, %v2249
        %v2446 = vsub.f32 %v2054, %v2250
        %v2447 = vsub.f32 %v2055, %v2251
        %v2448 = vsub.f32 %v2056, %v2252
        %v2449 = vsub.f32 %v2057, %v2253
        %v2450 = vsub.f32 %v2058, %v2254
        %v2451 = vsub.f32 %v2059, %v2255
        %v2452 = vsub.f32 %v2060, %v2256
        %v2453 = vsub.f32 %v2061, %v2257
        %v2454 = vsub.f32 %v2062, %v2258
        %v2455 = vsub.f32 %v2063, %v2259
        %v2456 = vsub.f32 %v2064, %v2260
        %v2457 = vsub.f32 %v2065, %v2261
        %v2458 = vsub.f32 %v2066, %v2262
        %v2459 = vsub.f32 %v2067, %v2263
        %v2460 = vsub.f32 %v2068, %v2264
        %v2461 = vsub.f32 %v2069, %v2265
        %v2462 = vsub.f32 %v2070, %v2266
        %v2463 = vsub.f32 %v2071, %v2267
        %v2464 = vsub.f32 %v2072, %v2268
        %v2465 = vsub.f32 %v2073, %v2269
        %v2466 = vsub.f32 %v2074, %v2270
        %v2467 = vsub.f32 %v2075, %v2271
        %v2468 = vsub.f32 %v2076, %v2272
        %v2469 = vsub.f32 %v2077, %v2273
        %v2470 = vsub.f32 %v2078, %v2274
        %v2471 = vsub.f32 %v2079, %v2275
        %v2472 = vsub.f32 %v2080, %v2276
        %v2473 = vsub.f32 %v2081, %v2277
        %v2474 = vsub.f32 %v2082, %v2278
        %v2475 = vsub.f32 %v2083, %v2279
        %v2476 = vsub.f32 %v2084, %v2280
        %v2477 = vsub.f32 %v2085, %v2281
        %v2478 = vsub.f32 %v2086, %v2282
        %v2479 = vsub.f32 %v2087, %v2283
        %v2480 = vsub.f32 %v2088, %v2284
        %v2481 = vsub.f32 %v2089, %v2285
        %v2482 = vsub.f32 %v2090, %v2286
        %v2483 = vsub.f32 %v2091, %v2287
        %v2484 = vsub.f32 %v2092, %v2288
        %v2485 = vsub.f32 %v2093, %v2289
        %v2486 = vsub.f32 %v2094, %v2290
        %v2487 = vsub.f32 %v2095, %v2291
        %v2488 = vsub.f32 %v2096, %v2292
        %v2489 = vsub.f32 %v2097, %v2293
        %v2490 = vsub.f32 %v2098, %v2294
        %v2491 = vsub.f32 %v2099, %v2295
        %v2492 = vsub.f32 %v2100, %v2296
        %v2493 = vsub.f32 %v2101, %v2297
        %v2494 = vsub.f32 %v2102, %v2298
        %v2495 = vsub.f32 %v2103, %v2299
        %v2496 = vsub.f32 %v2104, %v2300
        %v2497 = vsub.f32 %v2105, %v2301
        %v2498 = vsub.f32 %v2106, %v2302
        %v2499 = vsub.f32 %v2107, %v2303
        %v2500 = vsub.f32 %v2108, %v2304
        %v2501 = vsub.f32 %v2109, %v2305
        %v2502 = vsub.f32 %v2110, %v2306
        %v2503 = vsub.f32 %v2111, %v2307
        %v2504 = vsub.f32 %v2112, %v2308
        %v2505 = vsub.f32 %v2113, %v2309
        %v2506 = vsub.f32 %v2114, %v2310
        %v2507 = vsub.f32 %v2115, %v2311
        %v2508 = vsub.f32 %v2116, %v2312
        %v2509 = vsub.f32 %v2117, %v2313
        %v2510 = vsub.f32 %v2118, %v2314
        %v2511 = vsub.f32 %v2119, %v2315
        %v2512 = vsub.f32 %v2120, %v2316
        %v2513 = vsub.f32 %v2121, %v2317
        %v2514 = vsub.f32 %v2122, %v2318
        %v2515 = vsub.f32 %v2123, %v2319
        %v2516 = vsub.f32 %v2124, %v2320
        %v2517 = vsub.f32 %v2125, %v2321
        %v2518 = vsub.f32 %v2126, %v2322
        %v2519 = vsub.f32 %v2127, %v2323
        %v2520 = vsub.f32 %v2128, %v2324
        %v2521 = vsub.f32 %v2129, %v2325
        %v2522 = vsub.f32 %v2130, %v2326
        %v2523 = vsub.f32 %v2131, %v2327
        %v2524 = vsub.f32 %v2132, %v2328
        %v2525 = vsub.f32 %v2133, %v2329
        %v2526 = vsub.f32 %v2134, %v2330
        %v2527 = vsub.f32 %v2135, %v2331
        %v2528 = vsub.f32 %v2136, %v2332
        %v2529 = vsub.f32 %v2137, %v2333
        %v2530 = vsub.f32 %v2138, %v2334
        %v2531 = vsub.f32 %v2139, %v2335
        %v2532 = vsub.f32 %v2140, %v2336
        %v2533 = vsub.f32 %v2141, %v2337
        %v2534 = vsub.f32 %v2142, %v2338
        %v2535 = vsub.f32 %v2143, %v2339
        %v2536 = vsub.f32 %v2144, %v2340
        %v2537 = vsub.f32 %v2145, %v2341
        %v2538 = vsub.f32 %v2146, %v2342
        %v2539 = vsub.f32 %v2147, %v2343
        %v2540 = vsub.f32 %v2148, %v2344
        %v2541 = vsub.f32 %v2149, %v2345
        %v2542 = vsub.f32 %v2150, %v2346
        %v2543 = vsub.f32 %v2151, %v2347
        %v2544 = vsub.f32 %v2152, %v2348
        %v2545 = vsub.f32 %v2153, %v2349
        %v2546 = vsub.f32 %v2154, %v2350
        %v2547 = vsub.f32 %v2155, %v2351
        %v2548 = vsub.f32 %v2156, %v2352
        %v2549 = vsub.f32 %v2157, %v2353
        %v2550 = vsub.f32 %v2158, %v2354
        %v2551 = vsub.f32 %v2159, %v2355
        %v2552 = vsub.f32 %v2160, %v2356
        %v2553 = vsub.f32 %v2161, %v2357
        %v2554 = vsub.f32 %v2162, %v2358
        %v2555 = vsub.f32 %v2163, %v2359
        %v2556 = vsub.f32 %v2164, %v2360
        %v2557 = vsub.f32 %v2165, %v2361
        %v2558 = vsub.f32 %v2166, %v2362
        %v2559 = vsub.f32 %v2167, %v2363
        %v2560 = vsub.f32 %v2168, %v2364
        %v2561 = vsub.f32 %v2169, %v2365
        %v2562 = vsub.f32 %v2170, %v2366
        %v2563 = vsub.f32 %v2171, %v2367
        %v2564 = vsub.f32 %v2172, %v2368
        %v2565 = vsub.f32 %v2173, %v2369
        %v2566 = vsub.f32 %v2174, %v2370
        %v2567 = vsub.f32 %v2175, %v2371
        %v2568 = vsub.f32 %v2176, %v2372
        %v2569 = vmax.f32 %v2373, 0.0
        %v2570 = vmax.f32 %v2374, 0.0
        %v2571 = vmax.f32 %v2375, 0.0
        %v2572 = vmax.f32 %v2376, 0.0
        %v2573 = vmax.f32 %v2377, 0.0
        %v2574 = vmax.f32 %v2378, 0.0
        %v2575 = vmax.f32 %v2379, 0.0
        %v2576 = vmax.f32 %v2380, 0.0
        %v2577 = vmax.f32 %v2381, 0.0
        %v2578 = vmax.f32 %v2382, 0.0
        %v2579 = vmax.f32 %v2383, 0.0
        %v2580 = vmax.f32 %v2384, 0.0
        %v2581 = vmax.f32 %v2385, 0.0
        %v2582 = vmax.f32 %v2386, 0.0
        %v2583 = vmax.f32 %v2387, 0.0
        %v2584 = vmax.f32 %v2388, 0.0
        %v2585 = vmax.f32 %v2389, 0.0
        %v2586 = vmax.f32 %v2390, 0.0
        %v2587 = vmax.f32 %v2391, 0.0
        %v2588 = vmax.f32 %v2392, 0.0
        %v2589 = vmax.f32 %v2393, 0.0
        %v2590 = vmax.f32 %v2394, 0.0
        %v2591 = vmax.f32 %v2395, 0.0
        %v2592 = vmax.f32 %v2396, 0.0
        %v2593 = vmax.f32 %v2397, 0.0
        %v2594 = vmax.f32 %v2398, 0.0
        %v2595 = vmax.f32 %v2399, 0.0
        %v2596 = vmax.f32 %v2400, 0.0
        %v2597 = vmax.f32 %v2401, 0.0
        %v2598 = vmax.f32 %v2402, 0.0
        %v2599 = vmax.f32 %v2403, 0.0
        %v2600 = vmax.f32 %v2404, 0.0
        %v2601 = vmax.f32 %v2405, 0.0
        %v2602 = vmax.f32 %v2406, 0.0
        %v2603 = vmax.f32 %v2407, 0.0
        %v2604 = vmax.f32 %v2408, 0.0
        %v2605 = vmax.f32 %v2409, 0.0
        %v2606 = vmax.f32 %v2410, 0.0
        %v2607 = vmax.f32 %v2411, 0.0
        %v2608 = vmax.f32 %v2412, 0.0
        %v2609 = vmax.f32 %v2413, 0.0
        %v2610 = vmax.f32 %v2414, 0.0
        %v2611 = vmax.f32 %v2415, 0.0
        %v2612 = vmax.f32 %v2416, 0.0
        %v2613 = vmax.f32 %v2417, 0.0
        %v2614 = vmax.f32 %v2418, 0.0
        %v2615 = vmax.f32 %v2419, 0.0
        %v2616 = vmax.f32 %v2420, 0.0
        %v2617 = vmax.f32 %v2421, 0.0
        %v2618 = vmax.f32 %v2422, 0.0
        %v2619 = vmax.f32 %v2423, 0.0
        %v2620 = vmax.f32 %v2424, 0.0
        %v2621 = vmax.f32 %v2425, 0.0
        %v2622 = vmax.f32 %v2426, 0.0
        %v2623 = vmax.f32 %v2427, 0.0
        %v2624 = vmax.f32 %v2428, 0.0
        %v2625 = vmax.f32 %v2429, 0.0
        %v2626 = vmax.f32 %v2430, 0.0
        %v2627 = vmax.f32 %v2431, 0.0
        %v2628 = vmax.f32 %v2432, 0.0
        %v2629 = vmax.f32 %v2433, 0.0
        %v2630 = vmax.f32 %v2434, 0.0
        %v2631 = vmax.f32 %v2435, 0.0
        %v2632 = vmax.f32 %v2436, 0.0
        %v2633 = vmax.f32 %v2437, 0.0
        %v2634 = vmax.f32 %v2438, 0.0
        %v2635 = vmax.f32 %v2439, 0.0
        %v2636 = vmax.f32 %v2440, 0.0
        %v2637 = vmax.f32 %v2441, 0.0
        %v2638 = vmax.f32 %v2442, 0.0
        %v2639 = vmax.f32 %v2443, 0.0
        %v2640 = vmax.f32 %v2444, 0.0
        %v2641 = vmax.f32 %v2445, 0.0
        %v2642 = vmax.f32 %v2446, 0.0
        %v2643 = vmax.f32 %v2447, 0.0
        %v2644 = vmax.f32 %v2448, 0.0
        %v2645 = vmax.f32 %v2449, 0.0
        %v2646 = vmax.f32 %v2450, 0.0
        %v2647 = vmax.f32 %v2451, 0.0
        %v2648 = vmax.f32 %v2452, 0.0
        %v2649 = vmax.f32 %v2453, 0.0
        %v2650 = vmax.f32 %v2454, 0.0
        %v2651 = vmax.f32 %v2455, 0.0
        %v2652 = vmax.f32 %v2456, 0.0
        %v2653 = vmax.f32 %v2457, 0.0
        %v2654 = vmax.f32 %v2458, 0.0
        %v2655 = vmax.f32 %v2459, 0.0
        %v2656 = vmax.f32 %v2460, 0.0
        %v2657 = vmax.f32 %v2461, 0.0
        %v2658 = vmax.f32 %v2462, 0.0
        %v2659 = vmax.f32 %v2463, 0.0
        %v2660 = vmax.f32 %v2464, 0.0
        %v2661 = vmax.f32 %v2465, 0.0
        %v2662 = vmax.f32 %v2466, 0.0
        %v2663 = vmax.f32 %v2467, 0.0
        %v2664 = vmax.f32 %v2468, 0.0
        %v2665 = vmax.f32 %v2469, 0.0
        %v2666 = vmax.f32 %v2470, 0.0
        %v2667 = vmax.f32 %v2471, 0.0
        %v2668 = vmax.f32 %v2472, 0.0
        %v2669 = vmax.f32 %v2473, 0.0
        %v2670 = vmax.f32 %v2474, 0.0
        %v2671 = vmax.f32 %v2475, 0.0
        %v2672 = vmax.f32 %v2476, 0.0
        %v2673 = vmax.f32 %v2477, 0.0
        %v2674 = vmax.f32 %v2478, 0.0
        %v2675 = vmax.f32 %v2479, 0.0
        %v2676 = vmax.f32 %v2480, 0.0
        %v2677 = vmax.f32 %v2481, 0.0
        %v2678 = vmax.f32 %v2482, 0.0
        %v2679 = vmax.f32 %v2483, 0.0
        %v2680 = vmax.f32 %v2484, 0.0
        %v2681 = vmax.f32 %v2485, 0.0
        %v2682 = vmax.f32 %v2486, 0.0
        %v2683 = vmax.f32 %v2487, 0.0
        %v2684 = vmax.f32 %v2488, 0.0
        %v2685 = vmax.f32 %v2489, 0.0
        %v2686 = vmax.f32 %v2490, 0.0
        %v2687 = vmax.f32 %v2491, 0.0
        %v2688 = vmax.f32 %v2492, 0.0
        %v2689 = vmax.f32 %v2493, 0.0
        %v2690 = vmax.f32 %v2494, 0.0
        %v2691 = vmax.f32 %v2495, 0.0
        %v2692 = vmax.f32 %v2496, 0.0
        %v2693 = vmax.f32 %v2497, 0.0
        %v2694 = vmax.f32 %v2498, 0.0
        %v2695 = vmax.f32 %v2499, 0.0
        %v2696 = vmax.f32 %v2500, 0.0
        %v2697 = vmax.f32 %v2501, 0.0
        %v2698 = vmax.f32 %v2502, 0.0
        %v2699 = vmax.f32 %v2503, 0.0
        %v2700 = vmax.f32 %v2504, 0.0
        %v2701 = vmax.f32 %v2505, 0.0
        %v2702 = vmax.f32 %v2506, 0.0
        %v2703 = vmax.f32 %v2507, 0.0
        %v2704 = vmax.f32 %v2508, 0.0
        %v2705 = vmax.f32 %v2509, 0.0
        %v2706 = vmax.f32 %v2510, 0.0
        %v2707 = vmax.f32 %v2511, 0.0
        %v2708 = vmax.f32 %v2512, 0.0
        %v2709 = vmax.f32 %v2513, 0.0
        %v2710 = vmax.f32 %v2514, 0.0
        %v2711 = vmax.f32 %v2515, 0.0
        %v2712 = vmax.f32 %v2516, 0.0
        %v2713 = vmax.f32 %v2517, 0.0
        %v2714 = vmax.f32 %v2518, 0.0
        %v2715 = vmax.f32 %v2519, 0.0
        %v2716 = vmax.f32 %v2520, 0.0
        %v2717 = vmax.f32 %v2521, 0.0
        %v2718 = vmax.f32 %v2522, 0.0
        %v2719 = vmax.f32 %v2523, 0.0
        %v2720 = vmax.f32 %v2524, 0.0
        %v2721 = vmax.f32 %v2525, 0.0
        %v2722 = vmax.f32 %v2526, 0.0
        %v2723 = vmax.f32 %v2527, 0.0
        %v2724 = vmax.f32 %v2528, 0.0
        %v2725 = vmax.f32 %v2529, 0.0
        %v2726 = vmax.f32 %v2530, 0.0
        %v2727 = vmax.f32 %v2531, 0.0
        %v2728 = vmax.f32 %v2532, 0.0
        %v2729 = vmax.f32 %v2533, 0.0
        %v2730 = vmax.f32 %v2534, 0.0
        %v2731 = vmax.f32 %v2535, 0.0
        %v2732 = vmax.f32 %v2536, 0.0
        %v2733 = vmax.f32 %v2537, 0.0
        %v2734 = vmax.f32 %v2538, 0.0
        %v2735 = vmax.f32 %v2539, 0.0
        %v2736 = vmax.f32 %v2540, 0.0
        %v2737 = vmax.f32 %v2541, 0.0
        %v2738 = vmax.f32 %v2542, 0.0
        %v2739 = vmax.f32 %v2543, 0.0
        %v2740 = vmax.f32 %v2544, 0.0
        %v2741 = vmax.f32 %v2545, 0.0
        %v2742 = vmax.f32 %v2546, 0.0
        %v2743 = vmax.f32 %v2547, 0.0
        %v2744 = vmax.f32 %v2548, 0.0
        %v2745 = vmax.f32 %v2549, 0.0
        %v2746 = vmax.f32 %v2550, 0.0
        %v2747 = vmax.f32 %v2551, 0.0
        %v2748 = vmax.f32 %v2552, 0.0
        %v2749 = vmax.f32 %v2553, 0.0
        %v2750 = vmax.f32 %v2554, 0.0
        %v2751 = vmax.f32 %v2555, 0.0
        %v2752 = vmax.f32 %v2556, 0.0
        %v2753 = vmax.f32 %v2557, 0.0
        %v2754 = vmax.f32 %v2558, 0.0
        %v2755 = vmax.f32 %v2559, 0.0
        %v2756 = vmax.f32 %v2560, 0.0
        %v2757 = vmax.f32 %v2561, 0.0
        %v2758 = vmax.f32 %v2562, 0.0
        %v2759 = vmax.f32 %v2563, 0.0
        %v2760 = vmax.f32 %v2564, 0.0
        %v2761 = vmax.f32 %v2565, 0.0
        %v2762 = vmax.f32 %v2566, 0.0
        %v2763 = vmax.f32 %v2567, 0.0
        %v2764 = vmax.f32 %v2568, 0.0
        %v2765 = vadd.f32 %v2569, 1e-05
        %v2766 = vadd.f32 %v2570, 1e-05
        %v2767 = vadd.f32 %v2571, 1e-05
        %v2768 = vadd.f32 %v2572, 1e-05
        %v2769 = vadd.f32 %v2573, 1e-05
        %v2770 = vadd.f32 %v2574, 1e-05
        %v2771 = vadd.f32 %v2575, 1e-05
        %v2772 = vadd.f32 %v2576, 1e-05
        %v2773 = vadd.f32 %v2577, 1e-05
        %v2774 = vadd.f32 %v2578, 1e-05
        %v2775 = vadd.f32 %v2579, 1e-05
        %v2776 = vadd.f32 %v2580, 1e-05
        %v2777 = vadd.f32 %v2581, 1e-05
        %v2778 = vadd.f32 %v2582, 1e-05
        %v2779 = vadd.f32 %v2583, 1e-05
        %v2780 = vadd.f32 %v2584, 1e-05
        %v2781 = vadd.f32 %v2585, 1e-05
        %v2782 = vadd.f32 %v2586, 1e-05
        %v2783 = vadd.f32 %v2587, 1e-05
        %v2784 = vadd.f32 %v2588, 1e-05
        %v2785 = vadd.f32 %v2589, 1e-05
        %v2786 = vadd.f32 %v2590, 1e-05
        %v2787 = vadd.f32 %v2591, 1e-05
        %v2788 = vadd.f32 %v2592, 1e-05
        %v2789 = vadd.f32 %v2593, 1e-05
        %v2790 = vadd.f32 %v2594, 1e-05
        %v2791 = vadd.f32 %v2595, 1e-05
        %v2792 = vadd.f32 %v2596, 1e-05
        %v2793 = vadd.f32 %v2597, 1e-05
        %v2794 = vadd.f32 %v2598, 1e-05
        %v2795 = vadd.f32 %v2599, 1e-05
        %v2796 = vadd.f32 %v2600, 1e-05
        %v2797 = vadd.f32 %v2601, 1e-05
        %v2798 = vadd.f32 %v2602, 1e-05
        %v2799 = vadd.f32 %v2603, 1e-05
        %v2800 = vadd.f32 %v2604, 1e-05
        %v2801 = vadd.f32 %v2605, 1e-05
        %v2802 = vadd.f32 %v2606, 1e-05
        %v2803 = vadd.f32 %v2607, 1e-05
        %v2804 = vadd.f32 %v2608, 1e-05
        %v2805 = vadd.f32 %v2609, 1e-05
        %v2806 = vadd.f32 %v2610, 1e-05
        %v2807 = vadd.f32 %v2611, 1e-05
        %v2808 = vadd.f32 %v2612, 1e-05
        %v2809 = vadd.f32 %v2613, 1e-05
        %v2810 = vadd.f32 %v2614, 1e-05
        %v2811 = vadd.f32 %v2615, 1e-05
        %v2812 = vadd.f32 %v2616, 1e-05
        %v2813 = vadd.f32 %v2617, 1e-05
        %v2814 = vadd.f32 %v2618, 1e-05
        %v2815 = vadd.f32 %v2619, 1e-05
        %v2816 = vadd.f32 %v2620, 1e-05
        %v2817 = vadd.f32 %v2621, 1e-05
        %v2818 = vadd.f32 %v2622, 1e-05
        %v2819 = vadd.f32 %v2623, 1e-05
        %v2820 = vadd.f32 %v2624, 1e-05
        %v2821 = vadd.f32 %v2625, 1e-05
        %v2822 = vadd.f32 %v2626, 1e-05
        %v2823 = vadd.f32 %v2627, 1e-05
        %v2824 = vadd.f32 %v2628, 1e-05
        %v2825 = vadd.f32 %v2629, 1e-05
        %v2826 = vadd.f32 %v2630, 1e-05
        %v2827 = vadd.f32 %v2631, 1e-05
        %v2828 = vadd.f32 %v2632, 1e-05
        %v2829 = vadd.f32 %v2633, 1e-05
        %v2830 = vadd.f32 %v2634, 1e-05
        %v2831 = vadd.f32 %v2635, 1e-05
        %v2832 = vadd.f32 %v2636, 1e-05
        %v2833 = vadd.f32 %v2637, 1e-05
        %v2834 = vadd.f32 %v2638, 1e-05
        %v2835 = vadd.f32 %v2639, 1e-05
        %v2836 = vadd.f32 %v2640, 1e-05
        %v2837 = vadd.f32 %v2641, 1e-05
        %v2838 = vadd.f32 %v2642, 1e-05
        %v2839 = vadd.f32 %v2643, 1e-05
        %v2840 = vadd.f32 %v2644, 1e-05
        %v2841 = vadd.f32 %v2645, 1e-05
        %v2842 = vadd.f32 %v2646, 1e-05
        %v2843 = vadd.f32 %v2647, 1e-05
        %v2844 = vadd.f32 %v2648, 1e-05
        %v2845 = vadd.f32 %v2649, 1e-05
        %v2846 = vadd.f32 %v2650, 1e-05
        %v2847 = vadd.f32 %v2651, 1e-05
        %v2848 = vadd.f32 %v2652, 1e-05
        %v2849 = vadd.f32 %v2653, 1e-05
        %v2850 = vadd.f32 %v2654, 1e-05
        %v2851 = vadd.f32 %v2655, 1e-05
        %v2852 = vadd.f32 %v2656, 1e-05
        %v2853 = vadd.f32 %v2657, 1e-05
        %v2854 = vadd.f32 %v2658, 1e-05
        %v2855 = vadd.f32 %v2659, 1e-05
        %v2856 = vadd.f32 %v2660, 1e-05
        %v2857 = vadd.f32 %v2661, 1e-05
        %v2858 = vadd.f32 %v2662, 1e-05
        %v2859 = vadd.f32 %v2663, 1e-05
        %v2860 = vadd.f32 %v2664, 1e-05
        %v2861 = vadd.f32 %v2665, 1e-05
        %v2862 = vadd.f32 %v2666, 1e-05
        %v2863 = vadd.f32 %v2667, 1e-05
        %v2864 = vadd.f32 %v2668, 1e-05
        %v2865 = vadd.f32 %v2669, 1e-05
        %v2866 = vadd.f32 %v2670, 1e-05
        %v2867 = vadd.f32 %v2671, 1e-05
        %v2868 = vadd.f32 %v2672, 1e-05
        %v2869 = vadd.f32 %v2673, 1e-05
        %v2870 = vadd.f32 %v2674, 1e-05
        %v2871 = vadd.f32 %v2675, 1e-05
        %v2872 = vadd.f32 %v2676, 1e-05
        %v2873 = vadd.f32 %v2677, 1e-05
        %v2874 = vadd.f32 %v2678, 1e-05
        %v2875 = vadd.f32 %v2679, 1e-05
        %v2876 = vadd.f32 %v2680, 1e-05
        %v2877 = vadd.f32 %v2681, 1e-05
        %v2878 = vadd.f32 %v2682, 1e-05
        %v2879 = vadd.f32 %v2683, 1e-05
        %v2880 = vadd.f32 %v2684, 1e-05
        %v2881 = vadd.f32 %v2685, 1e-05
        %v2882 = vadd.f32 %v2686, 1e-05
        %v2883 = vadd.f32 %v2687, 1e-05
        %v2884 = vadd.f32 %v2688, 1e-05
        %v2885 = vadd.f32 %v2689, 1e-05
        %v2886 = vadd.f32 %v2690, 1e-05
        %v2887 = vadd.f32 %v2691, 1e-05
        %v2888 = vadd.f32 %v2692, 1e-05
        %v2889 = vadd.f32 %v2693, 1e-05
        %v2890 = vadd.f32 %v2694, 1e-05
        %v2891 = vadd.f32 %v2695, 1e-05
        %v2892 = vadd.f32 %v2696, 1e-05
        %v2893 = vadd.f32 %v2697, 1e-05
        %v2894 = vadd.f32 %v2698, 1e-05
        %v2895 = vadd.f32 %v2699, 1e-05
        %v2896 = vadd.f32 %v2700, 1e-05
        %v2897 = vadd.f32 %v2701, 1e-05
        %v2898 = vadd.f32 %v2702, 1e-05
        %v2899 = vadd.f32 %v2703, 1e-05
        %v2900 = vadd.f32 %v2704, 1e-05
        %v2901 = vadd.f32 %v2705, 1e-05
        %v2902 = vadd.f32 %v2706, 1e-05
        %v2903 = vadd.f32 %v2707, 1e-05
        %v2904 = vadd.f32 %v2708, 1e-05
        %v2905 = vadd.f32 %v2709, 1e-05
        %v2906 = vadd.f32 %v2710, 1e-05
        %v2907 = vadd.f32 %v2711, 1e-05
        %v2908 = vadd.f32 %v2712, 1e-05
        %v2909 = vadd.f32 %v2713, 1e-05
        %v2910 = vadd.f32 %v2714, 1e-05
        %v2911 = vadd.f32 %v2715, 1e-05
        %v2912 = vadd.f32 %v2716, 1e-05
        %v2913 = vadd.f32 %v2717, 1e-05
        %v2914 = vadd.f32 %v2718, 1e-05
        %v2915 = vadd.f32 %v2719, 1e-05
        %v2916 = vadd.f32 %v2720, 1e-05
        %v2917 = vadd.f32 %v2721, 1e-05
        %v2918 = vadd.f32 %v2722, 1e-05
        %v2919 = vadd.f32 %v2723, 1e-05
        %v2920 = vadd.f32 %v2724, 1e-05
        %v2921 = vadd.f32 %v2725, 1e-05
        %v2922 = vadd.f32 %v2726, 1e-05
        %v2923 = vadd.f32 %v2727, 1e-05
        %v2924 = vadd.f32 %v2728, 1e-05
        %v2925 = vadd.f32 %v2729, 1e-05
        %v2926 = vadd.f32 %v2730, 1e-05
        %v2927 = vadd.f32 %v2731, 1e-05
        %v2928 = vadd.f32 %v2732, 1e-05
        %v2929 = vadd.f32 %v2733, 1e-05
        %v2930 = vadd.f32 %v2734, 1e-05
        %v2931 = vadd.f32 %v2735, 1e-05
        %v2932 = vadd.f32 %v2736, 1e-05
        %v2933 = vadd.f32 %v2737, 1e-05
        %v2934 = vadd.f32 %v2738, 1e-05
        %v2935 = vadd.f32 %v2739, 1e-05
        %v2936 = vadd.f32 %v2740, 1e-05
        %v2937 = vadd.f32 %v2741, 1e-05
        %v2938 = vadd.f32 %v2742, 1e-05
        %v2939 = vadd.f32 %v2743, 1e-05
        %v2940 = vadd.f32 %v2744, 1e-05
        %v2941 = vadd.f32 %v2745, 1e-05
        %v2942 = vadd.f32 %v2746, 1e-05
        %v2943 = vadd.f32 %v2747, 1e-05
        %v2944 = vadd.f32 %v2748, 1e-05
        %v2945 = vadd.f32 %v2749, 1e-05
        %v2946 = vadd.f32 %v2750, 1e-05
        %v2947 = vadd.f32 %v2751, 1e-05
        %v2948 = vadd.f32 %v2752, 1e-05
        %v2949 = vadd.f32 %v2753, 1e-05
        %v2950 = vadd.f32 %v2754, 1e-05
        %v2951 = vadd.f32 %v2755, 1e-05
        %v2952 = vadd.f32 %v2756, 1e-05
        %v2953 = vadd.f32 %v2757, 1e-05
        %v2954 = vadd.f32 %v2758, 1e-05
        %v2955 = vadd.f32 %v2759, 1e-05
        %v2956 = vadd.f32 %v2760, 1e-05
        %v2957 = vadd.f32 %v2761, 1e-05
        %v2958 = vadd.f32 %v2762, 1e-05
        %v2959 = vadd.f32 %v2763, 1e-05
        %v2960 = vadd.f32 %v2764, 1e-05
        %v2961 = vrsqrt.pop %v2765
        %v2962 = vrsqrt.pop %v2766
        %v2963 = vrsqrt.pop %v2767
        %v2964 = vrsqrt.pop %v2768
        %v2965 = vrsqrt.pop %v2769
        %v2966 = vrsqrt.pop %v2770
        %v2967 = vrsqrt.pop %v2771
        %v2968 = vrsqrt.pop %v2772
        %v2969 = vrsqrt.pop %v2773
        %v2970 = vrsqrt.pop %v2774
        %v2971 = vrsqrt.pop %v2775
        %v2972 = vrsqrt.pop %v2776
        %v2973 = vrsqrt.pop %v2777
        %v2974 = vrsqrt.pop %v2778
        %v2975 = vrsqrt.pop %v2779
        %v2976 = vrsqrt.pop %v2780
        %v2977 = vrsqrt.pop %v2781
        %v2978 = vrsqrt.pop %v2782
        %v2979 = vrsqrt.pop %v2783
        %v2980 = vrsqrt.pop %v2784
        %v2981 = vrsqrt.pop %v2785
        %v2982 = vrsqrt.pop %v2786
        %v2983 = vrsqrt.pop %v2787
        %v2984 = vrsqrt.pop %v2788
        %v2985 = vrsqrt.pop %v2789
        %v2986 = vrsqrt.pop %v2790
        %v2987 = vrsqrt.pop %v2791
        %v2988 = vrsqrt.pop %v2792
        %v2989 = vrsqrt.pop %v2793
        %v2990 = vrsqrt.pop %v2794
        %v2991 = vrsqrt.pop %v2795
        %v2992 = vrsqrt.pop %v2796
        %v2993 = vrsqrt.pop %v2797
        %v2994 = vrsqrt.pop %v2798
        %v2995 = vrsqrt.pop %v2799
        %v2996 = vrsqrt.pop %v2800
        %v2997 = vrsqrt.pop %v2801
        %v2998 = vrsqrt.pop %v2802
        %v2999 = vrsqrt.pop %v2803
        %v3000 = vrsqrt.pop %v2804
        %v3001 = vrsqrt.pop %v2805
        %v3002 = vrsqrt.pop %v2806
        %v3003 = vrsqrt.pop %v2807
        %v3004 = vrsqrt.pop %v2808
        %v3005 = vrsqrt.pop %v2809
        %v3006 = vrsqrt.pop %v2810
        %v3007 = vrsqrt.pop %v2811
        %v3008 = vrsqrt.pop %v2812
        %v3009 = vrsqrt.pop %v2813
        %v3010 = vrsqrt.pop %v2814
        %v3011 = vrsqrt.pop %v2815
        %v3012 = vrsqrt.pop %v2816
        %v3013 = vrsqrt.pop %v2817
        %v3014 = vrsqrt.pop %v2818
        %v3015 = vrsqrt.pop %v2819
        %v3016 = vrsqrt.pop %v2820
        %v3017 = vrsqrt.pop %v2821
        %v3018 = vrsqrt.pop %v2822
        %v3019 = vrsqrt.pop %v2823
        %v3020 = vrsqrt.pop %v2824
        %v3021 = vrsqrt.pop %v2825
        %v3022 = vrsqrt.pop %v2826
        %v3023 = vrsqrt.pop %v2827
        %v3024 = vrsqrt.pop %v2828
        %v3025 = vrsqrt.pop %v2829
        %v3026 = vrsqrt.pop %v2830
        %v3027 = vrsqrt.pop %v2831
        %v3028 = vrsqrt.pop %v2832
        %v3029 = vrsqrt.pop %v2833
        %v3030 = vrsqrt.pop %v2834
        %v3031 = vrsqrt.pop %v2835
        %v3032 = vrsqrt.pop %v2836
        %v3033 = vrsqrt.pop %v2837
        %v3034 = vrsqrt.pop %v2838
        %v3035 = vrsqrt.pop %v2839
        %v3036 = vrsqrt.pop %v2840
        %v3037 = vrsqrt.pop %v2841
        %v3038 = vrsqrt.pop %v2842
        %v3039 = vrsqrt.pop %v2843
        %v3040 = vrsqrt.pop %v2844
        %v3041 = vrsqrt.pop %v2845
        %v3042 = vrsqrt.pop %v2846
        %v3043 = vrsqrt.pop %v2847
        %v3044 = vrsqrt.pop %v2848
        %v3045 = vrsqrt.pop %v2849
        %v3046 = vrsqrt.pop %v2850
        %v3047 = vrsqrt.pop %v2851
        %v3048 = vrsqrt.pop %v2852
        %v3049 = vrsqrt.pop %v2853
        %v3050 = vrsqrt.pop %v2854
        %v3051 = vrsqrt.pop %v2855
        %v3052 = vrsqrt.pop %v2856
        %v3053 = vrsqrt.pop %v2857
        %v3054 = vrsqrt.pop %v2858
        %v3055 = vrsqrt.pop %v2859
        %v3056 = vrsqrt.pop %v2860
        %v3057 = vrsqrt.pop %v2861
        %v3058 = vrsqrt.pop %v2862
        %v3059 = vrsqrt.pop %v2863
        %v3060 = vrsqrt.pop %v2864
        %v3061 = vrsqrt.pop %v2865
        %v3062 = vrsqrt.pop %v2866
        %v3063 = vrsqrt.pop %v2867
        %v3064 = vrsqrt.pop %v2868
        %v3065 = vrsqrt.pop %v2869
        %v3066 = vrsqrt.pop %v2870
        %v3067 = vrsqrt.pop %v2871
        %v3068 = vrsqrt.pop %v2872
        %v3069 = vrsqrt.pop %v2873
        %v3070 = vrsqrt.pop %v2874
        %v3071 = vrsqrt.pop %v2875
        %v3072 = vrsqrt.pop %v2876
        %v3073 = vrsqrt.pop %v2877
        %v3074 = vrsqrt.pop %v2878
        %v3075 = vrsqrt.pop %v2879
        %v3076 = vrsqrt.pop %v2880
        %v3077 = vrsqrt.pop %v2881
        %v3078 = vrsqrt.pop %v2882
        %v3079 = vrsqrt.pop %v2883
        %v3080 = vrsqrt.pop %v2884
        %v3081 = vrsqrt.pop %v2885
        %v3082 = vrsqrt.pop %v2886
        %v3083 = vrsqrt.pop %v2887
        %v3084 = vrsqrt.pop %v2888
        %v3085 = vrsqrt.pop %v2889
        %v3086 = vrsqrt.pop %v2890
        %v3087 = vrsqrt.pop %v2891
        %v3088 = vrsqrt.pop %v2892
        %v3089 = vrsqrt.pop %v2893
        %v3090 = vrsqrt.pop %v2894
        %v3091 = vrsqrt.pop %v2895
        %v3092 = vrsqrt.pop %v2896
        %v3093 = vrsqrt.pop %v2897
        %v3094 = vrsqrt.pop %v2898
        %v3095 = vrsqrt.pop %v2899
        %v3096 = vrsqrt.pop %v2900
        %v3097 = vrsqrt.pop %v2901
        %v3098 = vrsqrt.pop %v2902
        %v3099 = vrsqrt.pop %v2903
        %v3100 = vrsqrt.pop %v2904
        %v3101 = vrsqrt.pop %v2905
        %v3102 = vrsqrt.pop %v2906
        %v3103 = vrsqrt.pop %v2907
        %v3104 = vrsqrt.pop %v2908
        %v3105 = vrsqrt.pop %v2909
        %v3106 = vrsqrt.pop %v2910
        %v3107 = vrsqrt.pop %v2911
        %v3108 = vrsqrt.pop %v2912
        %v3109 = vrsqrt.pop %v2913
        %v3110 = vrsqrt.pop %v2914
        %v3111 = vrsqrt.pop %v2915
        %v3112 = vrsqrt.pop %v2916
        %v3113 = vrsqrt.pop %v2917
        %v3114 = vrsqrt.pop %v2918
        %v3115 = vrsqrt.pop %v2919
        %v3116 = vrsqrt.pop %v2920
        %v3117 = vrsqrt.pop %v2921
        %v3118 = vrsqrt.pop %v2922
        %v3119 = vrsqrt.pop %v2923
        %v3120 = vrsqrt.pop %v2924
        %v3121 = vrsqrt.pop %v2925
        %v3122 = vrsqrt.pop %v2926
        %v3123 = vrsqrt.pop %v2927
        %v3124 = vrsqrt.pop %v2928
        %v3125 = vrsqrt.pop %v2929
        %v3126 = vrsqrt.pop %v2930
        %v3127 = vrsqrt.pop %v2931
        %v3128 = vrsqrt.pop %v2932
        %v3129 = vrsqrt.pop %v2933
        %v3130 = vrsqrt.pop %v2934
        %v3131 = vrsqrt.pop %v2935
        %v3132 = vrsqrt.pop %v2936
        %v3133 = vrsqrt.pop %v2937
        %v3134 = vrsqrt.pop %v2938
        %v3135 = vrsqrt.pop %v2939
        %v3136 = vrsqrt.pop %v2940
        %v3137 = vrsqrt.pop %v2941
        %v3138 = vrsqrt.pop %v2942
        %v3139 = vrsqrt.pop %v2943
        %v3140 = vrsqrt.pop %v2944
        %v3141 = vrsqrt.pop %v2945
        %v3142 = vrsqrt.pop %v2946
        %v3143 = vrsqrt.pop %v2947
        %v3144 = vrsqrt.pop %v2948
        %v3145 = vrsqrt.pop %v2949
        %v3146 = vrsqrt.pop %v2950
        %v3147 = vrsqrt.pop %v2951
        %v3148 = vrsqrt.pop %v2952
        %v3149 = vrsqrt.pop %v2953
        %v3150 = vrsqrt.pop %v2954
        %v3151 = vrsqrt.pop %v2955
        %v3152 = vrsqrt.pop %v2956
        %v3153 = vrsqrt.pop %v2957
        %v3154 = vrsqrt.pop %v2958
        %v3155 = vrsqrt.pop %v2959
        %v3156 = vrsqrt.pop %v2960
        %v3157 = vld [vmem:[#allocation5] sm:$0x1]
        %v3158 = vld [vmem:[#allocation7] sm:$0x1]
        %v3159 = vsub.f32 %v216, %v1785
        %v3160 = vsub.f32 %v217, %v1786
        %v3161 = vsub.f32 %v218, %v1787
        %v3162 = vsub.f32 %v219, %v1788
        %v3163 = vsub.f32 %v220, %v1789
        %v3164 = vsub.f32 %v221, %v1790
        %v3165 = vsub.f32 %v222, %v1791
        %v3166 = vsub.f32 %v223, %v1792
        %v3167 = vsub.f32 %v224, %v1793
        %v3168 = vsub.f32 %v225, %v1794
        %v3169 = vsub.f32 %v226, %v1795
        %v3170 = vsub.f32 %v227, %v1796
        %v3171 = vsub.f32 %v228, %v1797
        %v3172 = vsub.f32 %v229, %v1798
        %v3173 = vsub.f32 %v230, %v1799
        %v3174 = vsub.f32 %v231, %v1800
        %v3175 = vsub.f32 %v232, %v1801
        %v3176 = vsub.f32 %v233, %v1802
        %v3177 = vsub.f32 %v234, %v1803
        %v3178 = vsub.f32 %v235, %v1804
        %v3179 = vsub.f32 %v236, %v1805
        %v3180 = vsub.f32 %v237, %v1806
        %v3181 = vsub.f32 %v238, %v1807
        %v3182 = vsub.f32 %v239, %v1808
        %v3183 = vsub.f32 %v240, %v1809
        %v3184 = vsub.f32 %v241, %v1810
        %v3185 = vsub.f32 %v242, %v1811
        %v3186 = vsub.f32 %v243, %v1812
        %v3187 = vsub.f32 %v244, %v1813
        %v3188 = vsub.f32 %v245, %v1814
        %v3189 = vsub.f32 %v246, %v1815
        %v3190 = vsub.f32 %v247, %v1816
        %v3191 = vsub.f32 %v248, %v1817
        %v3192 = vsub.f32 %v249, %v1818
        %v3193 = vsub.f32 %v250, %v1819
        %v3194 = vsub.f32 %v251, %v1820
        %v3195 = vsub.f32 %v252, %v1821
        %v3196 = vsub.f32 %v253, %v1822
        %v3197 = vsub.f32 %v254, %v1823
        %v3198 = vsub.f32 %v255, %v1824
        %v3199 = vsub.f32 %v256, %v1825
        %v3200 = vsub.f32 %v257, %v1826
        %v3201 = vsub.f32 %v258, %v1827
        %v3202 = vsub.f32 %v259, %v1828
        %v3203 = vsub.f32 %v260, %v1829
        %v3204 = vsub.f32 %v261, %v1830
        %v3205 = vsub.f32 %v262, %v1831
        %v3206 = vsub.f32 %v263, %v1832
        %v3207 = vsub.f32 %v264, %v1833
        %v3208 = vsub.f32 %v265, %v1834
        %v3209 = vsub.f32 %v266, %v1835
        %v3210 = vsub.f32 %v267, %v1836
        %v3211 = vsub.f32 %v268, %v1837
        %v3212 = vsub.f32 %v269, %v1838
        %v3213 = vsub.f32 %v270, %v1839
        %v3214 = vsub.f32 %v271, %v1840
        %v3215 = vsub.f32 %v272, %v1841
        %v3216 = vsub.f32 %v273, %v1842
        %v3217 = vsub.f32 %v274, %v1843
        %v3218 = vsub.f32 %v275, %v1844
        %v3219 = vsub.f32 %v276, %v1845
        %v3220 = vsub.f32 %v277, %v1846
        %v3221 = vsub.f32 %v278, %v1847
        %v3222 = vsub.f32 %v279, %v1848
        %v3223 = vsub.f32 %v280, %v1849
        %v3224 = vsub.f32 %v281, %v1850
        %v3225 = vsub.f32 %v282, %v1851
        %v3226 = vsub.f32 %v283, %v1852
        %v3227 = vsub.f32 %v284, %v1853
        %v3228 = vsub.f32 %v285, %v1854
        %v3229 = vsub.f32 %v286, %v1855
        %v3230 = vsub.f32 %v287, %v1856
        %v3231 = vsub.f32 %v288, %v1857
        %v3232 = vsub.f32 %v289, %v1858
        %v3233 = vsub.f32 %v290, %v1859
        %v3234 = vsub.f32 %v291, %v1860
        %v3235 = vsub.f32 %v292, %v1861
        %v3236 = vsub.f32 %v293, %v1862
        %v3237 = vsub.f32 %v294, %v1863
        %v3238 = vsub.f32 %v295, %v1864
        %v3239 = vsub.f32 %v296, %v1865
        %v3240 = vsub.f32 %v297, %v1866
        %v3241 = vsub.f32 %v298, %v1867
        %v3242 = vsub.f32 %v299, %v1868
        %v3243 = vsub.f32 %v300, %v1869
        %v3244 = vsub.f32 %v301, %v1870
        %v3245 = vsub.f32 %v302, %v1871
        %v3246 = vsub.f32 %v303, %v1872
        %v3247 = vsub.f32 %v304, %v1873
        %v3248 = vsub.f32 %v305, %v1874
        %v3249 = vsub.f32 %v306, %v1875
        %v3250 = vsub.f32 %v307, %v1876
        %v3251 = vsub.f32 %v308, %v1877
        %v3252 = vsub.f32 %v309, %v1878
        %v3253 = vsub.f32 %v310, %v1879
        %v3254 = vsub.f32 %v311, %v1880
        %v3255 = vsub.f32 %v312, %v1881
        %v3256 = vsub.f32 %v313, %v1882
        %v3257 = vsub.f32 %v314, %v1883
        %v3258 = vsub.f32 %v315, %v1884
        %v3259 = vsub.f32 %v316, %v1885
        %v3260 = vsub.f32 %v317, %v1886
        %v3261 = vsub.f32 %v318, %v1887
        %v3262 = vsub.f32 %v319, %v1888
        %v3263 = vsub.f32 %v320, %v1889
        %v3264 = vsub.f32 %v321, %v1890
        %v3265 = vsub.f32 %v322, %v1891
        %v3266 = vsub.f32 %v323, %v1892
        %v3267 = vsub.f32 %v324, %v1893
        %v3268 = vsub.f32 %v325, %v1894
        %v3269 = vsub.f32 %v326, %v1895
        %v3270 = vsub.f32 %v327, %v1896
        %v3271 = vsub.f32 %v328, %v1897
        %v3272 = vsub.f32 %v329, %v1898
        %v3273 = vsub.f32 %v330, %v1899
        %v3274 = vsub.f32 %v331, %v1900
        %v3275 = vsub.f32 %v332, %v1901
        %v3276 = vsub.f32 %v333, %v1902
        %v3277 = vsub.f32 %v334, %v1903
        %v3278 = vsub.f32 %v335, %v1904
        %v3279 = vsub.f32 %v336, %v1905
        %v3280 = vsub.f32 %v337, %v1906
        %v3281 = vsub.f32 %v338, %v1907
        %v3282 = vsub.f32 %v339, %v1908
        %v3283 = vsub.f32 %v340, %v1909
        %v3284 = vsub.f32 %v341, %v1910
        %v3285 = vsub.f32 %v342, %v1911
        %v3286 = vsub.f32 %v343, %v1912
        %v3287 = vsub.f32 %v344, %v1913
        %v3288 = vsub.f32 %v345, %v1914
        %v3289 = vsub.f32 %v346, %v1915
        %v3290 = vsub.f32 %v347, %v1916
        %v3291 = vsub.f32 %v348, %v1917
        %v3292 = vsub.f32 %v349, %v1918
        %v3293 = vsub.f32 %v350, %v1919
        %v3294 = vsub.f32 %v351, %v1920
        %v3295 = vsub.f32 %v352, %v1921
        %v3296 = vsub.f32 %v353, %v1922
        %v3297 = vsub.f32 %v354, %v1923
        %v3298 = vsub.f32 %v355, %v1924
        %v3299 = vsub.f32 %v356, %v1925
        %v3300 = vsub.f32 %v357, %v1926
        %v3301 = vsub.f32 %v358, %v1927
        %v3302 = vsub.f32 %v359, %v1928
        %v3303 = vsub.f32 %v360, %v1929
        %v3304 = vsub.f32 %v361, %v1930
        %v3305 = vsub.f32 %v362, %v1931
        %v3306 = vsub.f32 %v363, %v1932
        %v3307 = vsub.f32 %v364, %v1933
        %v3308 = vsub.f32 %v365, %v1934
        %v3309 = vsub.f32 %v366, %v1935
        %v3310 = vsub.f32 %v367, %v1936
        %v3311 = vsub.f32 %v368, %v1937
        %v3312 = vsub.f32 %v369, %v1938
        %v3313 = vsub.f32 %v370, %v1939
        %v3314 = vsub.f32 %v371, %v1940
        %v3315 = vsub.f32 %v372, %v1941
        %v3316 = vsub.f32 %v373, %v1942
        %v3317 = vsub.f32 %v374, %v1943
        %v3318 = vsub.f32 %v375, %v1944
        %v3319 = vsub.f32 %v376, %v1945
        %v3320 = vsub.f32 %v377, %v1946
        %v3321 = vsub.f32 %v378, %v1947
        %v3322 = vsub.f32 %v379, %v1948
        %v3323 = vsub.f32 %v380, %v1949
        %v3324 = vsub.f32 %v381, %v1950
        %v3325 = vsub.f32 %v382, %v1951
        %v3326 = vsub.f32 %v383, %v1952
        %v3327 = vsub.f32 %v384, %v1953
        %v3328 = vsub.f32 %v385, %v1954
        %v3329 = vsub.f32 %v386, %v1955
        %v3330 = vsub.f32 %v387, %v1956
        %v3331 = vsub.f32 %v388, %v1957
        %v3332 = vsub.f32 %v389, %v1958
        %v3333 = vsub.f32 %v390, %v1959
        %v3334 = vsub.f32 %v391, %v1960
        %v3335 = vsub.f32 %v392, %v1961
        %v3336 = vsub.f32 %v393, %v1962
        %v3337 = vsub.f32 %v394, %v1963
        %v3338 = vsub.f32 %v395, %v1964
        %v3339 = vsub.f32 %v396, %v1965
        %v3340 = vsub.f32 %v397, %v1966
        %v3341 = vsub.f32 %v398, %v1967
        %v3342 = vsub.f32 %v399, %v1968
        %v3343 = vsub.f32 %v400, %v1969
        %v3344 = vsub.f32 %v401, %v1970
        %v3345 = vsub.f32 %v402, %v1971
        %v3346 = vsub.f32 %v403, %v1972
        %v3347 = vsub.f32 %v404, %v1973
        %v3348 = vsub.f32 %v405, %v1974
        %v3349 = vsub.f32 %v406, %v1975
        %v3350 = vsub.f32 %v407, %v1976
        %v3351 = vsub.f32 %v408, %v1977
        %v3352 = vsub.f32 %v409, %v1978
        %v3353 = vsub.f32 %v410, %v1979
        %v3354 = vsub.f32 %v411, %v1980
        %v3355 = vmul.f32 %v3159, %v2961
        %v3356 = vmul.f32 %v3160, %v2962
        %v3357 = vmul.f32 %v3161, %v2963
        %v3358 = vmul.f32 %v3162, %v2964
        %v3359 = vmul.f32 %v3163, %v2965
        %v3360 = vmul.f32 %v3164, %v2966
        %v3361 = vmul.f32 %v3165, %v2967
        %v3362 = vmul.f32 %v3166, %v2968
        %v3363 = vmul.f32 %v3167, %v2969
        %v3364 = vmul.f32 %v3168, %v2970
        %v3365 = vmul.f32 %v3169, %v2971
        %v3366 = vmul.f32 %v3170, %v2972
        %v3367 = vmul.f32 %v3171, %v2973
        %v3368 = vmul.f32 %v3172, %v2974
        %v3369 = vmul.f32 %v3173, %v2975
        %v3370 = vmul.f32 %v3174, %v2976
        %v3371 = vmul.f32 %v3175, %v2977
        %v3372 = vmul.f32 %v3176, %v2978
        %v3373 = vmul.f32 %v3177, %v2979
        %v3374 = vmul.f32 %v3178, %v2980
        %v3375 = vmul.f32 %v3179, %v2981
        %v3376 = vmul.f32 %v3180, %v2982
        %v3377 = vmul.f32 %v3181, %v2983
        %v3378 = vmul.f32 %v3182, %v2984
        %v3379 = vmul.f32 %v3183, %v2985
        %v3380 = vmul.f32 %v3184, %v2986
        %v3381 = vmul.f32 %v3185, %v2987
        %v3382 = vmul.f32 %v3186, %v2988
        %v3383 = vmul.f32 %v3187, %v2989
        %v3384 = vmul.f32 %v3188, %v2990
        %v3385 = vmul.f32 %v3189, %v2991
        %v3386 = vmul.f32 %v3190, %v2992
        %v3387 = vmul.f32 %v3191, %v2993
        %v3388 = vmul.f32 %v3192, %v2994
        %v3389 = vmul.f32 %v3193, %v2995
        %v3390 = vmul.f32 %v3194, %v2996
        %v3391 = vmul.f32 %v3195, %v2997
        %v3392 = vmul.f32 %v3196, %v2998
        %v3393 = vmul.f32 %v3197, %v2999
        %v3394 = vmul.f32 %v3198, %v3000
        %v3395 = vmul.f32 %v3199, %v3001
        %v3396 = vmul.f32 %v3200, %v3002
        %v3397 = vmul.f32 %v3201, %v3003
        %v3398 = vmul.f32 %v3202, %v3004
        %v3399 = vmul.f32 %v3203, %v3005
        %v3400 = vmul.f32 %v3204, %v3006
        %v3401 = vmul.f32 %v3205, %v3007
        %v3402 = vmul.f32 %v3206, %v3008
        %v3403 = vmul.f32 %v3207, %v3009
        %v3404 = vmul.f32 %v3208, %v3010
        %v3405 = vmul.f32 %v3209, %v3011
        %v3406 = vmul.f32 %v3210, %v3012
        %v3407 = vmul.f32 %v3211, %v3013
        %v3408 = vmul.f32 %v3212, %v3014
        %v3409 = vmul.f32 %v3213, %v3015
        %v3410 = vmul.f32 %v3214, %v3016
        %v3411 = vmul.f32 %v3215, %v3017
        %v3412 = vmul.f32 %v3216, %v3018
        %v3413 = vmul.f32 %v3217, %v3019
        %v3414 = vmul.f32 %v3218, %v3020
        %v3415 = vmul.f32 %v3219, %v3021
        %v3416 = vmul.f32 %v3220, %v3022
        %v3417 = vmul.f32 %v3221, %v3023
        %v3418 = vmul.f32 %v3222, %v3024
        %v3419 = vmul.f32 %v3223, %v3025
        %v3420 = vmul.f32 %v3224, %v3026
        %v3421 = vmul.f32 %v3225, %v3027
        %v3422 = vmul.f32 %v3226, %v3028
        %v3423 = vmul.f32 %v3227, %v3029
        %v3424 = vmul.f32 %v3228, %v3030
        %v3425 = vmul.f32 %v3229, %v3031
        %v3426 = vmul.f32 %v3230, %v3032
        %v3427 = vmul.f32 %v3231, %v3033
        %v3428 = vmul.f32 %v3232, %v3034
        %v3429 = vmul.f32 %v3233, %v3035
        %v3430 = vmul.f32 %v3234, %v3036
        %v3431 = vmul.f32 %v3235, %v3037
        %v3432 = vmul.f32 %v3236, %v3038
        %v3433 = vmul.f32 %v3237, %v3039
        %v3434 = vmul.f32 %v3238, %v3040
        %v3435 = vmul.f32 %v3239, %v3041
        %v3436 = vmul.f32 %v3240, %v3042
        %v3437 = vmul.f32 %v3241, %v3043
        %v3438 = vmul.f32 %v3242, %v3044
        %v3439 = vmul.f32 %v3243, %v3045
        %v3440 = vmul.f32 %v3244, %v3046
        %v3441 = vmul.f32 %v3245, %v3047
        %v3442 = vmul.f32 %v3246, %v3048
        %v3443 = vmul.f32 %v3247, %v3049
        %v3444 = vmul.f32 %v3248, %v3050
        %v3445 = vmul.f32 %v3249, %v3051
        %v3446 = vmul.f32 %v3250, %v3052
        %v3447 = vmul.f32 %v3251, %v3053
        %v3448 = vmul.f32 %v3252, %v3054
        %v3449 = vmul.f32 %v3253, %v3055
        %v3450 = vmul.f32 %v3254, %v3056
        %v3451 = vmul.f32 %v3255, %v3057
        %v3452 = vmul.f32 %v3256, %v3058
        %v3453 = vmul.f32 %v3257, %v3059
        %v3454 = vmul.f32 %v3258, %v3060
        %v3455 = vmul.f32 %v3259, %v3061
        %v3456 = vmul.f32 %v3260, %v3062
        %v3457 = vmul.f32 %v3261, %v3063
        %v3458 = vmul.f32 %v3262, %v3064
        %v3459 = vmul.f32 %v3263, %v3065
        %v3460 = vmul.f32 %v3264, %v3066
        %v3461 = vmul.f32 %v3265, %v3067
        %v3462 = vmul.f32 %v3266, %v3068
        %v3463 = vmul.f32 %v3267, %v3069
        %v3464 = vmul.f32 %v3268, %v3070
        %v3465 = vmul.f32 %v3269, %v3071
        %v3466 = vmul.f32 %v3270, %v3072
        %v3467 = vmul.f32 %v3271, %v3073
        %v3468 = vmul.f32 %v3272, %v3074
        %v3469 = vmul.f32 %v3273, %v3075
        %v3470 = vmul.f32 %v3274, %v3076
        %v3471 = vmul.f32 %v3275, %v3077
        %v3472 = vmul.f32 %v3276, %v3078
        %v3473 = vmul.f32 %v3277, %v3079
        %v3474 = vmul.f32 %v3278, %v3080
        %v3475 = vmul.f32 %v3279, %v3081
        %v3476 = vmul.f32 %v3280, %v3082
        %v3477 = vmul.f32 %v3281, %v3083
        %v3478 = vmul.f32 %v3282, %v3084
        %v3479 = vmul.f32 %v3283, %v3085
        %v3480 = vmul.f32 %v3284, %v3086
        %v3481 = vmul.f32 %v3285, %v3087
        %v3482 = vmul.f32 %v3286, %v3088
        %v3483 = vmul.f32 %v3287, %v3089
        %v3484 = vmul.f32 %v3288, %v3090
        %v3485 = vmul.f32 %v3289, %v3091
        %v3486 = vmul.f32 %v3290, %v3092
        %v3487 = vmul.f32 %v3291, %v3093
        %v3488 = vmul.f32 %v3292, %v3094
        %v3489 = vmul.f32 %v3293, %v3095
        %v3490 = vmul.f32 %v3294, %v3096
        %v3491 = vmul.f32 %v3295, %v3097
        %v3492 = vmul.f32 %v3296, %v3098
        %v3493 = vmul.f32 %v3297, %v3099
        %v3494 = vmul.f32 %v3298, %v3100
        %v3495 = vmul.f32 %v3299, %v3101
        %v3496 = vmul.f32 %v3300, %v3102
        %v3497 = vmul.f32 %v3301, %v3103
        %v3498 = vmul.f32 %v3302, %v3104
        %v3499 = vmul.f32 %v3303, %v3105
        %v3500 = vmul.f32 %v3304, %v3106
        %v3501 = vmul.f32 %v3305, %v3107
        %v3502 = vmul.f32 %v3306, %v3108
        %v3503 = vmul.f32 %v3307, %v3109
        %v3504 = vmul.f32 %v3308, %v3110
        %v3505 = vmul.f32 %v3309, %v3111
        %v3506 = vmul.f32 %v3310, %v3112
        %v3507 = vmul.f32 %v3311, %v3113
        %v3508 = vmul.f32 %v3312, %v3114
        %v3509 = vmul.f32 %v3313, %v3115
        %v3510 = vmul.f32 %v3314, %v3116
        %v3511 = vmul.f32 %v3315, %v3117
        %v3512 = vmul.f32 %v3316, %v3118
        %v3513 = vmul.f32 %v3317, %v3119
        %v3514 = vmul.f32 %v3318, %v3120
        %v3515 = vmul.f32 %v3319, %v3121
        %v3516 = vmul.f32 %v3320, %v3122
        %v3517 = vmul.f32 %v3321, %v3123
        %v3518 = vmul.f32 %v3322, %v3124
        %v3519 = vmul.f32 %v3323, %v3125
        %v3520 = vmul.f32 %v3324, %v3126
        %v3521 = vmul.f32 %v3325, %v3127
        %v3522 = vmul.f32 %v3326, %v3128
        %v3523 = vmul.f32 %v3327, %v3129
        %v3524 = vmul.f32 %v3328, %v3130
        %v3525 = vmul.f32 %v3329, %v3131
        %v3526 = vmul.f32 %v3330, %v3132
        %v3527 = vmul.f32 %v3331, %v3133
        %v3528 = vmul.f32 %v3332, %v3134
        %v3529 = vmul.f32 %v3333, %v3135
        %v3530 = vmul.f32 %v3334, %v3136
        %v3531 = vmul.f32 %v3335, %v3137
        %v3532 = vmul.f32 %v3336, %v3138
        %v3533 = vmul.f32 %v3337, %v3139
        %v3534 = vmul.f32 %v3338, %v3140
        %v3535 = vmul.f32 %v3339, %v3141
        %v3536 = vmul.f32 %v3340, %v3142
        %v3537 = vmul.f32 %v3341, %v3143
        %v3538 = vmul.f32 %v3342, %v3144
        %v3539 = vmul.f32 %v3343, %v3145
        %v3540 = vmul.f32 %v3344, %v3146
        %v3541 = vmul.f32 %v3345, %v3147
        %v3542 = vmul.f32 %v3346, %v3148
        %v3543 = vmul.f32 %v3347, %v3149
        %v3544 = vmul.f32 %v3348, %v3150
        %v3545 = vmul.f32 %v3349, %v3151
        %v3546 = vmul.f32 %v3350, %v3152
        %v3547 = vmul.f32 %v3351, %v3153
        %v3548 = vmul.f32 %v3352, %v3154
        %v3549 = vmul.f32 %v3353, %v3155
        %v3550 = vmul.f32 %v3354, %v3156
        %v3552 = vlaneseq
        %v3553 = vshrl.u32 %v3552, 7
        %v3554 = vsub.s32 0, %v3553
        %v3555 = vrot.slane %v3157, %v3554
        %v3557 = vmul.f32 %v3355, %v3555
        %v3558 = vmul.f32 %v3356, %v3555
        %v3559 = vmul.f32 %v3357, %v3555
        %v3560 = vmul.f32 %v3358, %v3555
        %v3561 = vmul.f32 %v3359, %v3555
        %v3562 = vmul.f32 %v3360, %v3555
        %v3563 = vmul.f32 %v3361, %v3555
        %v3564 = vmul.f32 %v3362, %v3555
        %v3565 = vmul.f32 %v3363, %v3555
        %v3566 = vmul.f32 %v3364, %v3555
        %v3567 = vmul.f32 %v3365, %v3555
        %v3568 = vmul.f32 %v3366, %v3555
        %v3569 = vmul.f32 %v3367, %v3555
        %v3570 = vmul.f32 %v3368, %v3555
        %v3571 = vmul.f32 %v3369, %v3555
        %v3572 = vmul.f32 %v3370, %v3555
        %v3573 = vmul.f32 %v3371, %v3555
        %v3574 = vmul.f32 %v3372, %v3555
        %v3575 = vmul.f32 %v3373, %v3555
        %v3576 = vmul.f32 %v3374, %v3555
        %v3577 = vmul.f32 %v3375, %v3555
        %v3578 = vmul.f32 %v3376, %v3555
        %v3579 = vmul.f32 %v3377, %v3555
        %v3580 = vmul.f32 %v3378, %v3555
        %v3581 = vmul.f32 %v3379, %v3555
        %v3582 = vmul.f32 %v3380, %v3555
        %v3583 = vmul.f32 %v3381, %v3555
        %v3584 = vmul.f32 %v3382, %v3555
        %v3585 = vmul.f32 %v3383, %v3555
        %v3586 = vmul.f32 %v3384, %v3555
        %v3587 = vmul.f32 %v3385, %v3555
        %v3588 = vmul.f32 %v3386, %v3555
        %v3589 = vmul.f32 %v3387, %v3555
        %v3590 = vmul.f32 %v3388, %v3555
        %v3591 = vmul.f32 %v3389, %v3555
        %v3592 = vmul.f32 %v3390, %v3555
        %v3593 = vmul.f32 %v3391, %v3555
        %v3594 = vmul.f32 %v3392, %v3555
        %v3595 = vmul.f32 %v3393, %v3555
        %v3596 = vmul.f32 %v3394, %v3555
        %v3597 = vmul.f32 %v3395, %v3555
        %v3598 = vmul.f32 %v3396, %v3555
        %v3599 = vmul.f32 %v3397, %v3555
        %v3600 = vmul.f32 %v3398, %v3555
        %v3601 = vmul.f32 %v3399, %v3555
        %v3602 = vmul.f32 %v3400, %v3555
        %v3603 = vmul.f32 %v3401, %v3555
        %v3604 = vmul.f32 %v3402, %v3555
        %v3605 = vmul.f32 %v3403, %v3555
        %v3606 = vmul.f32 %v3404, %v3555
        %v3607 = vmul.f32 %v3405, %v3555
        %v3608 = vmul.f32 %v3406, %v3555
        %v3609 = vmul.f32 %v3407, %v3555
        %v3610 = vmul.f32 %v3408, %v3555
        %v3611 = vmul.f32 %v3409, %v3555
        %v3612 = vmul.f32 %v3410, %v3555
        %v3613 = vmul.f32 %v3411, %v3555
        %v3614 = vmul.f32 %v3412, %v3555
        %v3615 = vmul.f32 %v3413, %v3555
        %v3616 = vmul.f32 %v3414, %v3555
        %v3617 = vmul.f32 %v3415, %v3555
        %v3618 = vmul.f32 %v3416, %v3555
        %v3619 = vmul.f32 %v3417, %v3555
        %v3620 = vmul.f32 %v3418, %v3555
        %v3621 = vmul.f32 %v3419, %v3555
        %v3622 = vmul.f32 %v3420, %v3555
        %v3623 = vmul.f32 %v3421, %v3555
        %v3624 = vmul.f32 %v3422, %v3555
        %v3625 = vmul.f32 %v3423, %v3555
        %v3626 = vmul.f32 %v3424, %v3555
        %v3627 = vmul.f32 %v3425, %v3555
        %v3628 = vmul.f32 %v3426, %v3555
        %v3629 = vmul.f32 %v3427, %v3555
        %v3630 = vmul.f32 %v3428, %v3555
        %v3631 = vmul.f32 %v3429, %v3555
        %v3632 = vmul.f32 %v3430, %v3555
        %v3633 = vmul.f32 %v3431, %v3555
        %v3634 = vmul.f32 %v3432, %v3555
        %v3635 = vmul.f32 %v3433, %v3555
        %v3636 = vmul.f32 %v3434, %v3555
        %v3637 = vmul.f32 %v3435, %v3555
        %v3638 = vmul.f32 %v3436, %v3555
        %v3639 = vmul.f32 %v3437, %v3555
        %v3640 = vmul.f32 %v3438, %v3555
        %v3641 = vmul.f32 %v3439, %v3555
        %v3642 = vmul.f32 %v3440, %v3555
        %v3643 = vmul.f32 %v3441, %v3555
        %v3644 = vmul.f32 %v3442, %v3555
        %v3645 = vmul.f32 %v3443, %v3555
        %v3646 = vmul.f32 %v3444, %v3555
        %v3647 = vmul.f32 %v3445, %v3555
        %v3648 = vmul.f32 %v3446, %v3555
        %v3649 = vmul.f32 %v3447, %v3555
        %v3650 = vmul.f32 %v3448, %v3555
        %v3651 = vmul.f32 %v3449, %v3555
        %v3652 = vmul.f32 %v3450, %v3555
        %v3653 = vmul.f32 %v3451, %v3555
        %v3654 = vmul.f32 %v3452, %v3555
        %v3655 = vmul.f32 %v3453, %v3555
        %v3656 = vmul.f32 %v3454, %v3555
        %v3657 = vmul.f32 %v3455, %v3555
        %v3658 = vmul.f32 %v3456, %v3555
        %v3659 = vmul.f32 %v3457, %v3555
        %v3660 = vmul.f32 %v3458, %v3555
        %v3661 = vmul.f32 %v3459, %v3555
        %v3662 = vmul.f32 %v3460, %v3555
        %v3663 = vmul.f32 %v3461, %v3555
        %v3664 = vmul.f32 %v3462, %v3555
        %v3665 = vmul.f32 %v3463, %v3555
        %v3666 = vmul.f32 %v3464, %v3555
        %v3667 = vmul.f32 %v3465, %v3555
        %v3668 = vmul.f32 %v3466, %v3555
        %v3669 = vmul.f32 %v3467, %v3555
        %v3670 = vmul.f32 %v3468, %v3555
        %v3671 = vmul.f32 %v3469, %v3555
        %v3672 = vmul.f32 %v3470, %v3555
        %v3673 = vmul.f32 %v3471, %v3555
        %v3674 = vmul.f32 %v3472, %v3555
        %v3675 = vmul.f32 %v3473, %v3555
        %v3676 = vmul.f32 %v3474, %v3555
        %v3677 = vmul.f32 %v3475, %v3555
        %v3678 = vmul.f32 %v3476, %v3555
        %v3679 = vmul.f32 %v3477, %v3555
        %v3680 = vmul.f32 %v3478, %v3555
        %v3681 = vmul.f32 %v3479, %v3555
        %v3682 = vmul.f32 %v3480, %v3555
        %v3683 = vmul.f32 %v3481, %v3555
        %v3684 = vmul.f32 %v3482, %v3555
        %v3685 = vmul.f32 %v3483, %v3555
        %v3686 = vmul.f32 %v3484, %v3555
        %v3687 = vmul.f32 %v3485, %v3555
        %v3688 = vmul.f32 %v3486, %v3555
        %v3689 = vmul.f32 %v3487, %v3555
        %v3690 = vmul.f32 %v3488, %v3555
        %v3691 = vmul.f32 %v3489, %v3555
        %v3692 = vmul.f32 %v3490, %v3555
        %v3693 = vmul.f32 %v3491, %v3555
        %v3694 = vmul.f32 %v3492, %v3555
        %v3695 = vmul.f32 %v3493, %v3555
        %v3696 = vmul.f32 %v3494, %v3555
        %v3697 = vmul.f32 %v3495, %v3555
        %v3698 = vmul.f32 %v3496, %v3555
        %v3699 = vmul.f32 %v3497, %v3555
        %v3700 = vmul.f32 %v3498, %v3555
        %v3701 = vmul.f32 %v3499, %v3555
        %v3702 = vmul.f32 %v3500, %v3555
        %v3703 = vmul.f32 %v3501, %v3555
        %v3704 = vmul.f32 %v3502, %v3555
        %v3705 = vmul.f32 %v3503, %v3555
        %v3706 = vmul.f32 %v3504, %v3555
        %v3707 = vmul.f32 %v3505, %v3555
        %v3708 = vmul.f32 %v3506, %v3555
        %v3709 = vmul.f32 %v3507, %v3555
        %v3710 = vmul.f32 %v3508, %v3555
        %v3711 = vmul.f32 %v3509, %v3555
        %v3712 = vmul.f32 %v3510, %v3555
        %v3713 = vmul.f32 %v3511, %v3555
        %v3714 = vmul.f32 %v3512, %v3555
        %v3715 = vmul.f32 %v3513, %v3555
        %v3716 = vmul.f32 %v3514, %v3555
        %v3717 = vmul.f32 %v3515, %v3555
        %v3718 = vmul.f32 %v3516, %v3555
        %v3719 = vmul.f32 %v3517, %v3555
        %v3720 = vmul.f32 %v3518, %v3555
        %v3721 = vmul.f32 %v3519, %v3555
        %v3722 = vmul.f32 %v3520, %v3555
        %v3723 = vmul.f32 %v3521, %v3555
        %v3724 = vmul.f32 %v3522, %v3555
        %v3725 = vmul.f32 %v3523, %v3555
        %v3726 = vmul.f32 %v3524, %v3555
        %v3727 = vmul.f32 %v3525, %v3555
        %v3728 = vmul.f32 %v3526, %v3555
        %v3729 = vmul.f32 %v3527, %v3555
        %v3730 = vmul.f32 %v3528, %v3555
        %v3731 = vmul.f32 %v3529, %v3555
        %v3732 = vmul.f32 %v3530, %v3555
        %v3733 = vmul.f32 %v3531, %v3555
        %v3734 = vmul.f32 %v3532, %v3555
        %v3735 = vmul.f32 %v3533, %v3555
        %v3736 = vmul.f32 %v3534, %v3555
        %v3737 = vmul.f32 %v3535, %v3555
        %v3738 = vmul.f32 %v3536, %v3555
        %v3739 = vmul.f32 %v3537, %v3555
        %v3740 = vmul.f32 %v3538, %v3555
        %v3741 = vmul.f32 %v3539, %v3555
        %v3742 = vmul.f32 %v3540, %v3555
        %v3743 = vmul.f32 %v3541, %v3555
        %v3744 = vmul.f32 %v3542, %v3555
        %v3745 = vmul.f32 %v3543, %v3555
        %v3746 = vmul.f32 %v3544, %v3555
        %v3747 = vmul.f32 %v3545, %v3555
        %v3748 = vmul.f32 %v3546, %v3555
        %v3749 = vmul.f32 %v3547, %v3555
        %v3750 = vmul.f32 %v3548, %v3555
        %v3751 = vmul.f32 %v3549, %v3555
        %v3752 = vmul.f32 %v3550, %v3555
        %v3754 = vlaneseq
        %v3755 = vshrl.u32 %v3754, 7
        %v3756 = vsub.s32 0, %v3755
        %v3757 = vrot.slane %v3158, %v3756
        %v3759 = vadd.f32 %v3557, %v3757
        %v3760 = vadd.f32 %v3558, %v3757
        %v3761 = vadd.f32 %v3559, %v3757
        %v3762 = vadd.f32 %v3560, %v3757
        %v3763 = vadd.f32 %v3561, %v3757
        %v3764 = vadd.f32 %v3562, %v3757
        %v3765 = vadd.f32 %v3563, %v3757
        %v3766 = vadd.f32 %v3564, %v3757
        %v3767 = vadd.f32 %v3565, %v3757
        %v3768 = vadd.f32 %v3566, %v3757
        %v3769 = vadd.f32 %v3567, %v3757
        %v3770 = vadd.f32 %v3568, %v3757
        %v3771 = vadd.f32 %v3569, %v3757
        %v3772 = vadd.f32 %v3570, %v3757
        %v3773 = vadd.f32 %v3571, %v3757
        %v3774 = vadd.f32 %v3572, %v3757
        %v3775 = vadd.f32 %v3573, %v3757
        %v3776 = vadd.f32 %v3574, %v3757
        %v3777 = vadd.f32 %v3575, %v3757
        %v3778 = vadd.f32 %v3576, %v3757
        %v3779 = vadd.f32 %v3577, %v3757
        %v3780 = vadd.f32 %v3578, %v3757
        %v3781 = vadd.f32 %v3579, %v3757
        %v3782 = vadd.f32 %v3580, %v3757
        %v3783 = vadd.f32 %v3581, %v3757
        %v3784 = vadd.f32 %v3582, %v3757
        %v3785 = vadd.f32 %v3583, %v3757
        %v3786 = vadd.f32 %v3584, %v3757
        %v3787 = vadd.f32 %v3585, %v3757
        %v3788 = vadd.f32 %v3586, %v3757
        %v3789 = vadd.f32 %v3587, %v3757
        %v3790 = vadd.f32 %v3588, %v3757
        %v3791 = vadd.f32 %v3589, %v3757
        %v3792 = vadd.f32 %v3590, %v3757
        %v3793 = vadd.f32 %v3591, %v3757
        %v3794 = vadd.f32 %v3592, %v3757
        %v3795 = vadd.f32 %v3593, %v3757
        %v3796 = vadd.f32 %v3594, %v3757
        %v3797 = vadd.f32 %v3595, %v3757
        %v3798 = vadd.f32 %v3596, %v3757
        %v3799 = vadd.f32 %v3597, %v3757
        %v3800 = vadd.f32 %v3598, %v3757
        %v3801 = vadd.f32 %v3599, %v3757
        %v3802 = vadd.f32 %v3600, %v3757
        %v3803 = vadd.f32 %v3601, %v3757
        %v3804 = vadd.f32 %v3602, %v3757
        %v3805 = vadd.f32 %v3603, %v3757
        %v3806 = vadd.f32 %v3604, %v3757
        %v3807 = vadd.f32 %v3605, %v3757
        %v3808 = vadd.f32 %v3606, %v3757
        %v3809 = vadd.f32 %v3607, %v3757
        %v3810 = vadd.f32 %v3608, %v3757
        %v3811 = vadd.f32 %v3609, %v3757
        %v3812 = vadd.f32 %v3610, %v3757
        %v3813 = vadd.f32 %v3611, %v3757
        %v3814 = vadd.f32 %v3612, %v3757
        %v3815 = vadd.f32 %v3613, %v3757
        %v3816 = vadd.f32 %v3614, %v3757
        %v3817 = vadd.f32 %v3615, %v3757
        %v3818 = vadd.f32 %v3616, %v3757
        %v3819 = vadd.f32 %v3617, %v3757
        %v3820 = vadd.f32 %v3618, %v3757
        %v3821 = vadd.f32 %v3619, %v3757
        %v3822 = vadd.f32 %v3620, %v3757
        %v3823 = vadd.f32 %v3621, %v3757
        %v3824 = vadd.f32 %v3622, %v3757
        %v3825 = vadd.f32 %v3623, %v3757
        %v3826 = vadd.f32 %v3624, %v3757
        %v3827 = vadd.f32 %v3625, %v3757
        %v3828 = vadd.f32 %v3626, %v3757
        %v3829 = vadd.f32 %v3627, %v3757
        %v3830 = vadd.f32 %v3628, %v3757
        %v3831 = vadd.f32 %v3629, %v3757
        %v3832 = vadd.f32 %v3630, %v3757
        %v3833 = vadd.f32 %v3631, %v3757
        %v3834 = vadd.f32 %v3632, %v3757
        %v3835 = vadd.f32 %v3633, %v3757
        %v3836 = vadd.f32 %v3634, %v3757
        %v3837 = vadd.f32 %v3635, %v3757
        %v3838 = vadd.f32 %v3636, %v3757
        %v3839 = vadd.f32 %v3637, %v3757
        %v3840 = vadd.f32 %v3638, %v3757
        %v3841 = vadd.f32 %v3639, %v3757
        %v3842 = vadd.f32 %v3640, %v3757
        %v3843 = vadd.f32 %v3641, %v3757
        %v3844 = vadd.f32 %v3642, %v3757
        %v3845 = vadd.f32 %v3643, %v3757
        %v3846 = vadd.f32 %v3644, %v3757
        %v3847 = vadd.f32 %v3645, %v3757
        %v3848 = vadd.f32 %v3646, %v3757
        %v3849 = vadd.f32 %v3647, %v3757
        %v3850 = vadd.f32 %v3648, %v3757
        %v3851 = vadd.f32 %v3649, %v3757
        %v3852 = vadd.f32 %v3650, %v3757
        %v3853 = vadd.f32 %v3651, %v3757
        %v3854 = vadd.f32 %v3652, %v3757
        %v3855 = vadd.f32 %v3653, %v3757
        %v3856 = vadd.f32 %v3654, %v3757
        %v3857 = vadd.f32 %v3655, %v3757
        %v3858 = vadd.f32 %v3656, %v3757
        %v3859 = vadd.f32 %v3657, %v3757
        %v3860 = vadd.f32 %v3658, %v3757
        %v3861 = vadd.f32 %v3659, %v3757
        %v3862 = vadd.f32 %v3660, %v3757
        %v3863 = vadd.f32 %v3661, %v3757
        %v3864 = vadd.f32 %v3662, %v3757
        %v3865 = vadd.f32 %v3663, %v3757
        %v3866 = vadd.f32 %v3664, %v3757
        %v3867 = vadd.f32 %v3665, %v3757
        %v3868 = vadd.f32 %v3666, %v3757
        %v3869 = vadd.f32 %v3667, %v3757
        %v3870 = vadd.f32 %v3668, %v3757
        %v3871 = vadd.f32 %v3669, %v3757
        %v3872 = vadd.f32 %v3670, %v3757
        %v3873 = vadd.f32 %v3671, %v3757
        %v3874 = vadd.f32 %v3672, %v3757
        %v3875 = vadd.f32 %v3673, %v3757
        %v3876 = vadd.f32 %v3674, %v3757
        %v3877 = vadd.f32 %v3675, %v3757
        %v3878 = vadd.f32 %v3676, %v3757
        %v3879 = vadd.f32 %v3677, %v3757
        %v3880 = vadd.f32 %v3678, %v3757
        %v3881 = vadd.f32 %v3679, %v3757
        %v3882 = vadd.f32 %v3680, %v3757
        %v3883 = vadd.f32 %v3681, %v3757
        %v3884 = vadd.f32 %v3682, %v3757
        %v3885 = vadd.f32 %v3683, %v3757
        %v3886 = vadd.f32 %v3684, %v3757
        %v3887 = vadd.f32 %v3685, %v3757
        %v3888 = vadd.f32 %v3686, %v3757
        %v3889 = vadd.f32 %v3687, %v3757
        %v3890 = vadd.f32 %v3688, %v3757
        %v3891 = vadd.f32 %v3689, %v3757
        %v3892 = vadd.f32 %v3690, %v3757
        %v3893 = vadd.f32 %v3691, %v3757
        %v3894 = vadd.f32 %v3692, %v3757
        %v3895 = vadd.f32 %v3693, %v3757
        %v3896 = vadd.f32 %v3694, %v3757
        %v3897 = vadd.f32 %v3695, %v3757
        %v3898 = vadd.f32 %v3696, %v3757
        %v3899 = vadd.f32 %v3697, %v3757
        %v3900 = vadd.f32 %v3698, %v3757
        %v3901 = vadd.f32 %v3699, %v3757
        %v3902 = vadd.f32 %v3700, %v3757
        %v3903 = vadd.f32 %v3701, %v3757
        %v3904 = vadd.f32 %v3702, %v3757
        %v3905 = vadd.f32 %v3703, %v3757
        %v3906 = vadd.f32 %v3704, %v3757
        %v3907 = vadd.f32 %v3705, %v3757
        %v3908 = vadd.f32 %v3706, %v3757
        %v3909 = vadd.f32 %v3707, %v3757
        %v3910 = vadd.f32 %v3708, %v3757
        %v3911 = vadd.f32 %v3709, %v3757
        %v3912 = vadd.f32 %v3710, %v3757
        %v3913 = vadd.f32 %v3711, %v3757
        %v3914 = vadd.f32 %v3712, %v3757
        %v3915 = vadd.f32 %v3713, %v3757
        %v3916 = vadd.f32 %v3714, %v3757
        %v3917 = vadd.f32 %v3715, %v3757
        %v3918 = vadd.f32 %v3716, %v3757
        %v3919 = vadd.f32 %v3717, %v3757
        %v3920 = vadd.f32 %v3718, %v3757
        %v3921 = vadd.f32 %v3719, %v3757
        %v3922 = vadd.f32 %v3720, %v3757
        %v3923 = vadd.f32 %v3721, %v3757
        %v3924 = vadd.f32 %v3722, %v3757
        %v3925 = vadd.f32 %v3723, %v3757
        %v3926 = vadd.f32 %v3724, %v3757
        %v3927 = vadd.f32 %v3725, %v3757
        %v3928 = vadd.f32 %v3726, %v3757
        %v3929 = vadd.f32 %v3727, %v3757
        %v3930 = vadd.f32 %v3728, %v3757
        %v3931 = vadd.f32 %v3729, %v3757
        %v3932 = vadd.f32 %v3730, %v3757
        %v3933 = vadd.f32 %v3731, %v3757
        %v3934 = vadd.f32 %v3732, %v3757
        %v3935 = vadd.f32 %v3733, %v3757
        %v3936 = vadd.f32 %v3734, %v3757
        %v3937 = vadd.f32 %v3735, %v3757
        %v3938 = vadd.f32 %v3736, %v3757
        %v3939 = vadd.f32 %v3737, %v3757
        %v3940 = vadd.f32 %v3738, %v3757
        %v3941 = vadd.f32 %v3739, %v3757
        %v3942 = vadd.f32 %v3740, %v3757
        %v3943 = vadd.f32 %v3741, %v3757
        %v3944 = vadd.f32 %v3742, %v3757
        %v3945 = vadd.f32 %v3743, %v3757
        %v3946 = vadd.f32 %v3744, %v3757
        %v3947 = vadd.f32 %v3745, %v3757
        %v3948 = vadd.f32 %v3746, %v3757
        %v3949 = vadd.f32 %v3747, %v3757
        %v3950 = vadd.f32 %v3748, %v3757
        %v3951 = vadd.f32 %v3749, %v3757
        %v3952 = vadd.f32 %v3750, %v3757
        %v3953 = vadd.f32 %v3751, %v3757
        %v3954 = vadd.f32 %v3752, %v3757
        %3955 = vst.msk [vmem:[%s213] sm:$0xff] %vm412, %v3759
        %3956 = vst.msk [vmem:[%s213 + $0x8] sm:$0xff] %vm412, %v3760
        %3957 = vst.msk [vmem:[%s213 + $0x10] sm:$0xff] %vm412, %v3761
        %3958 = vst.msk [vmem:[%s213 + $0x18] sm:$0xff] %vm412, %v3762
        %3959 = vst.msk [vmem:[%s213 + $0x20] sm:$0xff] %vm412, %v3763
        %3960 = vst.msk [vmem:[%s213 + $0x28] sm:$0xff] %vm412, %v3764
        %3961 = vst.msk [vmem:[%s213 + $0x30] sm:$0xff] %vm412, %v3765
        %3962 = vst.msk [vmem:[%s213 + $0x38] sm:$0xff] %vm412, %v3766
        %3963 = vst.msk [vmem:[%s213 + $0x40] sm:$0xff] %vm412, %v3767
        %3964 = vst.msk [vmem:[%s213 + $0x48] sm:$0xff] %vm412, %v3768
        %3965 = vst.msk [vmem:[%s213 + $0x50] sm:$0xff] %vm412, %v3769
        %3966 = vst.msk [vmem:[%s213 + $0x58] sm:$0xff] %vm412, %v3770
        %3967 = vst.msk [vmem:[%s213 + $0x60] sm:$0xff] %vm412, %v3771
        %3968 = vst.msk [vmem:[%s213 + $0x68] sm:$0xff] %vm412, %v3772
        %3969 = vst.msk [vmem:[%s213 + $0x70] sm:$0xff] %vm412, %v3773
        %3970 = vst.msk [vmem:[%s213 + $0x78] sm:$0xff] %vm412, %v3774
        %3971 = vst.msk [vmem:[%s213 + $0x80] sm:$0xff] %vm412, %v3775
        %3972 = vst.msk [vmem:[%s213 + $0x88] sm:$0xff] %vm412, %v3776
        %3973 = vst.msk [vmem:[%s213 + $0x90] sm:$0xff] %vm412, %v3777
        %3974 = vst.msk [vmem:[%s213 + $0x98] sm:$0xff] %vm412, %v3778
        %3975 = vst.msk [vmem:[%s213 + $0xa0] sm:$0xff] %vm412, %v3779
        %3976 = vst.msk [vmem:[%s213 + $0xa8] sm:$0xff] %vm412, %v3780
        %3977 = vst.msk [vmem:[%s213 + $0xb0] sm:$0xff] %vm412, %v3781
        %3978 = vst.msk [vmem:[%s213 + $0xb8] sm:$0xff] %vm412, %v3782
        %3979 = vst.msk [vmem:[%s213 + $0xc0] sm:$0xff] %vm412, %v3783
        %3980 = vst.msk [vmem:[%s213 + $0xc8] sm:$0xff] %vm412, %v3784
        %3981 = vst.msk [vmem:[%s213 + $0xd0] sm:$0xff] %vm412, %v3785
        %3982 = vst.msk [vmem:[%s213 + $0xd8] sm:$0xff] %vm412, %v3786
        %3983 = vst.msk [vmem:[%s213 + $0xe0] sm:$0xff] %vm412, %v3787
        %3984 = vst.msk [vmem:[%s213 + $0xe8] sm:$0xff] %vm412, %v3788
        %3985 = vst.msk [vmem:[%s213 + $0xf0] sm:$0xff] %vm412, %v3789
        %3986 = vst.msk [vmem:[%s213 + $0xf8] sm:$0xff] %vm412, %v3790
        %3987 = vst.msk [vmem:[%s213 + $0x100] sm:$0xff] %vm412, %v3791
        %3988 = vst.msk [vmem:[%s213 + $0x108] sm:$0xff] %vm412, %v3792
        %3989 = vst.msk [vmem:[%s213 + $0x110] sm:$0xff] %vm412, %v3793
        %3990 = vst.msk [vmem:[%s213 + $0x118] sm:$0xff] %vm412, %v3794
        %3991 = vst.msk [vmem:[%s213 + $0x120] sm:$0xff] %vm412, %v3795
        %3992 = vst.msk [vmem:[%s213 + $0x128] sm:$0xff] %vm412, %v3796
        %3993 = vst.msk [vmem:[%s213 + $0x130] sm:$0xff] %vm412, %v3797
        %3994 = vst.msk [vmem:[%s213 + $0x138] sm:$0xff] %vm412, %v3798
        %3995 = vst.msk [vmem:[%s213 + $0x140] sm:$0xff] %vm412, %v3799
        %3996 = vst.msk [vmem:[%s213 + $0x148] sm:$0xff] %vm412, %v3800
        %3997 = vst.msk [vmem:[%s213 + $0x150] sm:$0xff] %vm412, %v3801
        %3998 = vst.msk [vmem:[%s213 + $0x158] sm:$0xff] %vm412, %v3802
        %3999 = vst.msk [vmem:[%s213 + $0x160] sm:$0xff] %vm412, %v3803
        %4000 = vst.msk [vmem:[%s213 + $0x168] sm:$0xff] %vm412, %v3804
        %4001 = vst.msk [vmem:[%s213 + $0x170] sm:$0xff] %vm412, %v3805
        %4002 = vst.msk [vmem:[%s213 + $0x178] sm:$0xff] %vm412, %v3806
        %4003 = vst.msk [vmem:[%s213 + $0x180] sm:$0xff] %vm412, %v3807
        %4004 = vst.msk [vmem:[%s213 + $0x188] sm:$0xff] %vm412, %v3808
        %4005 = vst.msk [vmem:[%s213 + $0x190] sm:$0xff] %vm412, %v3809
        %4006 = vst.msk [vmem:[%s213 + $0x198] sm:$0xff] %vm412, %v3810
        %4007 = vst.msk [vmem:[%s213 + $0x1a0] sm:$0xff] %vm412, %v3811
        %4008 = vst.msk [vmem:[%s213 + $0x1a8] sm:$0xff] %vm412, %v3812
        %4009 = vst.msk [vmem:[%s213 + $0x1b0] sm:$0xff] %vm412, %v3813
        %4010 = vst.msk [vmem:[%s213 + $0x1b8] sm:$0xff] %vm412, %v3814
        %4011 = vst.msk [vmem:[%s213 + $0x1c0] sm:$0xff] %vm412, %v3815
        %4012 = vst.msk [vmem:[%s213 + $0x1c8] sm:$0xff] %vm412, %v3816
        %4013 = vst.msk [vmem:[%s213 + $0x1d0] sm:$0xff] %vm412, %v3817
        %4014 = vst.msk [vmem:[%s213 + $0x1d8] sm:$0xff] %vm412, %v3818
        %4015 = vst.msk [vmem:[%s213 + $0x1e0] sm:$0xff] %vm412, %v3819
        %4016 = vst.msk [vmem:[%s213 + $0x1e8] sm:$0xff] %vm412, %v3820
        %4017 = vst.msk [vmem:[%s213 + $0x1f0] sm:$0xff] %vm412, %v3821
        %4018 = vst.msk [vmem:[%s213 + $0x1f8] sm:$0xff] %vm412, %v3822
        %4019 = vst.msk [vmem:[%s213 + $0x200] sm:$0xff] %vm412, %v3823
        %4020 = vst.msk [vmem:[%s213 + $0x208] sm:$0xff] %vm412, %v3824
        %4021 = vst.msk [vmem:[%s213 + $0x210] sm:$0xff] %vm412, %v3825
        %4022 = vst.msk [vmem:[%s213 + $0x218] sm:$0xff] %vm412, %v3826
        %4023 = vst.msk [vmem:[%s213 + $0x220] sm:$0xff] %vm412, %v3827
        %4024 = vst.msk [vmem:[%s213 + $0x228] sm:$0xff] %vm412, %v3828
        %4025 = vst.msk [vmem:[%s213 + $0x230] sm:$0xff] %vm412, %v3829
        %4026 = vst.msk [vmem:[%s213 + $0x238] sm:$0xff] %vm412, %v3830
        %4027 = vst.msk [vmem:[%s213 + $0x240] sm:$0xff] %vm412, %v3831
        %4028 = vst.msk [vmem:[%s213 + $0x248] sm:$0xff] %vm412, %v3832
        %4029 = vst.msk [vmem:[%s213 + $0x250] sm:$0xff] %vm412, %v3833
        %4030 = vst.msk [vmem:[%s213 + $0x258] sm:$0xff] %vm412, %v3834
        %4031 = vst.msk [vmem:[%s213 + $0x260] sm:$0xff] %vm412, %v3835
        %4032 = vst.msk [vmem:[%s213 + $0x268] sm:$0xff] %vm412, %v3836
        %4033 = vst.msk [vmem:[%s213 + $0x270] sm:$0xff] %vm412, %v3837
        %4034 = vst.msk [vmem:[%s213 + $0x278] sm:$0xff] %vm412, %v3838
        %4035 = vst.msk [vmem:[%s213 + $0x280] sm:$0xff] %vm412, %v3839
        %4036 = vst.msk [vmem:[%s213 + $0x288] sm:$0xff] %vm412, %v3840
        %4037 = vst.msk [vmem:[%s213 + $0x290] sm:$0xff] %vm412, %v3841
        %4038 = vst.msk [vmem:[%s213 + $0x298] sm:$0xff] %vm412, %v3842
        %4039 = vst.msk [vmem:[%s213 + $0x2a0] sm:$0xff] %vm412, %v3843
        %4040 = vst.msk [vmem:[%s213 + $0x2a8] sm:$0xff] %vm412, %v3844
        %4041 = vst.msk [vmem:[%s213 + $0x2b0] sm:$0xff] %vm412, %v3845
        %4042 = vst.msk [vmem:[%s213 + $0x2b8] sm:$0xff] %vm412, %v3846
        %4043 = vst.msk [vmem:[%s213 + $0x2c0] sm:$0xff] %vm412, %v3847
        %4044 = vst.msk [vmem:[%s213 + $0x2c8] sm:$0xff] %vm412, %v3848
        %4045 = vst.msk [vmem:[%s213 + $0x2d0] sm:$0xff] %vm412, %v3849
        %4046 = vst.msk [vmem:[%s213 + $0x2d8] sm:$0xff] %vm412, %v3850
        %4047 = vst.msk [vmem:[%s213 + $0x2e0] sm:$0xff] %vm412, %v3851
        %4048 = vst.msk [vmem:[%s213 + $0x2e8] sm:$0xff] %vm412, %v3852
        %4049 = vst.msk [vmem:[%s213 + $0x2f0] sm:$0xff] %vm412, %v3853
        %4050 = vst.msk [vmem:[%s213 + $0x2f8] sm:$0xff] %vm412, %v3854
        %4051 = vst.msk [vmem:[%s213 + $0x300] sm:$0xff] %vm412, %v3855
        %4052 = vst.msk [vmem:[%s213 + $0x308] sm:$0xff] %vm412, %v3856
        %4053 = vst.msk [vmem:[%s213 + $0x310] sm:$0xff] %vm412, %v3857
        %4054 = vst.msk [vmem:[%s213 + $0x318] sm:$0xff] %vm412, %v3858
        %4055 = vst.msk [vmem:[%s213 + $0x320] sm:$0xff] %vm412, %v3859
        %4056 = vst.msk [vmem:[%s213 + $0x328] sm:$0xff] %vm412, %v3860
        %4057 = vst.msk [vmem:[%s213 + $0x330] sm:$0xff] %vm412, %v3861
        %4058 = vst.msk [vmem:[%s213 + $0x338] sm:$0xff] %vm412, %v3862
        %4059 = vst.msk [vmem:[%s213 + $0x340] sm:$0xff] %vm412, %v3863
        %4060 = vst.msk [vmem:[%s213 + $0x348] sm:$0xff] %vm412, %v3864
        %4061 = vst.msk [vmem:[%s213 + $0x350] sm:$0xff] %vm412, %v3865
        %4062 = vst.msk [vmem:[%s213 + $0x358] sm:$0xff] %vm412, %v3866
        %4063 = vst.msk [vmem:[%s213 + $0x360] sm:$0xff] %vm412, %v3867
        %4064 = vst.msk [vmem:[%s213 + $0x368] sm:$0xff] %vm412, %v3868
        %4065 = vst.msk [vmem:[%s213 + $0x370] sm:$0xff] %vm412, %v3869
        %4066 = vst.msk [vmem:[%s213 + $0x378] sm:$0xff] %vm412, %v3870
        %4067 = vst.msk [vmem:[%s213 + $0x380] sm:$0xff] %vm412, %v3871
        %4068 = vst.msk [vmem:[%s213 + $0x388] sm:$0xff] %vm412, %v3872
        %4069 = vst.msk [vmem:[%s213 + $0x390] sm:$0xff] %vm412, %v3873
        %4070 = vst.msk [vmem:[%s213 + $0x398] sm:$0xff] %vm412, %v3874
        %4071 = vst.msk [vmem:[%s213 + $0x3a0] sm:$0xff] %vm412, %v3875
        %4072 = vst.msk [vmem:[%s213 + $0x3a8] sm:$0xff] %vm412, %v3876
        %4073 = vst.msk [vmem:[%s213 + $0x3b0] sm:$0xff] %vm412, %v3877
        %4074 = vst.msk [vmem:[%s213 + $0x3b8] sm:$0xff] %vm412, %v3878
        %4075 = vst.msk [vmem:[%s213 + $0x3c0] sm:$0xff] %vm412, %v3879
        %4076 = vst.msk [vmem:[%s213 + $0x3c8] sm:$0xff] %vm412, %v3880
        %4077 = vst.msk [vmem:[%s213 + $0x3d0] sm:$0xff] %vm412, %v3881
        %4078 = vst.msk [vmem:[%s213 + $0x3d8] sm:$0xff] %vm412, %v3882
        %4079 = vst.msk [vmem:[%s213 + $0x3e0] sm:$0xff] %vm412, %v3883
        %4080 = vst.msk [vmem:[%s213 + $0x3e8] sm:$0xff] %vm412, %v3884
        %4081 = vst.msk [vmem:[%s213 + $0x3f0] sm:$0xff] %vm412, %v3885
        %4082 = vst.msk [vmem:[%s213 + $0x3f8] sm:$0xff] %vm412, %v3886
        %4083 = vst.msk [vmem:[%s213 + $0x400] sm:$0xff] %vm412, %v3887
        %4084 = vst.msk [vmem:[%s213 + $0x408] sm:$0xff] %vm412, %v3888
        %4085 = vst.msk [vmem:[%s213 + $0x410] sm:$0xff] %vm412, %v3889
        %4086 = vst.msk [vmem:[%s213 + $0x418] sm:$0xff] %vm412, %v3890
        %4087 = vst.msk [vmem:[%s213 + $0x420] sm:$0xff] %vm412, %v3891
        %4088 = vst.msk [vmem:[%s213 + $0x428] sm:$0xff] %vm412, %v3892
        %4089 = vst.msk [vmem:[%s213 + $0x430] sm:$0xff] %vm412, %v3893
        %4090 = vst.msk [vmem:[%s213 + $0x438] sm:$0xff] %vm412, %v3894
        %4091 = vst.msk [vmem:[%s213 + $0x440] sm:$0xff] %vm412, %v3895
        %4092 = vst.msk [vmem:[%s213 + $0x448] sm:$0xff] %vm412, %v3896
        %4093 = vst.msk [vmem:[%s213 + $0x450] sm:$0xff] %vm412, %v3897
        %4094 = vst.msk [vmem:[%s213 + $0x458] sm:$0xff] %vm412, %v3898
        %4095 = vst.msk [vmem:[%s213 + $0x460] sm:$0xff] %vm412, %v3899
        %4096 = vst.msk [vmem:[%s213 + $0x468] sm:$0xff] %vm412, %v3900
        %4097 = vst.msk [vmem:[%s213 + $0x470] sm:$0xff] %vm412, %v3901
        %4098 = vst.msk [vmem:[%s213 + $0x478] sm:$0xff] %vm412, %v3902
        %4099 = vst.msk [vmem:[%s213 + $0x480] sm:$0xff] %vm412, %v3903
        %4100 = vst.msk [vmem:[%s213 + $0x488] sm:$0xff] %vm412, %v3904
        %4101 = vst.msk [vmem:[%s213 + $0x490] sm:$0xff] %vm412, %v3905
        %4102 = vst.msk [vmem:[%s213 + $0x498] sm:$0xff] %vm412, %v3906
        %4103 = vst.msk [vmem:[%s213 + $0x4a0] sm:$0xff] %vm412, %v3907
        %4104 = vst.msk [vmem:[%s213 + $0x4a8] sm:$0xff] %vm412, %v3908
        %4105 = vst.msk [vmem:[%s213 + $0x4b0] sm:$0xff] %vm412, %v3909
        %4106 = vst.msk [vmem:[%s213 + $0x4b8] sm:$0xff] %vm412, %v3910
        %4107 = vst.msk [vmem:[%s213 + $0x4c0] sm:$0xff] %vm412, %v3911
        %4108 = vst.msk [vmem:[%s213 + $0x4c8] sm:$0xff] %vm412, %v3912
        %4109 = vst.msk [vmem:[%s213 + $0x4d0] sm:$0xff] %vm412, %v3913
        %4110 = vst.msk [vmem:[%s213 + $0x4d8] sm:$0xff] %vm412, %v3914
        %4111 = vst.msk [vmem:[%s213 + $0x4e0] sm:$0xff] %vm412, %v3915
        %4112 = vst.msk [vmem:[%s213 + $0x4e8] sm:$0xff] %vm412, %v3916
        %4113 = vst.msk [vmem:[%s213 + $0x4f0] sm:$0xff] %vm412, %v3917
        %4114 = vst.msk [vmem:[%s213 + $0x4f8] sm:$0xff] %vm412, %v3918
        %4115 = vst.msk [vmem:[%s213 + $0x500] sm:$0xff] %vm412, %v3919
        %4116 = vst.msk [vmem:[%s213 + $0x508] sm:$0xff] %vm412, %v3920
        %4117 = vst.msk [vmem:[%s213 + $0x510] sm:$0xff] %vm412, %v3921
        %4118 = vst.msk [vmem:[%s213 + $0x518] sm:$0xff] %vm412, %v3922
        %4119 = vst.msk [vmem:[%s213 + $0x520] sm:$0xff] %vm412, %v3923
        %4120 = vst.msk [vmem:[%s213 + $0x528] sm:$0xff] %vm412, %v3924
        %4121 = vst.msk [vmem:[%s213 + $0x530] sm:$0xff] %vm412, %v3925
        %4122 = vst.msk [vmem:[%s213 + $0x538] sm:$0xff] %vm412, %v3926
        %4123 = vst.msk [vmem:[%s213 + $0x540] sm:$0xff] %vm412, %v3927
        %4124 = vst.msk [vmem:[%s213 + $0x548] sm:$0xff] %vm412, %v3928
        %4125 = vst.msk [vmem:[%s213 + $0x550] sm:$0xff] %vm412, %v3929
        %4126 = vst.msk [vmem:[%s213 + $0x558] sm:$0xff] %vm412, %v3930
        %4127 = vst.msk [vmem:[%s213 + $0x560] sm:$0xff] %vm412, %v3931
        %4128 = vst.msk [vmem:[%s213 + $0x568] sm:$0xff] %vm412, %v3932
        %4129 = vst.msk [vmem:[%s213 + $0x570] sm:$0xff] %vm412, %v3933
        %4130 = vst.msk [vmem:[%s213 + $0x578] sm:$0xff] %vm412, %v3934
        %4131 = vst.msk [vmem:[%s213 + $0x580] sm:$0xff] %vm412, %v3935
        %4132 = vst.msk [vmem:[%s213 + $0x588] sm:$0xff] %vm412, %v3936
        %4133 = vst.msk [vmem:[%s213 + $0x590] sm:$0xff] %vm412, %v3937
        %4134 = vst.msk [vmem:[%s213 + $0x598] sm:$0xff] %vm412, %v3938
        %4135 = vst.msk [vmem:[%s213 + $0x5a0] sm:$0xff] %vm412, %v3939
        %4136 = vst.msk [vmem:[%s213 + $0x5a8] sm:$0xff] %vm412, %v3940
        %4137 = vst.msk [vmem:[%s213 + $0x5b0] sm:$0xff] %vm412, %v3941
        %4138 = vst.msk [vmem:[%s213 + $0x5b8] sm:$0xff] %vm412, %v3942
        %4139 = vst.msk [vmem:[%s213 + $0x5c0] sm:$0xff] %vm412, %v3943
        %4140 = vst.msk [vmem:[%s213 + $0x5c8] sm:$0xff] %vm412, %v3944
        %4141 = vst.msk [vmem:[%s213 + $0x5d0] sm:$0xff] %vm412, %v3945
        %4142 = vst.msk [vmem:[%s213 + $0x5d8] sm:$0xff] %vm412, %v3946
        %4143 = vst.msk [vmem:[%s213 + $0x5e0] sm:$0xff] %vm412, %v3947
        %4144 = vst.msk [vmem:[%s213 + $0x5e8] sm:$0xff] %vm412, %v3948
        %4145 = vst.msk [vmem:[%s213 + $0x5f0] sm:$0xff] %vm412, %v3949
        %4146 = vst.msk [vmem:[%s213 + $0x5f8] sm:$0xff] %vm412, %v3950
        %4147 = vst.msk [vmem:[%s213 + $0x600] sm:$0xff] %vm412, %v3951
        %4148 = vst.msk [vmem:[%s213 + $0x608] sm:$0xff] %vm412, %v3952
        %4149 = vst.msk [vmem:[%s213 + $0x610] sm:$0xff] %vm412, %v3953
        %4150 = vst.msk [vmem:[%s213 + $0x618] sm:$0xff] %vm412, %v3954
        %s4151 = sand.u32 %s97, 1
        %s4152 = scalar_lea.sflag [#allocation4], %s4151
        %s4153 = sand.u32 %s97, 1
        %s4154 = smul.addr %s4153, 1568
        %s4155 = scalar_lea.vmem [#allocation8], %s4154
        // Predicated region
        $region45: #{layernorm_pallas.1} parent=31 // pred_check
          %p4156 = pneg %p107
        $region46: #{layernorm_pallas.1} parent=31 // pred_check_branch
          %4158 = sbr.rel (%p4156) target = $region48
        $region47: #{layernorm_pallas.1} parent=31 // pred_region
          %s4159 = smul.u32 196, %s21
          %s4161 = ssub.s32 25088, 25088
          %4162 = vsyncadd %s4152, %s4161
          %s4163 = smul.addr %s4159, 128
          %s4164 = scalar_lea.hbm %s3, %s4163
          %s4165 = sshll.u32 %s4155, 4
          %s4166 = int_to_ptr.vmem [resolvable:$true] %s4165
          %4171 = dma.vmem_to_hbm [thread:$0]  %s4166, 25088, %s4164, %s4152, 128, 128, 8
        $region48: #{layernorm_pallas.1} parent=31 // pred_fallthru
          _
      $region32: #{layernorm_pallas.1} parent=5 // pred_fallthru
        _
      %p4172 = scmp.le.s32.totalorder 2, %s16
      // Predicated region
      $region49: #{layernorm_pallas.1} parent=5 // pred_check
        %p4173 = pneg %p4172
      $region50: #{layernorm_pallas.1} parent=5 // pred_check_branch
        %4175 = sbr.rel (%p4173) target = $region52
      $region51: #{layernorm_pallas.1} parent=5 // pred_region
        %s4176 = ssub.s32 %s16, 2
        // Predicated region
        $region53: #{layernorm_pallas.1} parent=51 // pred_check
          %p4177 = pneg %p113
        $region54: #{layernorm_pallas.1} parent=51 // pred_check_branch
          %4179 = sbr.rel (%p4177) target = $region56
        $region55: #{layernorm_pallas.1} parent=51 // pred_region
          %s4180 = sand.u32 %s98, 1
          %s4181 = scalar_lea.sflag [#allocation4], %s4180
          %s4182 = sand.u32 %s98, 1
          %s4183 = smul.addr %s4182, 1568
          %s4184 = scalar_lea.vmem [#allocation8], %s4183
          %4185 = dma.done %s4181, 25088
        $region56: #{layernorm_pallas.1} parent=51 // pred_fallthru
          _
      $region52: #{layernorm_pallas.1} parent=5 // pred_fallthru
        _
    $region6: #{layernorm_pallas.1} parent=1 // loop_footer
      %s20 = sadd.s32 1, %s16
    $region7: #{layernorm_pallas.1} parent=1 // loop_footer_branch
      %15 = sbr.rel target = $region3
    $region8: #{layernorm_pallas.1} parent=1 // loop_exit
      _
    %4186 = vsyncpa [#allocation3], 1
    %s4187 = scalar_lea.sflag [#allocation3], 1
    %4188 = vsyncpa %s4187, 1
    %4189 = vsyncpa [#allocation6], 1
    %4190 = vsyncpa [#allocation4], 1
    %s4191 = scalar_lea.sflag [#allocation4], 1
    %4192 = vsyncpa %s4191, 1

</llo_original>
